<compile_context>
chip_gen: v7x
topology: tpu7x:2x2x1
jax: 0.10.0
libtpu: 0.0.40
codegen_flags: <defaults>
</compile_context>

<pallas_src>
import jax
import jax.numpy as jnp
from jax import lax
from jax.experimental import pallas as pl
from jax.experimental.pallas import tpu as pltpu


def relu_conv_stats_kernel(x_ref, w_ref, stat_ref):
    """ReLU + 1x1-conv matmul for one (sample, hw-tile); emit packed partial stats.

    x_ref:    (1, Cin, T)   float32
    w_ref:    (Cout, Cin)   bfloat16 (resident; constant block index)
    stat_ref: (1, 1, 2, Cout) float32  -- row 0: sum, row 1: sum of squares
    """
    # ReLU in f32 on the VPU (v5e has no bf16 VPU path), cast only for the MXU.
    xr = jnp.maximum(x_ref[0], 0.0).astype(jnp.bfloat16)        # (Cin, T)
    # (hw, Cout) orientation: contract xr dim 0 with w dim 1 -> (T, Cout).
    # Cout lands on lanes, so the reductions below are cheap sublane reduces
    # and the stat store is lane-dense.
    yt = lax.dot_general(
        xr, w_ref[...],
        dimension_numbers=(((0,), (1,)), ((), ())),
        preferred_element_type=jnp.float32)                     # (T, Cout) f32
    s = jnp.sum(yt, axis=0, keepdims=True)                      # (1, Cout)
    ss = jnp.sum(yt * yt, axis=0, keepdims=True)                # (1, Cout)
    stat_ref[...] = jnp.concatenate([s, ss], axis=0).reshape(1, 1, 2, -1)


def relu_conv_bn_kernel(x_ref, w_ref, scale_ref, shift_ref, o_ref):
    """Recompute ReLU + 1x1-conv and apply the per-channel affine normalization.

    Output is channel-major (Cout, T) so the NCHW layout needs no transpose.
    """
    xr = jnp.maximum(x_ref[0], 0.0).astype(jnp.bfloat16)        # (Cin, T)
    y = jnp.dot(w_ref[...], xr, preferred_element_type=jnp.float32)  # (Cout, T)
    o_ref[0] = (y * scale_ref[...] + shift_ref[...]).astype(o_ref.dtype)


def _pick_hw_tile(hw_pad, max_tile):
    """Largest multiple-of-128 divisor of hw_pad that is <= max_tile."""
    t = min(hw_pad, max_tile)
    t -= t % 128
    while hw_pad % t:
        t -= 128
    return t


def fused_relu_conv1x1_bn(x_nchw, w, gamma, beta, eps=1e-5,
                          out_dtype=jnp.float32, max_hw_tile=2048):
    N, Cin, H, W = x_nchw.shape
    Cout = w.shape[0]
    HW = H * W
    M = N * HW                                   # true element count for BN stats
    HW_pad = ((HW + 127) // 128) * 128           # lane-align the spatial axis

    x3d = x_nchw.reshape(N, Cin, HW)             # free reshape; stays float32
    if HW_pad != HW:
        # Zero pad: ReLU(0)=0 and W@0=0, so padded columns contribute exactly 0
        # to both sum and sum-of-squares; only the divisor M (true count) matters.
        x3d = jnp.pad(x3d, ((0, 0), (0, 0), (0, HW_pad - HW)))

    t_hw = _pick_hw_tile(HW_pad, max_hw_tile)
    n_hw = HW_pad // t_hw

    w_bf = jnp.asarray(w).reshape(Cout, -1).astype(jnp.bfloat16)  # (Cout, Cin), tiny

    x_spec = pl.BlockSpec((1, Cin, t_hw), lambda n, j: (n, 0, j))
    # Constant block index -> Pallas' revisit optimization keeps W resident.
    w_spec = pl.BlockSpec((Cout, Cin), lambda n, j: (0, 0))

    cparams = pltpu.CompilerParams(
        dimension_semantics=("parallel", "parallel"),
        vmem_limit_bytes=32 * 1024 * 1024)

    # ---- Pass 1: per-tile partial BN statistics (lane-dense, Cout on lanes) ----
    stats = pl.pallas_call(
        relu_conv_stats_kernel,
        out_shape=jax.ShapeDtypeStruct((N, n_hw, 2, Cout), jnp.float32),
        grid_spec=pltpu.PrefetchScalarGridSpec(
            num_scalar_prefetch=0,
            grid=(N, n_hw),
            in_specs=[x_spec, w_spec],
            out_specs=pl.BlockSpec((1, 1, 2, Cout), lambda n, j: (n, j, 0, 0)),
        ),
        compiler_params=cparams,
    )(x3d, w_bf)

    # Tiny (Cout,) scalar math stays in plain JAX, all float32.
    s = jnp.sum(stats[:, :, 0, :], axis=(0, 1))
    ss = jnp.sum(stats[:, :, 1, :], axis=(0, 1))
    mean = s / M
    # TODO(synk): E[y^2]-mean^2 can cancel when |mean| >> std per channel; a
    # Welford-style (sum, centered-M2) partial merge would be more robust.
    var = jnp.maximum(ss / M - mean * mean, 0.0)   # biased variance (training BN)
    scale = gamma / jnp.sqrt(var + eps)
    shift = beta - mean * scale
    scale2d = scale.reshape(Cout, 1).astype(jnp.float32)
    shift2d = shift.reshape(Cout, 1).astype(jnp.float32)

    # ---- Pass 2: fused ReLU + conv recompute + BN apply, channel-major output ----
    out3d = pl.pallas_call(
        relu_conv_bn_kernel,
        out_shape=jax.ShapeDtypeStruct((N, Cout, HW_pad), out_dtype),
        grid_spec=pltpu.PrefetchScalarGridSpec(
            num_scalar_prefetch=0,
            grid=(N, n_hw),
            in_specs=[x_spec, w_spec,
                      pl.BlockSpec((Cout, 1), lambda n, j: (0, 0)),
                      pl.BlockSpec((Cout, 1), lambda n, j: (0, 0))],
            out_specs=pl.BlockSpec((1, Cout, t_hw), lambda n, j: (n, 0, j)),
        ),
        compiler_params=cparams,
    )(x3d, w_bf, scale2d, shift2d)

    if HW_pad != HW:
        out3d = out3d[:, :, :HW]
    return out3d.reshape(N, Cout, H, W)


def reference(x_nchw, w, gamma, beta, eps=1e-5):
    """Pure-JAX f32 reference of the PyTorch forward (training-mode BN)."""
    xr = jnp.maximum(x_nchw, 0.0)
    y = jnp.einsum("nchw,dc->ndhw", xr, w)          # 1x1 conv, w is (Cout, Cin)
    mean = jnp.mean(y, axis=(0, 2, 3), keepdims=True)
    var = jnp.mean((y - mean) ** 2, axis=(0, 2, 3), keepdims=True)
    yhat = (y - mean) / jnp.sqrt(var + eps)
    return yhat * gamma.reshape(1, -1, 1, 1) + beta.reshape(1, -1, 1, 1)


if __name__ == "__main__":
    # Module fixes channels 128 -> 512; keep the module's 28x28 spatial
    # (H*W = 784, exercises the lane-padding path) with a small batch of 2.
    N, Cin, H, W, Cout = 2, 128, 28, 28, 512

    key = jax.random.PRNGKey(0)
    kx, kw, kg, kb = jax.random.split(key, 4)
    x = jax.random.normal(kx, (N, Cin, H, W), dtype=jnp.float32)
    # Conv2d weight (Cout, Cin, 1, 1) stored here directly as (Cout, Cin).
    w = jax.random.normal(kw, (Cout, Cin), dtype=jnp.float32) * 0.05
    gamma = 1.0 + 0.1 * jax.random.normal(kg, (Cout,), dtype=jnp.float32)
    beta = 0.1 * jax.random.normal(kb, (Cout,), dtype=jnp.float32)

    out = fused_relu_conv1x1_bn(x, w, gamma, beta)          # float32 output (module dtype)
    out = jax.block_until_ready(out)

    ref = reference(x, w, gamma, beta)
    assert out.shape == (N, Cout, H, W)
    # Precision contract: x and w are fed to the MXU as bf16 (f32 accumulate),
    # so the conv output / BN stats differ from the pure-f32 reference at ~1e-2.
    assert jnp.allclose(out, ref, rtol=5e-2, atol=5e-2), "mismatch vs reference"

    # TODO(synk): BatchNorm2d running_mean/running_var state update (momentum=0.1)
    # is module state, not part of the returned tensor; not reproduced here.

    print("KERNEL_OK")
</pallas_src>

<mosaic_0001>
module attributes {stable_mosaic.version = 11 : i64} {
  func.func @relu_conv_stats_kernel(%arg0: i32, %arg1: i32, %arg2: memref<1x128x896xf32, #tpu.memory_space<vmem>>, %arg3: memref<512x128xbf16, #tpu.memory_space<vmem>>, %arg4: memref<1x1x2x512xf32, #tpu.memory_space<vmem>>) attributes {dimension_semantics = [#tpu.dimension_semantics<parallel>, #tpu.dimension_semantics<parallel>], iteration_bounds = array<i64: 2, 1>, scalar_prefetch = 0 : i64, scratch_operands = 0 : i64, tpu.core_type = #tpu.core_type<tc>, window_params = [{transform_indices = @transform_0, window_bounds = array<i64: 1, 128, 896>}, {pipeline_mode = #tpu.pipeline_mode<synchronous>, transform_indices = @transform_1, window_bounds = array<i64: 512, 128>}, {transform_indices = @transform_2, window_bounds = array<i64: 1, 1, 2, 512>}]} {
    %c0 = arith.constant 0 : index
    %c0_0 = arith.constant 0 : index
    %c0_1 = arith.constant 0 : index
    %0 = vector.load %arg2[%c0, %c0_0, %c0_1] : memref<1x128x896xf32, #tpu.memory_space<vmem>>, vector<1x128x896xf32>
    %1 = vector.shape_cast %0 : vector<1x128x896xf32> to vector<128x896xf32>
    %cst = arith.constant 0.000000e+00 : f32
    %2 = vector.broadcast %cst : f32 to vector<128x896xf32>
    %3 = arith.maximumf %1, %2 : vector<128x896xf32>
    %4 = arith.truncf %3 : vector<128x896xf32> to vector<128x896xbf16>
    %c0_2 = arith.constant 0 : index
    %c0_3 = arith.constant 0 : index
    %5 = vector.load %arg3[%c0_2, %c0_3] : memref<512x128xbf16, #tpu.memory_space<vmem>>, vector<512x128xbf16>
    %cst_4 = arith.constant dense<0.000000e+00> : vector<896x512xf32>
    %6 = tpu.matmul %4, %5, %cst_4 {dimension_numbers = #tpu.dot_dimension_numbers<[0], [1], [1], [0], [0, 1, 1, 0], [], []>} : vector<128x896xbf16>, vector<512x128xbf16>, vector<896x512xf32> -> vector<896x512xf32>
    %cst_5 = arith.constant dense<0.000000e+00> : vector<512xf32>
    %7 = vector.multi_reduction <add>, %6, %cst_5 [0] : vector<896x512xf32> to vector<512xf32>
    %8 = vector.shape_cast %7 : vector<512xf32> to vector<1x512xf32>
    %9 = arith.mulf %6, %6 : vector<896x512xf32>
    %cst_6 = arith.constant dense<0.000000e+00> : vector<512xf32>
    %10 = vector.multi_reduction <add>, %9, %cst_6 [0] : vector<896x512xf32> to vector<512xf32>
    %11 = vector.shape_cast %10 : vector<512xf32> to vector<1x512xf32>
    %12 = tpu.concatenate %8, %11 in 0 : vector<1x512xf32>, vector<1x512xf32> -> vector<2x512xf32>
    %13 = vector.shape_cast %12 : vector<2x512xf32> to vector<1x1x2x512xf32>
    %c0_7 = arith.constant 0 : index
    %c0_8 = arith.constant 0 : index
    %c0_9 = arith.constant 0 : index
    %c0_10 = arith.constant 0 : index
    %14 = vector.load %arg4[%c0_7, %c0_8, %c0_9, %c0_10] : memref<1x1x2x512xf32, #tpu.memory_space<vmem>>, vector<1x1x2x512xf32>
    tpu.vector_store %arg4[%c0_7, %c0_8, %c0_9, %c0_10], %13 {strides = array<i32>} : memref<1x1x2x512xf32, #tpu.memory_space<vmem>>, vector<1x1x2x512xf32>,
    return
  }
  func.func @transform_0(%arg0: i32, %arg1: i32) -> (i32, i32, i32) {
    %c0_i32 = arith.constant 0 : i32
    %c0_i32_0 = arith.constant 0 : i32
    return %arg0, %c0_i32, %arg1 : i32, i32, i32
  }
  func.func @transform_1(%arg0: i32, %arg1: i32) -> (i32, i32) {
    %c0_i32 = arith.constant 0 : i32
    %c0_i32_0 = arith.constant 0 : i32
    %c0_i32_1 = arith.constant 0 : i32
    return %c0_i32, %c0_i32_0 : i32, i32
  }
  func.func @transform_2(%arg0: i32, %arg1: i32) -> (i32, i32, i32, i32) {
    %c0_i32 = arith.constant 0 : i32
    %c0_i32_0 = arith.constant 0 : i32
    %c0_i32_1 = arith.constant 0 : i32
    return %arg0, %arg1, %c0_i32, %c0_i32_0 : i32, i32, i32, i32
  }
}

</mosaic_0001>

<llo_original>
// kernel: tpu_custom_call.1
$region0: #{tpu_custom_call.1}
  #allocation0 [shape = 'u32[]', space=smem, size = 0x4, offset = 0x4, fixed_abs, tag = 'smem constant byte address 0x4 - core index']
  #allocation1 [shape = 'u32[144,128]{1,0:T(1,128)}', space=vmem, size = 0x12000, scoped, tag = 'internal scratch']
  %s0 = inlined_call_operand.hbm [shape: f32[2,128,896], index: 0, kind: input, shape index: {}]
  %s1 = inlined_call_operand.hbm [shape: bf16[512,128], index: 1, kind: input, shape index: {}]
  %s2 = inlined_call_operand.hbm [shape: f32[2,1,2,512], index: 2, kind: output, shape index: {}]
  %s3 = sld [smem:[#allocation0]]
  $region49: #{tpu_custom_call.1} parent=0
    _
  %s5 = ssub.s32 1, %s3
  %s6 = scalar_select 0, %s5, %s3
  $region1: #{tpu_custom_call.1} parent=0
    #allocation2 [shape = 'u8[917504]{0}', space=vmem, size = 0xe0000, scoped, tag = 'input window, operand 0']
    #allocation3 [shape = 's32[2]{0}', space=sflag, size = 0x8, scoped, tag = 'scoped memory for tpu_custom_call.1']
    #allocation4 [shape = 's32[2]{0}', space=sflag, size = 0x8, scoped, tag = 'scoped memory for tpu_custom_call.1']
    #allocation5 [shape = 'u8[131072]{0}', space=vmem, size = 0x20000, scoped, tag = 'input window, operand 1, single buffered']
    #allocation6 [shape = 's32[1]{0}', space=sflag, size = 0x4, scoped, tag = 'scoped memory for tpu_custom_call.1']
    #allocation7 [shape = 'u8[8192]{0}', space=vmem, size = 0x2000, scoped, tag = 'output window, operand 0']
    %7 = vsyncpa [#allocation3], 0
    %s8 = scalar_lea.sflag [#allocation3], 1
    %9 = vsyncpa %s8, 0
    %10 = vsyncpa [#allocation6], 0
    %11 = vsyncpa [#allocation4], 0
    %s12 = scalar_lea.sflag [#allocation4], 1
    %13 = vsyncpa %s12, 0
    loop: start=0, step=1, limit=4
    $region2: #{tpu_custom_call.1} parent=1 // loop_pre_header
      _
    $region3: #{tpu_custom_call.1} parent=1 // loop_header
      %s15 = sphi 0, %s19
      %p16 = scmp.ge.s32.totalorder %s15, 4
      %s22 = sphi 0, %s34
      %s23 = sphi 0, %s30
      %s24 = sphi 0, %s22
      %s25 = sphi 0, %s23
      %s26 = sphi 0, %s24
      %s27 = sphi 0, %s25
      %s39 = sphi 0, %s41
      %s42 = sphi 0, %s39
      %s43 = sphi 0, %s42
      %s59 = sphi 0, %s43
      %s63 = sphi 0, %s63
      %s65 = sphi 0, %s63
      %s66 = sphi 0, %s65
      %s80 = sphi 0, %s66
      %s88 = sphi 0, %s90
      %s91 = sphi 0, %s88
      %s92 = sphi 0, %s91
      %s108 = sphi 0, %s92
    $region4: #{tpu_custom_call.1} parent=1 // loop_header_branch
      %18 = sbr.rel (%p16) target = $region8
    $region5: #{tpu_custom_call.1} parent=1 // loop_body
      %s20 = ssub.s32 %s15, 1
      %s21 = ssub.s32 %s15, 2
      %s28 = sadd.s32 1, %s23
      %p29 = scmp.ge.s32.totalorder %s28, 1
      %s30 = scalar_select %p29, 0, %s28
      %s31 = sadd.s32 1, %s22
      %s32 = scalar_select %p29, %s31, %s22
      %p33 = scmp.ge.s32.totalorder %s32, 2
      %s34 = scalar_select %p33, 0, %s32
      %s35 = ssub.s32 %s22, %s34
      %s36 = ssub.s32 %s23, %s30
      %s37 = sor.u32 %s35, %s36
      %p38 = scmp.eq.s32.totalorder %s37, 0
      %s40 = sadd.s32 %s39, 1
      %s41 = scalar_select %p38, %s39, %s40
      %p44 = pneg %p38
      %p45 = scmp.eq.s32.totalorder %s15, 1
      %p46 = por %p44, %p45
      %p47 = scmp.ne.s32.totalorder %s39, %s42
      %p48 = scmp.eq.s32.totalorder %s15, 0
      %p49 = por %p47, %p48
      %p50 = scmp.ne.s32.totalorder %s39, %s42
      %p51 = scmp.eq.s32.totalorder %s20, 1
      %p52 = por %p50, %p51
      %p53 = scmp.ne.s32.totalorder %s42, %s43
      %p54 = scmp.eq.s32.totalorder %s20, 0
      %p55 = por %p53, %p54
      %p56 = scmp.ne.s32.totalorder %s42, %s43
      %p57 = scmp.eq.s32.totalorder %s21, 1
      %p58 = por %p56, %p57
      %p60 = scmp.ne.s32.totalorder %s43, %s59
      %p61 = scmp.eq.s32.totalorder %s21, 0
      %p62 = por %p60, %p61
      %s64 = sadd.s32 %s63, 1
      %p67 = scmp.eq.s32.totalorder %s15, 1
      %p68 = scmp.ne.s32.totalorder %s63, %s65
      %p69 = scmp.eq.s32.totalorder %s15, 0
      %p70 = por %p68, %p69
      %p71 = scmp.ne.s32.totalorder %s63, %s65
      %p72 = scmp.eq.s32.totalorder %s20, 1
      %p73 = por %p71, %p72
      %p74 = scmp.ne.s32.totalorder %s65, %s66
      %p75 = scmp.eq.s32.totalorder %s20, 0
      %p76 = por %p74, %p75
      %p77 = scmp.ne.s32.totalorder %s65, %s66
      %p78 = scmp.eq.s32.totalorder %s21, 1
      %p79 = por %p77, %p78
      %p81 = scmp.ne.s32.totalorder %s66, %s80
      %p82 = scmp.eq.s32.totalorder %s21, 0
      %p83 = por %p81, %p82
      %s84 = ssub.s32 %s22, %s34
      %s85 = ssub.s32 %s23, %s30
      %s86 = sor.u32 %s84, %s85
      %p87 = scmp.eq.s32.totalorder %s86, 0
      %s89 = sadd.s32 %s88, 1
      %s90 = scalar_select %p87, %s88, %s89
      %p93 = pneg %p87
      %p94 = scmp.eq.s32.totalorder %s15, 1
      %p95 = por %p93, %p94
      %p96 = scmp.ne.s32.totalorder %s88, %s91
      %p97 = scmp.eq.s32.totalorder %s15, 0
      %p98 = por %p96, %p97
      %p99 = scmp.ne.s32.totalorder %s88, %s91
      %p100 = scmp.eq.s32.totalorder %s20, 1
      %p101 = por %p99, %p100
      %p102 = scmp.ne.s32.totalorder %s91, %s92
      %p103 = scmp.eq.s32.totalorder %s20, 0
      %p104 = por %p102, %p103
      %p105 = scmp.ne.s32.totalorder %s91, %s92
      %p106 = scmp.eq.s32.totalorder %s21, 1
      %p107 = por %p105, %p106
      %p109 = scmp.ne.s32.totalorder %s92, %s108
      %p110 = scmp.eq.s32.totalorder %s21, 0
      %p111 = por %p109, %p110
      %p112 = scmp.le.s32.totalorder 1, %s15
      %p113 = scmp.lt.s32.totalorder %s15, 3
      %p114 = pnand %p112, %p113
      %p115 = pneg %p114
      // Predicated region
      $region9: #{tpu_custom_call.1} parent=5 // pred_check
        _
      $region10: #{tpu_custom_call.1} parent=5 // pred_check_branch
        %117 = sbr.rel (%p114) target = $region12
      $region11: #{tpu_custom_call.1} parent=5 // pred_region
        %s118 = ssub.s32 %s15, 1
        // Predicated region
        $region13: #{tpu_custom_call.1} parent=11 // pred_check
          %p119 = pneg %p76
        $region14: #{tpu_custom_call.1} parent=11 // pred_check_branch
          %121 = sbr.rel (%p119) target = $region16
        $region15: #{tpu_custom_call.1} parent=11 // pred_region
          %s123 = ssub.s32 4096, 4096
          %124 = vsyncadd [#allocation6], %s123
          %s125 = sshll.u32 [#allocation5], 4
          %s126 = int_to_ptr.vmem [resolvable:$true] %s125
          %131 = dma.hbm_to_vmem [thread:$0]  %s1, 4096, %s126, [#allocation6], 64, 64, 4
        $region16: #{tpu_custom_call.1} parent=11 // pred_fallthru
          _
      $region12: #{tpu_custom_call.1} parent=5 // pred_fallthru
        _
      %p132 = scmp.lt.s32.totalorder %s15, 2
      // Predicated region
      $region17: #{tpu_custom_call.1} parent=5 // pred_check
        %p133 = pneg %p132
      $region18: #{tpu_custom_call.1} parent=5 // pred_check_branch
        %135 = sbr.rel (%p133) target = $region20
      $region19: #{tpu_custom_call.1} parent=5 // pred_region
        // Predicated region
        $region21: #{tpu_custom_call.1} parent=19 // pred_check
          %p136 = pneg %p49
        $region22: #{tpu_custom_call.1} parent=19 // pred_check_branch
          %138 = sbr.rel (%p136) target = $region24
        $region23: #{tpu_custom_call.1} parent=19 // pred_region
          %s139 = sand.u32 %s39, 1
          %s140 = scalar_lea.sflag [#allocation3], %s139
          %s141 = sand.u32 %s39, 1
          %s142 = smul.addr %s141, 896
          %s143 = scalar_lea.vmem [#allocation2], %s142
          %s144 = smul.u32 7, %s23
          %s146 = ssub.s32 14336, 14336
          %147 = vsyncadd %s140, %s146
          %s148 = smul.addr %s22, 112
          %s149 = sadd.s32 %s144, %s148
          %s150 = smul.addr %s149, 128
          %s151 = scalar_lea.hbm %s0, %s150
          %s152 = sshll.u32 %s143, 4
          %s153 = int_to_ptr.vmem [resolvable:$true] %s152
          %158 = dma.hbm_to_vmem [thread:$0]  %s151, 14336, %s153, %s140, 896, 896, 56
        $region24: #{tpu_custom_call.1} parent=19 // pred_fallthru
          _
      $region20: #{tpu_custom_call.1} parent=5 // pred_fallthru
        _
      %p159 = scmp.le.s32.totalorder 1, %s15
      %p160 = scmp.lt.s32.totalorder %s15, 3
      %p161 = pnand %p159, %p160
      %p162 = pneg %p161
      // Predicated region
      $region25: #{tpu_custom_call.1} parent=5 // pred_check
        _
      $region26: #{tpu_custom_call.1} parent=5 // pred_check_branch
        %164 = sbr.rel (%p161) target = $region28
      $region27: #{tpu_custom_call.1} parent=5 // pred_region
        %s165 = ssub.s32 %s15, 1
        %s166 = sand.u32 %s42, 1
        %s167 = scalar_lea.sflag [#allocation3], %s166
        %s168 = sand.u32 %s42, 1
        %s169 = smul.addr %s168, 896
        %s170 = scalar_lea.vmem [#allocation2], %s169
        // Predicated region
        $region29: #{tpu_custom_call.1} parent=27 // pred_check
          %p171 = pneg %p55
        $region30: #{tpu_custom_call.1} parent=27 // pred_check_branch
          %173 = sbr.rel (%p171) target = $region32
        $region31: #{tpu_custom_call.1} parent=27 // pred_region
          %174 = dma.done %s167, 14336
        $region32: #{tpu_custom_call.1} parent=27 // pred_fallthru
          _
        // Predicated region
        $region33: #{tpu_custom_call.1} parent=27 // pred_check
          %p175 = pneg %p76
        $region34: #{tpu_custom_call.1} parent=27 // pred_check_branch
          %177 = sbr.rel (%p175) target = $region36
        $region35: #{tpu_custom_call.1} parent=27 // pred_region
          %178 = dma.done [#allocation6], 4096
        $region36: #{tpu_custom_call.1} parent=27 // pred_fallthru
          _
        %s179 = sand.u32 %s42, 1
        %s180 = scalar_lea.sflag [#allocation3], %s179
        %s181 = sand.u32 %s42, 1
        %s182 = smul.addr %s181, 896
        %s183 = scalar_lea.vmem [#allocation2], %s182
        %p184 = pneg %p55
        %p185 = pneg %p52
        %p186 = pneg %p76
        %p187 = pneg %p73
        %p188 = pneg %p104
        %p189 = pneg %p101
        %s190 = sand.u32 %s91, 1
        %s191 = scalar_lea.sflag [#allocation4], %s190
        %s192 = sand.u32 %s91, 1
        %s193 = smul.addr %s192, 8
        %s194 = scalar_lea.vmem [#allocation7], %s193
        %s195 = smul.u32 7, %s25
        %v197 = vld [vmem:[%s170] sm:$0xff]
        %v198 = vld [vmem:[%s170 + $0x8] sm:$0xff]
        %v199 = vld [vmem:[%s170 + $0x10] sm:$0xff]
        %v200 = vld [vmem:[%s170 + $0x18] sm:$0xff]
        %v201 = vld [vmem:[%s170 + $0x20] sm:$0xff]
        %v202 = vld [vmem:[%s170 + $0x28] sm:$0xff]
        %v203 = vld [vmem:[%s170 + $0x30] sm:$0xff]
        %v204 = vld [vmem:[%s170 + $0x38] sm:$0xff]
        %v205 = vld [vmem:[%s170 + $0x40] sm:$0xff]
        %v206 = vld [vmem:[%s170 + $0x48] sm:$0xff]
        %v207 = vld [vmem:[%s170 + $0x50] sm:$0xff]
        %v208 = vld [vmem:[%s170 + $0x58] sm:$0xff]
        %v209 = vld [vmem:[%s170 + $0x60] sm:$0xff]
        %v210 = vld [vmem:[%s170 + $0x68] sm:$0xff]
        %v211 = vld [vmem:[%s170 + $0x70] sm:$0xff]
        %v212 = vld [vmem:[%s170 + $0x78] sm:$0xff]
        %v213 = vld [vmem:[%s170 + $0x80] sm:$0xff]
        %v214 = vld [vmem:[%s170 + $0x88] sm:$0xff]
        %v215 = vld [vmem:[%s170 + $0x90] sm:$0xff]
        %v216 = vld [vmem:[%s170 + $0x98] sm:$0xff]
        %v217 = vld [vmem:[%s170 + $0xa0] sm:$0xff]
        %v218 = vld [vmem:[%s170 + $0xa8] sm:$0xff]
        %v219 = vld [vmem:[%s170 + $0xb0] sm:$0xff]
        %v220 = vld [vmem:[%s170 + $0xb8] sm:$0xff]
        %v221 = vld [vmem:[%s170 + $0xc0] sm:$0xff]
        %v222 = vld [vmem:[%s170 + $0xc8] sm:$0xff]
        %v223 = vld [vmem:[%s170 + $0xd0] sm:$0xff]
        %v224 = vld [vmem:[%s170 + $0xd8] sm:$0xff]
        %v225 = vld [vmem:[%s170 + $0xe0] sm:$0xff]
        %v226 = vld [vmem:[%s170 + $0xe8] sm:$0xff]
        %v227 = vld [vmem:[%s170 + $0xf0] sm:$0xff]
        %v228 = vld [vmem:[%s170 + $0xf8] sm:$0xff]
        %v229 = vld [vmem:[%s170 + $0x100] sm:$0xff]
        %v230 = vld [vmem:[%s170 + $0x108] sm:$0xff]
        %v231 = vld [vmem:[%s170 + $0x110] sm:$0xff]
        %v232 = vld [vmem:[%s170 + $0x118] sm:$0xff]
        %v233 = vld [vmem:[%s170 + $0x120] sm:$0xff]
        %v234 = vld [vmem:[%s170 + $0x128] sm:$0xff]
        %v235 = vld [vmem:[%s170 + $0x130] sm:$0xff]
        %v236 = vld [vmem:[%s170 + $0x138] sm:$0xff]
        %v237 = vld [vmem:[%s170 + $0x140] sm:$0xff]
        %v238 = vld [vmem:[%s170 + $0x148] sm:$0xff]
        %v239 = vld [vmem:[%s170 + $0x150] sm:$0xff]
        %v240 = vld [vmem:[%s170 + $0x158] sm:$0xff]
        %v241 = vld [vmem:[%s170 + $0x160] sm:$0xff]
        %v242 = vld [vmem:[%s170 + $0x168] sm:$0xff]
        %v243 = vld [vmem:[%s170 + $0x170] sm:$0xff]
        %v244 = vld [vmem:[%s170 + $0x178] sm:$0xff]
        %v245 = vld [vmem:[%s170 + $0x180] sm:$0xff]
        %v246 = vld [vmem:[%s170 + $0x188] sm:$0xff]
        %v247 = vld [vmem:[%s170 + $0x190] sm:$0xff]
        %v248 = vld [vmem:[%s170 + $0x198] sm:$0xff]
        %v249 = vld [vmem:[%s170 + $0x1a0] sm:$0xff]
        %v250 = vld [vmem:[%s170 + $0x1a8] sm:$0xff]
        %v251 = vld [vmem:[%s170 + $0x1b0] sm:$0xff]
        %v252 = vld [vmem:[%s170 + $0x1b8] sm:$0xff]
        %v253 = vld [vmem:[%s170 + $0x1c0] sm:$0xff]
        %v254 = vld [vmem:[%s170 + $0x1c8] sm:$0xff]
        %v255 = vld [vmem:[%s170 + $0x1d0] sm:$0xff]
        %v256 = vld [vmem:[%s170 + $0x1d8] sm:$0xff]
        %v257 = vld [vmem:[%s170 + $0x1e0] sm:$0xff]
        %v258 = vld [vmem:[%s170 + $0x1e8] sm:$0xff]
        %v259 = vld [vmem:[%s170 + $0x1f0] sm:$0xff]
        %v260 = vld [vmem:[%s170 + $0x1f8] sm:$0xff]
        %v261 = vld [vmem:[%s170 + $0x200] sm:$0xff]
        %v262 = vld [vmem:[%s170 + $0x208] sm:$0xff]
        %v263 = vld [vmem:[%s170 + $0x210] sm:$0xff]
        %v264 = vld [vmem:[%s170 + $0x218] sm:$0xff]
        %v265 = vld [vmem:[%s170 + $0x220] sm:$0xff]
        %v266 = vld [vmem:[%s170 + $0x228] sm:$0xff]
        %v267 = vld [vmem:[%s170 + $0x230] sm:$0xff]
        %v268 = vld [vmem:[%s170 + $0x238] sm:$0xff]
        %v269 = vld [vmem:[%s170 + $0x240] sm:$0xff]
        %v270 = vld [vmem:[%s170 + $0x248] sm:$0xff]
        %v271 = vld [vmem:[%s170 + $0x250] sm:$0xff]
        %v272 = vld [vmem:[%s170 + $0x258] sm:$0xff]
        %v273 = vld [vmem:[%s170 + $0x260] sm:$0xff]
        %v274 = vld [vmem:[%s170 + $0x268] sm:$0xff]
        %v275 = vld [vmem:[%s170 + $0x270] sm:$0xff]
        %v276 = vld [vmem:[%s170 + $0x278] sm:$0xff]
        %v277 = vld [vmem:[%s170 + $0x280] sm:$0xff]
        %v278 = vld [vmem:[%s170 + $0x288] sm:$0xff]
        %v279 = vld [vmem:[%s170 + $0x290] sm:$0xff]
        %v280 = vld [vmem:[%s170 + $0x298] sm:$0xff]
        %v281 = vld [vmem:[%s170 + $0x2a0] sm:$0xff]
        %v282 = vld [vmem:[%s170 + $0x2a8] sm:$0xff]
        %v283 = vld [vmem:[%s170 + $0x2b0] sm:$0xff]
        %v284 = vld [vmem:[%s170 + $0x2b8] sm:$0xff]
        %v285 = vld [vmem:[%s170 + $0x2c0] sm:$0xff]
        %v286 = vld [vmem:[%s170 + $0x2c8] sm:$0xff]
        %v287 = vld [vmem:[%s170 + $0x2d0] sm:$0xff]
        %v288 = vld [vmem:[%s170 + $0x2d8] sm:$0xff]
        %v289 = vld [vmem:[%s170 + $0x2e0] sm:$0xff]
        %v290 = vld [vmem:[%s170 + $0x2e8] sm:$0xff]
        %v291 = vld [vmem:[%s170 + $0x2f0] sm:$0xff]
        %v292 = vld [vmem:[%s170 + $0x2f8] sm:$0xff]
        %v293 = vld [vmem:[%s170 + $0x300] sm:$0xff]
        %v294 = vld [vmem:[%s170 + $0x308] sm:$0xff]
        %v295 = vld [vmem:[%s170 + $0x310] sm:$0xff]
        %v296 = vld [vmem:[%s170 + $0x318] sm:$0xff]
        %v297 = vld [vmem:[%s170 + $0x320] sm:$0xff]
        %v298 = vld [vmem:[%s170 + $0x328] sm:$0xff]
        %v299 = vld [vmem:[%s170 + $0x330] sm:$0xff]
        %v300 = vld [vmem:[%s170 + $0x338] sm:$0xff]
        %v301 = vld [vmem:[%s170 + $0x340] sm:$0xff]
        %v302 = vld [vmem:[%s170 + $0x348] sm:$0xff]
        %v303 = vld [vmem:[%s170 + $0x350] sm:$0xff]
        %v304 = vld [vmem:[%s170 + $0x358] sm:$0xff]
        %v305 = vld [vmem:[%s170 + $0x360] sm:$0xff]
        %v306 = vld [vmem:[%s170 + $0x368] sm:$0xff]
        %v307 = vld [vmem:[%s170 + $0x370] sm:$0xff]
        %v308 = vld [vmem:[%s170 + $0x378] sm:$0xff]
        %v309 = vmax.f32 %v197, 0.0
        %v310 = vmax.f32 %v198, 0.0
        %v311 = vmax.f32 %v199, 0.0
        %v312 = vmax.f32 %v200, 0.0
        %v313 = vmax.f32 %v201, 0.0
        %v314 = vmax.f32 %v202, 0.0
        %v315 = vmax.f32 %v203, 0.0
        %v316 = vmax.f32 %v204, 0.0
        %v317 = vmax.f32 %v205, 0.0
        %v318 = vmax.f32 %v206, 0.0
        %v319 = vmax.f32 %v207, 0.0
        %v320 = vmax.f32 %v208, 0.0
        %v321 = vmax.f32 %v209, 0.0
        %v322 = vmax.f32 %v210, 0.0
        %v323 = vmax.f32 %v211, 0.0
        %v324 = vmax.f32 %v212, 0.0
        %v325 = vmax.f32 %v213, 0.0
        %v326 = vmax.f32 %v214, 0.0
        %v327 = vmax.f32 %v215, 0.0
        %v328 = vmax.f32 %v216, 0.0
        %v329 = vmax.f32 %v217, 0.0
        %v330 = vmax.f32 %v218, 0.0
        %v331 = vmax.f32 %v219, 0.0
        %v332 = vmax.f32 %v220, 0.0
        %v333 = vmax.f32 %v221, 0.0
        %v334 = vmax.f32 %v222, 0.0
        %v335 = vmax.f32 %v223, 0.0
        %v336 = vmax.f32 %v224, 0.0
        %v337 = vmax.f32 %v225, 0.0
        %v338 = vmax.f32 %v226, 0.0
        %v339 = vmax.f32 %v227, 0.0
        %v340 = vmax.f32 %v228, 0.0
        %v341 = vmax.f32 %v229, 0.0
        %v342 = vmax.f32 %v230, 0.0
        %v343 = vmax.f32 %v231, 0.0
        %v344 = vmax.f32 %v232, 0.0
        %v345 = vmax.f32 %v233, 0.0
        %v346 = vmax.f32 %v234, 0.0
        %v347 = vmax.f32 %v235, 0.0
        %v348 = vmax.f32 %v236, 0.0
        %v349 = vmax.f32 %v237, 0.0
        %v350 = vmax.f32 %v238, 0.0
        %v351 = vmax.f32 %v239, 0.0
        %v352 = vmax.f32 %v240, 0.0
        %v353 = vmax.f32 %v241, 0.0
        %v354 = vmax.f32 %v242, 0.0
        %v355 = vmax.f32 %v243, 0.0
        %v356 = vmax.f32 %v244, 0.0
        %v357 = vmax.f32 %v245, 0.0
        %v358 = vmax.f32 %v246, 0.0
        %v359 = vmax.f32 %v247, 0.0
        %v360 = vmax.f32 %v248, 0.0
        %v361 = vmax.f32 %v249, 0.0
        %v362 = vmax.f32 %v250, 0.0
        %v363 = vmax.f32 %v251, 0.0
        %v364 = vmax.f32 %v252, 0.0
        %v365 = vmax.f32 %v253, 0.0
        %v366 = vmax.f32 %v254, 0.0
        %v367 = vmax.f32 %v255, 0.0
        %v368 = vmax.f32 %v256, 0.0
        %v369 = vmax.f32 %v257, 0.0
        %v370 = vmax.f32 %v258, 0.0
        %v371 = vmax.f32 %v259, 0.0
        %v372 = vmax.f32 %v260, 0.0
        %v373 = vmax.f32 %v261, 0.0
        %v374 = vmax.f32 %v262, 0.0
        %v375 = vmax.f32 %v263, 0.0
        %v376 = vmax.f32 %v264, 0.0
        %v377 = vmax.f32 %v265, 0.0
        %v378 = vmax.f32 %v266, 0.0
        %v379 = vmax.f32 %v267, 0.0
        %v380 = vmax.f32 %v268, 0.0
        %v381 = vmax.f32 %v269, 0.0
        %v382 = vmax.f32 %v270, 0.0
        %v383 = vmax.f32 %v271, 0.0
        %v384 = vmax.f32 %v272, 0.0
        %v385 = vmax.f32 %v273, 0.0
        %v386 = vmax.f32 %v274, 0.0
        %v387 = vmax.f32 %v275, 0.0
        %v388 = vmax.f32 %v276, 0.0
        %v389 = vmax.f32 %v277, 0.0
        %v390 = vmax.f32 %v278, 0.0
        %v391 = vmax.f32 %v279, 0.0
        %v392 = vmax.f32 %v280, 0.0
        %v393 = vmax.f32 %v281, 0.0
        %v394 = vmax.f32 %v282, 0.0
        %v395 = vmax.f32 %v283, 0.0
        %v396 = vmax.f32 %v284, 0.0
        %v397 = vmax.f32 %v285, 0.0
        %v398 = vmax.f32 %v286, 0.0
        %v399 = vmax.f32 %v287, 0.0
        %v400 = vmax.f32 %v288, 0.0
        %v401 = vmax.f32 %v289, 0.0
        %v402 = vmax.f32 %v290, 0.0
        %v403 = vmax.f32 %v291, 0.0
        %v404 = vmax.f32 %v292, 0.0
        %v405 = vmax.f32 %v293, 0.0
        %v406 = vmax.f32 %v294, 0.0
        %v407 = vmax.f32 %v295, 0.0
        %v408 = vmax.f32 %v296, 0.0
        %v409 = vmax.f32 %v297, 0.0
        %v410 = vmax.f32 %v298, 0.0
        %v411 = vmax.f32 %v299, 0.0
        %v412 = vmax.f32 %v300, 0.0
        %v413 = vmax.f32 %v301, 0.0
        %v414 = vmax.f32 %v302, 0.0
        %v415 = vmax.f32 %v303, 0.0
        %v416 = vmax.f32 %v304, 0.0
        %v417 = vmax.f32 %v305, 0.0
        %v418 = vmax.f32 %v306, 0.0
        %v419 = vmax.f32 %v307, 0.0
        %v420 = vmax.f32 %v308, 0.0
        %v421 = vpack.c.bf16 %v316, %v309
        %v422 = vpack.c.bf16 %v317, %v310
        %v423 = vpack.c.bf16 %v318, %v311
        %v424 = vpack.c.bf16 %v319, %v312
        %v425 = vpack.c.bf16 %v320, %v313
        %v426 = vpack.c.bf16 %v321, %v314
        %v427 = vpack.c.bf16 %v322, %v315
        %v428 = vpack.c.bf16 %v330, %v323
        %v429 = vpack.c.bf16 %v331, %v324
        %v430 = vpack.c.bf16 %v332, %v325
        %v431 = vpack.c.bf16 %v333, %v326
        %v432 = vpack.c.bf16 %v334, %v327
        %v433 = vpack.c.bf16 %v335, %v328
        %v434 = vpack.c.bf16 %v336, %v329
        %v435 = vpack.c.bf16 %v344, %v337
        %v436 = vpack.c.bf16 %v345, %v338
        %v437 = vpack.c.bf16 %v346, %v339
        %v438 = vpack.c.bf16 %v347, %v340
        %v439 = vpack.c.bf16 %v348, %v341
        %v440 = vpack.c.bf16 %v349, %v342
        %v441 = vpack.c.bf16 %v350, %v343
        %v442 = vpack.c.bf16 %v358, %v351
        %v443 = vpack.c.bf16 %v359, %v352
        %v444 = vpack.c.bf16 %v360, %v353
        %v445 = vpack.c.bf16 %v361, %v354
        %v446 = vpack.c.bf16 %v362, %v355
        %v447 = vpack.c.bf16 %v363, %v356
        %v448 = vpack.c.bf16 %v364, %v357
        %v449 = vpack.c.bf16 %v372, %v365
        %v450 = vpack.c.bf16 %v373, %v366
        %v451 = vpack.c.bf16 %v374, %v367
        %v452 = vpack.c.bf16 %v375, %v368
        %v453 = vpack.c.bf16 %v376, %v369
        %v454 = vpack.c.bf16 %v377, %v370
        %v455 = vpack.c.bf16 %v378, %v371
        %v456 = vpack.c.bf16 %v386, %v379
        %v457 = vpack.c.bf16 %v387, %v380
        %v458 = vpack.c.bf16 %v388, %v381
        %v459 = vpack.c.bf16 %v389, %v382
        %v460 = vpack.c.bf16 %v390, %v383
        %v461 = vpack.c.bf16 %v391, %v384
        %v462 = vpack.c.bf16 %v392, %v385
        %v463 = vpack.c.bf16 %v400, %v393
        %v464 = vpack.c.bf16 %v401, %v394
        %v465 = vpack.c.bf16 %v402, %v395
        %v466 = vpack.c.bf16 %v403, %v396
        %v467 = vpack.c.bf16 %v404, %v397
        %v468 = vpack.c.bf16 %v405, %v398
        %v469 = vpack.c.bf16 %v406, %v399
        %v470 = vpack.c.bf16 %v414, %v407
        %v471 = vpack.c.bf16 %v415, %v408
        %v472 = vpack.c.bf16 %v416, %v409
        %v473 = vpack.c.bf16 %v417, %v410
        %v474 = vpack.c.bf16 %v418, %v411
        %v475 = vpack.c.bf16 %v419, %v412
        %v476 = vpack.c.bf16 %v420, %v413
        %v477 = vld [vmem:[#allocation5] sm:$0xf]
        %v478 = vld [vmem:[#allocation5 + $0x4] sm:$0xf]
        %v479 = vld [vmem:[#allocation5 + $0x8] sm:$0xf]
        %v480 = vld [vmem:[#allocation5 + $0xc] sm:$0xf]
        %v481 = vld [vmem:[#allocation5 + $0x10] sm:$0xf]
        %v482 = vld [vmem:[#allocation5 + $0x14] sm:$0xf]
        %v483 = vld [vmem:[#allocation5 + $0x18] sm:$0xf]
        %v484 = vld [vmem:[#allocation5 + $0x1c] sm:$0xf]
        %v485 = vld [vmem:[#allocation5 + $0x20] sm:$0xf]
        %v486 = vld [vmem:[#allocation5 + $0x24] sm:$0xf]
        %v487 = vld [vmem:[#allocation5 + $0x28] sm:$0xf]
        %v488 = vld [vmem:[#allocation5 + $0x2c] sm:$0xf]
        %v489 = vld [vmem:[#allocation5 + $0x30] sm:$0xf]
        %v490 = vld [vmem:[#allocation5 + $0x34] sm:$0xf]
        %v491 = vld [vmem:[#allocation5 + $0x38] sm:$0xf]
        %v492 = vld [vmem:[#allocation5 + $0x3c] sm:$0xf]
        %v493 = vld [vmem:[#allocation5 + $0x40] sm:$0xf]
        %v494 = vld [vmem:[#allocation5 + $0x44] sm:$0xf]
        %v495 = vld [vmem:[#allocation5 + $0x48] sm:$0xf]
        %v496 = vld [vmem:[#allocation5 + $0x4c] sm:$0xf]
        %v497 = vld [vmem:[#allocation5 + $0x50] sm:$0xf]
        %v498 = vld [vmem:[#allocation5 + $0x54] sm:$0xf]
        %v499 = vld [vmem:[#allocation5 + $0x58] sm:$0xf]
        %v500 = vld [vmem:[#allocation5 + $0x5c] sm:$0xf]
        %v501 = vld [vmem:[#allocation5 + $0x60] sm:$0xf]
        %v502 = vld [vmem:[#allocation5 + $0x64] sm:$0xf]
        %v503 = vld [vmem:[#allocation5 + $0x68] sm:$0xf]
        %v504 = vld [vmem:[#allocation5 + $0x6c] sm:$0xf]
        %v505 = vld [vmem:[#allocation5 + $0x70] sm:$0xf]
        %v506 = vld [vmem:[#allocation5 + $0x74] sm:$0xf]
        %v507 = vld [vmem:[#allocation5 + $0x78] sm:$0xf]
        %v508 = vld [vmem:[#allocation5 + $0x7c] sm:$0xf]
        %v509 = vld [vmem:[#allocation5 + $0x80] sm:$0xf]
        %v510 = vld [vmem:[#allocation5 + $0x84] sm:$0xf]
        %v511 = vld [vmem:[#allocation5 + $0x88] sm:$0xf]
        %v512 = vld [vmem:[#allocation5 + $0x8c] sm:$0xf]
        %v513 = vld [vmem:[#allocation5 + $0x90] sm:$0xf]
        %v514 = vld [vmem:[#allocation5 + $0x94] sm:$0xf]
        %v515 = vld [vmem:[#allocation5 + $0x98] sm:$0xf]
        %v516 = vld [vmem:[#allocation5 + $0x9c] sm:$0xf]
        %v517 = vld [vmem:[#allocation5 + $0xa0] sm:$0xf]
        %v518 = vld [vmem:[#allocation5 + $0xa4] sm:$0xf]
        %v519 = vld [vmem:[#allocation5 + $0xa8] sm:$0xf]
        %v520 = vld [vmem:[#allocation5 + $0xac] sm:$0xf]
        %v521 = vld [vmem:[#allocation5 + $0xb0] sm:$0xf]
        %v522 = vld [vmem:[#allocation5 + $0xb4] sm:$0xf]
        %v523 = vld [vmem:[#allocation5 + $0xb8] sm:$0xf]
        %v524 = vld [vmem:[#allocation5 + $0xbc] sm:$0xf]
        %v525 = vld [vmem:[#allocation5 + $0xc0] sm:$0xf]
        %v526 = vld [vmem:[#allocation5 + $0xc4] sm:$0xf]
        %v527 = vld [vmem:[#allocation5 + $0xc8] sm:$0xf]
        %v528 = vld [vmem:[#allocation5 + $0xcc] sm:$0xf]
        %v529 = vld [vmem:[#allocation5 + $0xd0] sm:$0xf]
        %v530 = vld [vmem:[#allocation5 + $0xd4] sm:$0xf]
        %v531 = vld [vmem:[#allocation5 + $0xd8] sm:$0xf]
        %v532 = vld [vmem:[#allocation5 + $0xdc] sm:$0xf]
        %v533 = vld [vmem:[#allocation5 + $0xe0] sm:$0xf]
        %v534 = vld [vmem:[#allocation5 + $0xe4] sm:$0xf]
        %v535 = vld [vmem:[#allocation5 + $0xe8] sm:$0xf]
        %v536 = vld [vmem:[#allocation5 + $0xec] sm:$0xf]
        %v537 = vld [vmem:[#allocation5 + $0xf0] sm:$0xf]
        %v538 = vld [vmem:[#allocation5 + $0xf4] sm:$0xf]
        %v539 = vld [vmem:[#allocation5 + $0xf8] sm:$0xf]
        %v540 = vld [vmem:[#allocation5 + $0xfc] sm:$0xf]
        %541 = vxpose.xlu0.c.b16.start [1/8] %v421, 128
        %542 = vxpose.xlu0.c.b16.cont [2/8] %v428, 128
        %543 = vxpose.xlu0.c.b16.cont [3/8] %v435, 128
        %544 = vxpose.xlu0.c.b16.cont [4/8] %v442, 128
        %545 = vxpose.xlu0.c.b16.cont [5/8] %v449, 128
        %546 = vxpose.xlu0.c.b16.cont [6/8] %v456, 128
        %547 = vxpose.xlu0.c.b16.cont [7/8] %v463, 128
        %548 = vxpose.xlu0.c.b16.end [8/8] %v470, 128
        %v549 = vpop.trf.xlu0
        %v550 = vpop.trf.xlu0
        %v551 = vpop.trf.xlu0
        %v552 = vpop.trf.xlu0
        %v553 = vpop.trf.xlu0
        %v554 = vpop.trf.xlu0
        %v555 = vpop.trf.xlu0
        %v556 = vpop.trf.xlu0
        %557 = vxpose.xlu0.c.b16.start [1/8] %v422, 128
        %558 = vxpose.xlu0.c.b16.cont [2/8] %v429, 128
        %559 = vxpose.xlu0.c.b16.cont [3/8] %v436, 128
        %560 = vxpose.xlu0.c.b16.cont [4/8] %v443, 128
        %561 = vxpose.xlu0.c.b16.cont [5/8] %v450, 128
        %562 = vxpose.xlu0.c.b16.cont [6/8] %v457, 128
        %563 = vxpose.xlu0.c.b16.cont [7/8] %v464, 128
        %564 = vxpose.xlu0.c.b16.end [8/8] %v471, 128
        %v565 = vpop.trf.xlu0
        %v566 = vpop.trf.xlu0
        %v567 = vpop.trf.xlu0
        %v568 = vpop.trf.xlu0
        %v569 = vpop.trf.xlu0
        %v570 = vpop.trf.xlu0
        %v571 = vpop.trf.xlu0
        %v572 = vpop.trf.xlu0
        %573 = vxpose.xlu0.c.b16.start [1/8] %v423, 128
        %574 = vxpose.xlu0.c.b16.cont [2/8] %v430, 128
        %575 = vxpose.xlu0.c.b16.cont [3/8] %v437, 128
        %576 = vxpose.xlu0.c.b16.cont [4/8] %v444, 128
        %577 = vxpose.xlu0.c.b16.cont [5/8] %v451, 128
        %578 = vxpose.xlu0.c.b16.cont [6/8] %v458, 128
        %579 = vxpose.xlu0.c.b16.cont [7/8] %v465, 128
        %580 = vxpose.xlu0.c.b16.end [8/8] %v472, 128
        %v581 = vpop.trf.xlu0
        %v582 = vpop.trf.xlu0
        %v583 = vpop.trf.xlu0
        %v584 = vpop.trf.xlu0
        %v585 = vpop.trf.xlu0
        %v586 = vpop.trf.xlu0
        %v587 = vpop.trf.xlu0
        %v588 = vpop.trf.xlu0
        %589 = vxpose.xlu0.c.b16.start [1/8] %v424, 128
        %590 = vxpose.xlu0.c.b16.cont [2/8] %v431, 128
        %591 = vxpose.xlu0.c.b16.cont [3/8] %v438, 128
        %592 = vxpose.xlu0.c.b16.cont [4/8] %v445, 128
        %593 = vxpose.xlu0.c.b16.cont [5/8] %v452, 128
        %594 = vxpose.xlu0.c.b16.cont [6/8] %v459, 128
        %595 = vxpose.xlu0.c.b16.cont [7/8] %v466, 128
        %596 = vxpose.xlu0.c.b16.end [8/8] %v473, 128
        %v597 = vpop.trf.xlu0
        %v598 = vpop.trf.xlu0
        %v599 = vpop.trf.xlu0
        %v600 = vpop.trf.xlu0
        %v601 = vpop.trf.xlu0
        %v602 = vpop.trf.xlu0
        %v603 = vpop.trf.xlu0
        %v604 = vpop.trf.xlu0
        %605 = vxpose.xlu0.c.b16.start [1/8] %v425, 128
        %606 = vxpose.xlu0.c.b16.cont [2/8] %v432, 128
        %607 = vxpose.xlu0.c.b16.cont [3/8] %v439, 128
        %608 = vxpose.xlu0.c.b16.cont [4/8] %v446, 128
        %609 = vxpose.xlu0.c.b16.cont [5/8] %v453, 128
        %610 = vxpose.xlu0.c.b16.cont [6/8] %v460, 128
        %611 = vxpose.xlu0.c.b16.cont [7/8] %v467, 128
        %612 = vxpose.xlu0.c.b16.end [8/8] %v474, 128
        %v613 = vpop.trf.xlu0
        %v614 = vpop.trf.xlu0
        %v615 = vpop.trf.xlu0
        %v616 = vpop.trf.xlu0
        %v617 = vpop.trf.xlu0
        %v618 = vpop.trf.xlu0
        %v619 = vpop.trf.xlu0
        %v620 = vpop.trf.xlu0
        %621 = vxpose.xlu0.c.b16.start [1/8] %v426, 128
        %622 = vxpose.xlu0.c.b16.cont [2/8] %v433, 128
        %623 = vxpose.xlu0.c.b16.cont [3/8] %v440, 128
        %624 = vxpose.xlu0.c.b16.cont [4/8] %v447, 128
        %625 = vxpose.xlu0.c.b16.cont [5/8] %v454, 128
        %626 = vxpose.xlu0.c.b16.cont [6/8] %v461, 128
        %627 = vxpose.xlu0.c.b16.cont [7/8] %v468, 128
        %628 = vxpose.xlu0.c.b16.end [8/8] %v475, 128
        %v629 = vpop.trf.xlu0
        %v630 = vpop.trf.xlu0
        %v631 = vpop.trf.xlu0
        %v632 = vpop.trf.xlu0
        %v633 = vpop.trf.xlu0
        %v634 = vpop.trf.xlu0
        %v635 = vpop.trf.xlu0
        %v636 = vpop.trf.xlu0
        %637 = vxpose.xlu0.c.b16.start [1/8] %v427, 128
        %638 = vxpose.xlu0.c.b16.cont [2/8] %v434, 128
        %639 = vxpose.xlu0.c.b16.cont [3/8] %v441, 128
        %640 = vxpose.xlu0.c.b16.cont [4/8] %v448, 128
        %641 = vxpose.xlu0.c.b16.cont [5/8] %v455, 128
        %642 = vxpose.xlu0.c.b16.cont [6/8] %v462, 128
        %643 = vxpose.xlu0.c.b16.cont [7/8] %v469, 128
        %644 = vxpose.xlu0.c.b16.end [8/8] %v476, 128
        %v645 = vpop.trf.xlu0
        %v646 = vpop.trf.xlu0
        %v647 = vpop.trf.xlu0
        %v648 = vpop.trf.xlu0
        %v649 = vpop.trf.xlu0
        %v650 = vpop.trf.xlu0
        %v651 = vpop.trf.xlu0
        %v652 = vpop.trf.xlu0
        %v717 = vunpack.c.l.b16 %v477
        %v718 = vunpack.c.l.b16 %v478
        %v719 = vunpack.c.l.b16 %v479
        %v720 = vunpack.c.l.b16 %v480
        %v721 = vunpack.c.l.b16 %v481
        %v722 = vunpack.c.l.b16 %v482
        %v723 = vunpack.c.l.b16 %v483
        %v724 = vunpack.c.l.b16 %v484
        %v725 = vunpack.c.l.b16 %v485
        %v726 = vunpack.c.l.b16 %v486
        %v727 = vunpack.c.l.b16 %v487
        %v728 = vunpack.c.l.b16 %v488
        %v729 = vunpack.c.l.b16 %v489
        %v730 = vunpack.c.l.b16 %v490
        %v731 = vunpack.c.l.b16 %v491
        %v732 = vunpack.c.l.b16 %v492
        %v733 = vunpack.c.l.b16 %v493
        %v734 = vunpack.c.l.b16 %v494
        %v735 = vunpack.c.l.b16 %v495
        %v736 = vunpack.c.l.b16 %v496
        %v737 = vunpack.c.l.b16 %v497
        %v738 = vunpack.c.l.b16 %v498
        %v739 = vunpack.c.l.b16 %v499
        %v740 = vunpack.c.l.b16 %v500
        %v741 = vunpack.c.l.b16 %v501
        %v742 = vunpack.c.l.b16 %v502
        %v743 = vunpack.c.l.b16 %v503
        %v744 = vunpack.c.l.b16 %v504
        %v745 = vunpack.c.l.b16 %v505
        %v746 = vunpack.c.l.b16 %v506
        %v747 = vunpack.c.l.b16 %v507
        %v748 = vunpack.c.l.b16 %v508
        %v749 = vunpack.c.l.b16 %v509
        %v750 = vunpack.c.l.b16 %v510
        %v751 = vunpack.c.l.b16 %v511
        %v752 = vunpack.c.l.b16 %v512
        %v753 = vunpack.c.l.b16 %v513
        %v754 = vunpack.c.l.b16 %v514
        %v755 = vunpack.c.l.b16 %v515
        %v756 = vunpack.c.l.b16 %v516
        %v757 = vunpack.c.l.b16 %v517
        %v758 = vunpack.c.l.b16 %v518
        %v759 = vunpack.c.l.b16 %v519
        %v760 = vunpack.c.l.b16 %v520
        %v761 = vunpack.c.l.b16 %v521
        %v762 = vunpack.c.l.b16 %v522
        %v763 = vunpack.c.l.b16 %v523
        %v764 = vunpack.c.l.b16 %v524
        %v765 = vunpack.c.l.b16 %v525
        %v766 = vunpack.c.l.b16 %v526
        %v767 = vunpack.c.l.b16 %v527
        %v768 = vunpack.c.l.b16 %v528
        %v769 = vunpack.c.l.b16 %v529
        %v770 = vunpack.c.l.b16 %v530
        %v771 = vunpack.c.l.b16 %v531
        %v772 = vunpack.c.l.b16 %v532
        %v773 = vunpack.c.l.b16 %v533
        %v774 = vunpack.c.l.b16 %v534
        %v775 = vunpack.c.l.b16 %v535
        %v776 = vunpack.c.l.b16 %v536
        %v777 = vunpack.c.l.b16 %v537
        %v778 = vunpack.c.l.b16 %v538
        %v779 = vunpack.c.l.b16 %v539
        %v780 = vunpack.c.l.b16 %v540
        %v781 = vpack.c.b16 %v718, %v717
        %v782 = vpack.c.b16 %v720, %v719
        %v783 = vpack.c.b16 %v722, %v721
        %v784 = vpack.c.b16 %v724, %v723
        %v785 = vpack.c.b16 %v726, %v725
        %v786 = vpack.c.b16 %v728, %v727
        %v787 = vpack.c.b16 %v730, %v729
        %v788 = vpack.c.b16 %v732, %v731
        %v789 = vpack.c.b16 %v734, %v733
        %v790 = vpack.c.b16 %v736, %v735
        %v791 = vpack.c.b16 %v738, %v737
        %v792 = vpack.c.b16 %v740, %v739
        %v793 = vpack.c.b16 %v742, %v741
        %v794 = vpack.c.b16 %v744, %v743
        %v795 = vpack.c.b16 %v746, %v745
        %v796 = vpack.c.b16 %v748, %v747
        %v797 = vpack.c.b16 %v750, %v749
        %v798 = vpack.c.b16 %v752, %v751
        %v799 = vpack.c.b16 %v754, %v753
        %v800 = vpack.c.b16 %v756, %v755
        %v801 = vpack.c.b16 %v758, %v757
        %v802 = vpack.c.b16 %v760, %v759
        %v803 = vpack.c.b16 %v762, %v761
        %v804 = vpack.c.b16 %v764, %v763
        %v805 = vpack.c.b16 %v766, %v765
        %v806 = vpack.c.b16 %v768, %v767
        %v807 = vpack.c.b16 %v770, %v769
        %v808 = vpack.c.b16 %v772, %v771
        %v809 = vpack.c.b16 %v774, %v773
        %v810 = vpack.c.b16 %v776, %v775
        %v811 = vpack.c.b16 %v778, %v777
        %v812 = vpack.c.b16 %v780, %v779
        %845 = vmatprep.subr.bf16.mxu0 0
        %846 = vmatpush1.bf16.xpose.msra.mxu0 %v781
        %847 = vmatprep.subr.bf16.mxu0 0
        %848 = vmatpush1.bf16.xpose.msra.mxu0 %v782
        %849 = vmatprep.subr.bf16.mxu0 0
        %850 = vmatpush1.bf16.xpose.msra.mxu0 %v783
        %851 = vmatprep.subr.bf16.mxu0 0
        %852 = vmatpush1.bf16.xpose.msra.mxu0 %v784
        %853 = vmatprep.subr.bf16.mxu0 0
        %854 = vmatpush1.bf16.xpose.msra.mxu0 %v785
        %855 = vmatprep.subr.bf16.mxu0 0
        %856 = vmatpush1.bf16.xpose.msra.mxu0 %v786
        %857 = vmatprep.subr.bf16.mxu0 0
        %858 = vmatpush1.bf16.xpose.msra.mxu0 %v787
        %859 = vmatprep.subr.bf16.mxu0 0
        %860 = vmatpush1.bf16.xpose.msra.mxu0 %v788
        %861 = vmatprep.subr.bf16.mxu0 0
        %862 = vmatpush1.bf16.xpose.msra.mxu0 %v789
        %863 = vmatprep.subr.bf16.mxu0 0
        %864 = vmatpush1.bf16.xpose.msra.mxu0 %v790
        %865 = vmatprep.subr.bf16.mxu0 0
        %866 = vmatpush1.bf16.xpose.msra.mxu0 %v791
        %867 = vmatprep.subr.bf16.mxu0 0
        %868 = vmatpush1.bf16.xpose.msra.mxu0 %v792
        %869 = vmatprep.subr.bf16.mxu0 0
        %870 = vmatpush1.bf16.xpose.msra.mxu0 %v793
        %871 = vmatprep.subr.bf16.mxu0 0
        %872 = vmatpush1.bf16.xpose.msra.mxu0 %v794
        %873 = vmatprep.subr.bf16.mxu0 0
        %874 = vmatpush1.bf16.xpose.msra.mxu0 %v795
        %875 = vmatprep.subr.bf16.mxu0 0
        %876 = vmatpush1.bf16.xpose.msra.mxu0 %v796
        %877 = vmatprep.mubr.bf16.mxu0 0
        %878 = vmatmul.mubr.bf16.gmra.mrb[0].mxu0 %v549
        %v879 = vpop.f32.mrb[0].mxu0
        %v880 = vadd.f32 0.0, %v879
        %v881 = vpop.f32.mrb[0].mxu0
        %v882 = vadd.f32 0.0, %v881
        %v883 = vpop.f32.mrb[0].mxu0
        %v884 = vadd.f32 0.0, %v883
        %v885 = vpop.f32.mrb[0].mxu0
        %v886 = vadd.f32 0.0, %v885
        %887 = vmatprep.mubr.bf16.mxu0 0
        %888 = vmatmul.mubr.bf16.gmra.mrb[0].mxu0 %v550
        %v889 = vpop.f32.mrb[0].mxu0
        %v890 = vadd.f32 0.0, %v889
        %v891 = vpop.f32.mrb[0].mxu0
        %v892 = vadd.f32 0.0, %v891
        %v893 = vpop.f32.mrb[0].mxu0
        %v894 = vadd.f32 0.0, %v893
        %v895 = vpop.f32.mrb[0].mxu0
        %v896 = vadd.f32 0.0, %v895
        %897 = vmatprep.mubr.bf16.mxu0 0
        %898 = vmatmul.mubr.bf16.gmra.mrb[0].mxu0 %v551
        %v899 = vpop.f32.mrb[0].mxu0
        %v900 = vadd.f32 0.0, %v899
        %v901 = vpop.f32.mrb[0].mxu0
        %v902 = vadd.f32 0.0, %v901
        %v903 = vpop.f32.mrb[0].mxu0
        %v904 = vadd.f32 0.0, %v903
        %v905 = vpop.f32.mrb[0].mxu0
        %v906 = vadd.f32 0.0, %v905
        %907 = vmatprep.mubr.bf16.mxu0 0
        %908 = vmatmul.mubr.bf16.gmra.mrb[0].mxu0 %v552
        %v909 = vpop.f32.mrb[0].mxu0
        %v910 = vadd.f32 0.0, %v909
        %v911 = vpop.f32.mrb[0].mxu0
        %v912 = vadd.f32 0.0, %v911
        %v913 = vpop.f32.mrb[0].mxu0
        %v914 = vadd.f32 0.0, %v913
        %v915 = vpop.f32.mrb[0].mxu0
        %v916 = vadd.f32 0.0, %v915
        %917 = vmatprep.mubr.bf16.mxu0 0
        %918 = vmatmul.mubr.bf16.gmra.mrb[0].mxu0 %v553
        %v919 = vpop.f32.mrb[0].mxu0
        %v920 = vadd.f32 0.0, %v919
        %v921 = vpop.f32.mrb[0].mxu0
        %v922 = vadd.f32 0.0, %v921
        %v923 = vpop.f32.mrb[0].mxu0
        %v924 = vadd.f32 0.0, %v923
        %v925 = vpop.f32.mrb[0].mxu0
        %v926 = vadd.f32 0.0, %v925
        %927 = vmatprep.mubr.bf16.mxu0 0
        %928 = vmatmul.mubr.bf16.gmra.mrb[0].mxu0 %v554
        %v929 = vpop.f32.mrb[0].mxu0
        %v930 = vadd.f32 0.0, %v929
        %v931 = vpop.f32.mrb[0].mxu0
        %v932 = vadd.f32 0.0, %v931
        %v933 = vpop.f32.mrb[0].mxu0
        %v934 = vadd.f32 0.0, %v933
        %v935 = vpop.f32.mrb[0].mxu0
        %v936 = vadd.f32 0.0, %v935
        %937 = vmatprep.mubr.bf16.mxu0 0
        %938 = vmatmul.mubr.bf16.gmra.mrb[0].mxu0 %v555
        %v939 = vpop.f32.mrb[0].mxu0
        %v940 = vadd.f32 0.0, %v939
        %v941 = vpop.f32.mrb[0].mxu0
        %v942 = vadd.f32 0.0, %v941
        %v943 = vpop.f32.mrb[0].mxu0
        %v944 = vadd.f32 0.0, %v943
        %v945 = vpop.f32.mrb[0].mxu0
        %v946 = vadd.f32 0.0, %v945
        %947 = vmatprep.mubr.bf16.mxu0 0
        %948 = vmatmul.mubr.bf16.gmra.mrb[0].mxu0 %v556
        %v949 = vpop.f32.mrb[0].mxu0
        %v950 = vadd.f32 0.0, %v949
        %v951 = vpop.f32.mrb[0].mxu0
        %v952 = vadd.f32 0.0, %v951
        %v953 = vpop.f32.mrb[0].mxu0
        %v954 = vadd.f32 0.0, %v953
        %v955 = vpop.f32.mrb[0].mxu0
        %v956 = vadd.f32 0.0, %v955
        %957 = vmatprep.mubr.bf16.mxu0 0
        %958 = vmatmul.mubr.bf16.gmra.mrb[0].mxu0 %v565
        %v959 = vpop.f32.mrb[0].mxu0
        %v960 = vadd.f32 0.0, %v959
        %v961 = vpop.f32.mrb[0].mxu0
        %v962 = vadd.f32 0.0, %v961
        %v963 = vpop.f32.mrb[0].mxu0
        %v964 = vadd.f32 0.0, %v963
        %v965 = vpop.f32.mrb[0].mxu0
        %v966 = vadd.f32 0.0, %v965
        %967 = vmatprep.mubr.bf16.mxu0 0
        %968 = vmatmul.mubr.bf16.gmra.mrb[0].mxu0 %v566
        %v969 = vpop.f32.mrb[0].mxu0
        %v970 = vadd.f32 0.0, %v969
        %v971 = vpop.f32.mrb[0].mxu0
        %v972 = vadd.f32 0.0, %v971
        %v973 = vpop.f32.mrb[0].mxu0
        %v974 = vadd.f32 0.0, %v973
        %v975 = vpop.f32.mrb[0].mxu0
        %v976 = vadd.f32 0.0, %v975
        %977 = vmatprep.mubr.bf16.mxu0 0
        %978 = vmatmul.mubr.bf16.gmra.mrb[0].mxu0 %v567
        %v979 = vpop.f32.mrb[0].mxu0
        %v980 = vadd.f32 0.0, %v979
        %v981 = vpop.f32.mrb[0].mxu0
        %v982 = vadd.f32 0.0, %v981
        %v983 = vpop.f32.mrb[0].mxu0
        %v984 = vadd.f32 0.0, %v983
        %v985 = vpop.f32.mrb[0].mxu0
        %v986 = vadd.f32 0.0, %v985
        %987 = vmatprep.mubr.bf16.mxu0 0
        %988 = vmatmul.mubr.bf16.gmra.mrb[0].mxu0 %v568
        %v989 = vpop.f32.mrb[0].mxu0
        %v990 = vadd.f32 0.0, %v989
        %v991 = vpop.f32.mrb[0].mxu0
        %v992 = vadd.f32 0.0, %v991
        %v993 = vpop.f32.mrb[0].mxu0
        %v994 = vadd.f32 0.0, %v993
        %v995 = vpop.f32.mrb[0].mxu0
        %v996 = vadd.f32 0.0, %v995
        %997 = vmatprep.mubr.bf16.mxu0 0
        %998 = vmatmul.mubr.bf16.gmra.mrb[0].mxu0 %v569
        %v999 = vpop.f32.mrb[0].mxu0
        %v1000 = vadd.f32 0.0, %v999
        %v1001 = vpop.f32.mrb[0].mxu0
        %v1002 = vadd.f32 0.0, %v1001
        %v1003 = vpop.f32.mrb[0].mxu0
        %v1004 = vadd.f32 0.0, %v1003
        %v1005 = vpop.f32.mrb[0].mxu0
        %v1006 = vadd.f32 0.0, %v1005
        %1007 = vmatprep.mubr.bf16.mxu0 0
        %1008 = vmatmul.mubr.bf16.gmra.mrb[0].mxu0 %v570
        %v1009 = vpop.f32.mrb[0].mxu0
        %v1010 = vadd.f32 0.0, %v1009
        %v1011 = vpop.f32.mrb[0].mxu0
        %v1012 = vadd.f32 0.0, %v1011
        %v1013 = vpop.f32.mrb[0].mxu0
        %v1014 = vadd.f32 0.0, %v1013
        %v1015 = vpop.f32.mrb[0].mxu0
        %v1016 = vadd.f32 0.0, %v1015
        %1017 = vmatprep.mubr.bf16.mxu0 0
        %1018 = vmatmul.mubr.bf16.gmra.mrb[0].mxu0 %v571
        %v1019 = vpop.f32.mrb[0].mxu0
        %v1020 = vadd.f32 0.0, %v1019
        %v1021 = vpop.f32.mrb[0].mxu0
        %v1022 = vadd.f32 0.0, %v1021
        %v1023 = vpop.f32.mrb[0].mxu0
        %v1024 = vadd.f32 0.0, %v1023
        %v1025 = vpop.f32.mrb[0].mxu0
        %v1026 = vadd.f32 0.0, %v1025
        %1027 = vmatprep.mubr.bf16.mxu0 0
        %1028 = vmatmul.mubr.bf16.gmra.mrb[0].mxu0 %v572
        %v1029 = vpop.f32.mrb[0].mxu0
        %v1030 = vadd.f32 0.0, %v1029
        %v1031 = vpop.f32.mrb[0].mxu0
        %v1032 = vadd.f32 0.0, %v1031
        %v1033 = vpop.f32.mrb[0].mxu0
        %v1034 = vadd.f32 0.0, %v1033
        %v1035 = vpop.f32.mrb[0].mxu0
        %v1036 = vadd.f32 0.0, %v1035
        %1037 = vmatprep.mubr.bf16.mxu0 0
        %1038 = vmatmul.mubr.bf16.gmra.mrb[0].mxu0 %v581
        %v1039 = vpop.f32.mrb[0].mxu0
        %v1040 = vadd.f32 0.0, %v1039
        %v1041 = vpop.f32.mrb[0].mxu0
        %v1042 = vadd.f32 0.0, %v1041
        %v1043 = vpop.f32.mrb[0].mxu0
        %v1044 = vadd.f32 0.0, %v1043
        %v1045 = vpop.f32.mrb[0].mxu0
        %v1046 = vadd.f32 0.0, %v1045
        %1047 = vmatprep.mubr.bf16.mxu0 0
        %1048 = vmatmul.mubr.bf16.gmra.mrb[0].mxu0 %v582
        %v1049 = vpop.f32.mrb[0].mxu0
        %v1050 = vadd.f32 0.0, %v1049
        %v1051 = vpop.f32.mrb[0].mxu0
        %v1052 = vadd.f32 0.0, %v1051
        %v1053 = vpop.f32.mrb[0].mxu0
        %v1054 = vadd.f32 0.0, %v1053
        %v1055 = vpop.f32.mrb[0].mxu0
        %v1056 = vadd.f32 0.0, %v1055
        %1057 = vmatprep.mubr.bf16.mxu0 0
        %1058 = vmatmul.mubr.bf16.gmra.mrb[0].mxu0 %v583
        %v1059 = vpop.f32.mrb[0].mxu0
        %v1060 = vadd.f32 0.0, %v1059
        %v1061 = vpop.f32.mrb[0].mxu0
        %v1062 = vadd.f32 0.0, %v1061
        %v1063 = vpop.f32.mrb[0].mxu0
        %v1064 = vadd.f32 0.0, %v1063
        %v1065 = vpop.f32.mrb[0].mxu0
        %v1066 = vadd.f32 0.0, %v1065
        %1067 = vmatprep.mubr.bf16.mxu0 0
        %1068 = vmatmul.mubr.bf16.gmra.mrb[0].mxu0 %v584
        %v1069 = vpop.f32.mrb[0].mxu0
        %v1070 = vadd.f32 0.0, %v1069
        %v1071 = vpop.f32.mrb[0].mxu0
        %v1072 = vadd.f32 0.0, %v1071
        %v1073 = vpop.f32.mrb[0].mxu0
        %v1074 = vadd.f32 0.0, %v1073
        %v1075 = vpop.f32.mrb[0].mxu0
        %v1076 = vadd.f32 0.0, %v1075
        %1077 = vmatprep.mubr.bf16.mxu0 0
        %1078 = vmatmul.mubr.bf16.gmra.mrb[0].mxu0 %v585
        %v1079 = vpop.f32.mrb[0].mxu0
        %v1080 = vadd.f32 0.0, %v1079
        %v1081 = vpop.f32.mrb[0].mxu0
        %v1082 = vadd.f32 0.0, %v1081
        %v1083 = vpop.f32.mrb[0].mxu0
        %v1084 = vadd.f32 0.0, %v1083
        %v1085 = vpop.f32.mrb[0].mxu0
        %v1086 = vadd.f32 0.0, %v1085
        %1087 = vmatprep.mubr.bf16.mxu0 0
        %1088 = vmatmul.mubr.bf16.gmra.mrb[0].mxu0 %v586
        %v1089 = vpop.f32.mrb[0].mxu0
        %v1090 = vadd.f32 0.0, %v1089
        %v1091 = vpop.f32.mrb[0].mxu0
        %v1092 = vadd.f32 0.0, %v1091
        %v1093 = vpop.f32.mrb[0].mxu0
        %v1094 = vadd.f32 0.0, %v1093
        %v1095 = vpop.f32.mrb[0].mxu0
        %v1096 = vadd.f32 0.0, %v1095
        %1097 = vmatprep.mubr.bf16.mxu0 0
        %1098 = vmatmul.mubr.bf16.gmra.mrb[0].mxu0 %v587
        %v1099 = vpop.f32.mrb[0].mxu0
        %v1100 = vadd.f32 0.0, %v1099
        %v1101 = vpop.f32.mrb[0].mxu0
        %v1102 = vadd.f32 0.0, %v1101
        %v1103 = vpop.f32.mrb[0].mxu0
        %v1104 = vadd.f32 0.0, %v1103
        %v1105 = vpop.f32.mrb[0].mxu0
        %v1106 = vadd.f32 0.0, %v1105
        %1107 = vmatprep.mubr.bf16.mxu0 0
        %1108 = vmatmul.mubr.bf16.gmra.mrb[0].mxu0 %v588
        %v1109 = vpop.f32.mrb[0].mxu0
        %v1110 = vadd.f32 0.0, %v1109
        %v1111 = vpop.f32.mrb[0].mxu0
        %v1112 = vadd.f32 0.0, %v1111
        %v1113 = vpop.f32.mrb[0].mxu0
        %v1114 = vadd.f32 0.0, %v1113
        %v1115 = vpop.f32.mrb[0].mxu0
        %v1116 = vadd.f32 0.0, %v1115
        %1117 = vmatprep.mubr.bf16.mxu0 0
        %1118 = vmatmul.mubr.bf16.gmra.mrb[0].mxu0 %v597
        %v1119 = vpop.f32.mrb[0].mxu0
        %v1120 = vadd.f32 0.0, %v1119
        %v1121 = vpop.f32.mrb[0].mxu0
        %v1122 = vadd.f32 0.0, %v1121
        %v1123 = vpop.f32.mrb[0].mxu0
        %v1124 = vadd.f32 0.0, %v1123
        %v1125 = vpop.f32.mrb[0].mxu0
        %v1126 = vadd.f32 0.0, %v1125
        %1127 = vmatprep.mubr.bf16.mxu0 0
        %1128 = vmatmul.mubr.bf16.gmra.mrb[0].mxu0 %v598
        %v1129 = vpop.f32.mrb[0].mxu0
        %v1130 = vadd.f32 0.0, %v1129
        %v1131 = vpop.f32.mrb[0].mxu0
        %v1132 = vadd.f32 0.0, %v1131
        %v1133 = vpop.f32.mrb[0].mxu0
        %v1134 = vadd.f32 0.0, %v1133
        %v1135 = vpop.f32.mrb[0].mxu0
        %v1136 = vadd.f32 0.0, %v1135
        %1137 = vmatprep.mubr.bf16.mxu0 0
        %1138 = vmatmul.mubr.bf16.gmra.mrb[0].mxu0 %v599
        %v1139 = vpop.f32.mrb[0].mxu0
        %v1140 = vadd.f32 0.0, %v1139
        %v1141 = vpop.f32.mrb[0].mxu0
        %v1142 = vadd.f32 0.0, %v1141
        %v1143 = vpop.f32.mrb[0].mxu0
        %v1144 = vadd.f32 0.0, %v1143
        %v1145 = vpop.f32.mrb[0].mxu0
        %v1146 = vadd.f32 0.0, %v1145
        %1147 = vmatprep.mubr.bf16.mxu0 0
        %1148 = vmatmul.mubr.bf16.gmra.mrb[0].mxu0 %v600
        %v1149 = vpop.f32.mrb[0].mxu0
        %v1150 = vadd.f32 0.0, %v1149
        %v1151 = vpop.f32.mrb[0].mxu0
        %v1152 = vadd.f32 0.0, %v1151
        %v1153 = vpop.f32.mrb[0].mxu0
        %v1154 = vadd.f32 0.0, %v1153
        %v1155 = vpop.f32.mrb[0].mxu0
        %v1156 = vadd.f32 0.0, %v1155
        %1157 = vmatprep.mubr.bf16.mxu0 0
        %1158 = vmatmul.mubr.bf16.gmra.mrb[0].mxu0 %v601
        %v1159 = vpop.f32.mrb[0].mxu0
        %v1160 = vadd.f32 0.0, %v1159
        %v1161 = vpop.f32.mrb[0].mxu0
        %v1162 = vadd.f32 0.0, %v1161
        %v1163 = vpop.f32.mrb[0].mxu0
        %v1164 = vadd.f32 0.0, %v1163
        %v1165 = vpop.f32.mrb[0].mxu0
        %v1166 = vadd.f32 0.0, %v1165
        %1167 = vmatprep.mubr.bf16.mxu0 0
        %1168 = vmatmul.mubr.bf16.gmra.mrb[0].mxu0 %v602
        %v1169 = vpop.f32.mrb[0].mxu0
        %v1170 = vadd.f32 0.0, %v1169
        %v1171 = vpop.f32.mrb[0].mxu0
        %v1172 = vadd.f32 0.0, %v1171
        %v1173 = vpop.f32.mrb[0].mxu0
        %v1174 = vadd.f32 0.0, %v1173
        %v1175 = vpop.f32.mrb[0].mxu0
        %v1176 = vadd.f32 0.0, %v1175
        %1177 = vmatprep.mubr.bf16.mxu0 0
        %1178 = vmatmul.mubr.bf16.gmra.mrb[0].mxu0 %v603
        %v1179 = vpop.f32.mrb[0].mxu0
        %v1180 = vadd.f32 0.0, %v1179
        %v1181 = vpop.f32.mrb[0].mxu0
        %v1182 = vadd.f32 0.0, %v1181
        %v1183 = vpop.f32.mrb[0].mxu0
        %v1184 = vadd.f32 0.0, %v1183
        %v1185 = vpop.f32.mrb[0].mxu0
        %v1186 = vadd.f32 0.0, %v1185
        %1187 = vmatprep.mubr.bf16.mxu0 0
        %1188 = vmatmul.mubr.bf16.gmra.mrb[0].mxu0 %v604
        %v1189 = vpop.f32.mrb[0].mxu0
        %v1190 = vadd.f32 0.0, %v1189
        %v1191 = vpop.f32.mrb[0].mxu0
        %v1192 = vadd.f32 0.0, %v1191
        %v1193 = vpop.f32.mrb[0].mxu0
        %v1194 = vadd.f32 0.0, %v1193
        %v1195 = vpop.f32.mrb[0].mxu0
        %v1196 = vadd.f32 0.0, %v1195
        %1197 = vmatprep.mubr.bf16.mxu0 0
        %1198 = vmatmul.mubr.bf16.gmra.mrb[0].mxu0 %v613
        %v1199 = vpop.f32.mrb[0].mxu0
        %v1200 = vadd.f32 0.0, %v1199
        %v1201 = vpop.f32.mrb[0].mxu0
        %v1202 = vadd.f32 0.0, %v1201
        %v1203 = vpop.f32.mrb[0].mxu0
        %v1204 = vadd.f32 0.0, %v1203
        %v1205 = vpop.f32.mrb[0].mxu0
        %v1206 = vadd.f32 0.0, %v1205
        %1207 = vmatprep.mubr.bf16.mxu0 0
        %1208 = vmatmul.mubr.bf16.gmra.mrb[0].mxu0 %v614
        %v1209 = vpop.f32.mrb[0].mxu0
        %v1210 = vadd.f32 0.0, %v1209
        %v1211 = vpop.f32.mrb[0].mxu0
        %v1212 = vadd.f32 0.0, %v1211
        %v1213 = vpop.f32.mrb[0].mxu0
        %v1214 = vadd.f32 0.0, %v1213
        %v1215 = vpop.f32.mrb[0].mxu0
        %v1216 = vadd.f32 0.0, %v1215
        %1217 = vmatprep.mubr.bf16.mxu0 0
        %1218 = vmatmul.mubr.bf16.gmra.mrb[0].mxu0 %v615
        %v1219 = vpop.f32.mrb[0].mxu0
        %v1220 = vadd.f32 0.0, %v1219
        %v1221 = vpop.f32.mrb[0].mxu0
        %v1222 = vadd.f32 0.0, %v1221
        %v1223 = vpop.f32.mrb[0].mxu0
        %v1224 = vadd.f32 0.0, %v1223
        %v1225 = vpop.f32.mrb[0].mxu0
        %v1226 = vadd.f32 0.0, %v1225
        %1227 = vmatprep.mubr.bf16.mxu0 0
        %1228 = vmatmul.mubr.bf16.gmra.mrb[0].mxu0 %v616
        %v1229 = vpop.f32.mrb[0].mxu0
        %v1230 = vadd.f32 0.0, %v1229
        %v1231 = vpop.f32.mrb[0].mxu0
        %v1232 = vadd.f32 0.0, %v1231
        %v1233 = vpop.f32.mrb[0].mxu0
        %v1234 = vadd.f32 0.0, %v1233
        %v1235 = vpop.f32.mrb[0].mxu0
        %v1236 = vadd.f32 0.0, %v1235
        %1237 = vmatprep.mubr.bf16.mxu0 0
        %1238 = vmatmul.mubr.bf16.gmra.mrb[0].mxu0 %v617
        %v1239 = vpop.f32.mrb[0].mxu0
        %v1240 = vadd.f32 0.0, %v1239
        %v1241 = vpop.f32.mrb[0].mxu0
        %v1242 = vadd.f32 0.0, %v1241
        %v1243 = vpop.f32.mrb[0].mxu0
        %v1244 = vadd.f32 0.0, %v1243
        %v1245 = vpop.f32.mrb[0].mxu0
        %v1246 = vadd.f32 0.0, %v1245
        %1247 = vmatprep.mubr.bf16.mxu0 0
        %1248 = vmatmul.mubr.bf16.gmra.mrb[0].mxu0 %v618
        %v1249 = vpop.f32.mrb[0].mxu0
        %v1250 = vadd.f32 0.0, %v1249
        %v1251 = vpop.f32.mrb[0].mxu0
        %v1252 = vadd.f32 0.0, %v1251
        %v1253 = vpop.f32.mrb[0].mxu0
        %v1254 = vadd.f32 0.0, %v1253
        %v1255 = vpop.f32.mrb[0].mxu0
        %v1256 = vadd.f32 0.0, %v1255
        %1257 = vmatprep.mubr.bf16.mxu0 0
        %1258 = vmatmul.mubr.bf16.gmra.mrb[0].mxu0 %v619
        %v1259 = vpop.f32.mrb[0].mxu0
        %v1260 = vadd.f32 0.0, %v1259
        %v1261 = vpop.f32.mrb[0].mxu0
        %v1262 = vadd.f32 0.0, %v1261
        %v1263 = vpop.f32.mrb[0].mxu0
        %v1264 = vadd.f32 0.0, %v1263
        %v1265 = vpop.f32.mrb[0].mxu0
        %v1266 = vadd.f32 0.0, %v1265
        %1267 = vmatprep.mubr.bf16.mxu0 0
        %1268 = vmatmul.mubr.bf16.gmra.mrb[0].mxu0 %v620
        %v1269 = vpop.f32.mrb[0].mxu0
        %v1270 = vadd.f32 0.0, %v1269
        %v1271 = vpop.f32.mrb[0].mxu0
        %v1272 = vadd.f32 0.0, %v1271
        %v1273 = vpop.f32.mrb[0].mxu0
        %v1274 = vadd.f32 0.0, %v1273
        %v1275 = vpop.f32.mrb[0].mxu0
        %v1276 = vadd.f32 0.0, %v1275
        %1277 = vmatprep.mubr.bf16.mxu0 0
        %1278 = vmatmul.mubr.bf16.gmra.mrb[0].mxu0 %v629
        %v1279 = vpop.f32.mrb[0].mxu0
        %v1280 = vadd.f32 0.0, %v1279
        %v1281 = vpop.f32.mrb[0].mxu0
        %v1282 = vadd.f32 0.0, %v1281
        %v1283 = vpop.f32.mrb[0].mxu0
        %v1284 = vadd.f32 0.0, %v1283
        %v1285 = vpop.f32.mrb[0].mxu0
        %v1286 = vadd.f32 0.0, %v1285
        %1287 = vmatprep.mubr.bf16.mxu0 0
        %1288 = vmatmul.mubr.bf16.gmra.mrb[0].mxu0 %v630
        %v1289 = vpop.f32.mrb[0].mxu0
        %v1290 = vadd.f32 0.0, %v1289
        %v1291 = vpop.f32.mrb[0].mxu0
        %v1292 = vadd.f32 0.0, %v1291
        %v1293 = vpop.f32.mrb[0].mxu0
        %v1294 = vadd.f32 0.0, %v1293
        %v1295 = vpop.f32.mrb[0].mxu0
        %v1296 = vadd.f32 0.0, %v1295
        %1297 = vmatprep.mubr.bf16.mxu0 0
        %1298 = vmatmul.mubr.bf16.gmra.mrb[0].mxu0 %v631
        %v1299 = vpop.f32.mrb[0].mxu0
        %v1300 = vadd.f32 0.0, %v1299
        %v1301 = vpop.f32.mrb[0].mxu0
        %v1302 = vadd.f32 0.0, %v1301
        %v1303 = vpop.f32.mrb[0].mxu0
        %v1304 = vadd.f32 0.0, %v1303
        %v1305 = vpop.f32.mrb[0].mxu0
        %v1306 = vadd.f32 0.0, %v1305
        %1307 = vmatprep.mubr.bf16.mxu0 0
        %1308 = vmatmul.mubr.bf16.gmra.mrb[0].mxu0 %v632
        %v1309 = vpop.f32.mrb[0].mxu0
        %v1310 = vadd.f32 0.0, %v1309
        %v1311 = vpop.f32.mrb[0].mxu0
        %v1312 = vadd.f32 0.0, %v1311
        %v1313 = vpop.f32.mrb[0].mxu0
        %v1314 = vadd.f32 0.0, %v1313
        %v1315 = vpop.f32.mrb[0].mxu0
        %v1316 = vadd.f32 0.0, %v1315
        %1317 = vmatprep.mubr.bf16.mxu0 0
        %1318 = vmatmul.mubr.bf16.gmra.mrb[0].mxu0 %v633
        %v1319 = vpop.f32.mrb[0].mxu0
        %v1320 = vadd.f32 0.0, %v1319
        %v1321 = vpop.f32.mrb[0].mxu0
        %v1322 = vadd.f32 0.0, %v1321
        %v1323 = vpop.f32.mrb[0].mxu0
        %v1324 = vadd.f32 0.0, %v1323
        %v1325 = vpop.f32.mrb[0].mxu0
        %v1326 = vadd.f32 0.0, %v1325
        %1327 = vmatprep.mubr.bf16.mxu0 0
        %1328 = vmatmul.mubr.bf16.gmra.mrb[0].mxu0 %v634
        %v1329 = vpop.f32.mrb[0].mxu0
        %v1330 = vadd.f32 0.0, %v1329
        %v1331 = vpop.f32.mrb[0].mxu0
        %v1332 = vadd.f32 0.0, %v1331
        %v1333 = vpop.f32.mrb[0].mxu0
        %v1334 = vadd.f32 0.0, %v1333
        %v1335 = vpop.f32.mrb[0].mxu0
        %v1336 = vadd.f32 0.0, %v1335
        %1337 = vmatprep.mubr.bf16.mxu0 0
        %1338 = vmatmul.mubr.bf16.gmra.mrb[0].mxu0 %v635
        %v1339 = vpop.f32.mrb[0].mxu0
        %v1340 = vadd.f32 0.0, %v1339
        %v1341 = vpop.f32.mrb[0].mxu0
        %v1342 = vadd.f32 0.0, %v1341
        %v1343 = vpop.f32.mrb[0].mxu0
        %v1344 = vadd.f32 0.0, %v1343
        %v1345 = vpop.f32.mrb[0].mxu0
        %v1346 = vadd.f32 0.0, %v1345
        %1347 = vmatprep.mubr.bf16.mxu0 0
        %1348 = vmatmul.mubr.bf16.gmra.mrb[0].mxu0 %v636
        %v1349 = vpop.f32.mrb[0].mxu0
        %v1350 = vadd.f32 0.0, %v1349
        %v1351 = vpop.f32.mrb[0].mxu0
        %v1352 = vadd.f32 0.0, %v1351
        %v1353 = vpop.f32.mrb[0].mxu0
        %v1354 = vadd.f32 0.0, %v1353
        %v1355 = vpop.f32.mrb[0].mxu0
        %v1356 = vadd.f32 0.0, %v1355
        %1357 = vmatprep.mubr.bf16.mxu0 0
        %1358 = vmatmul.mubr.bf16.gmra.mrb[0].mxu0 %v645
        %v1359 = vpop.f32.mrb[0].mxu0
        %v1360 = vadd.f32 0.0, %v1359
        %v1361 = vpop.f32.mrb[0].mxu0
        %v1362 = vadd.f32 0.0, %v1361
        %v1363 = vpop.f32.mrb[0].mxu0
        %v1364 = vadd.f32 0.0, %v1363
        %v1365 = vpop.f32.mrb[0].mxu0
        %v1366 = vadd.f32 0.0, %v1365
        %1367 = vmatprep.mubr.bf16.mxu0 0
        %1368 = vmatmul.mubr.bf16.gmra.mrb[0].mxu0 %v646
        %v1369 = vpop.f32.mrb[0].mxu0
        %v1370 = vadd.f32 0.0, %v1369
        %v1371 = vpop.f32.mrb[0].mxu0
        %v1372 = vadd.f32 0.0, %v1371
        %v1373 = vpop.f32.mrb[0].mxu0
        %v1374 = vadd.f32 0.0, %v1373
        %v1375 = vpop.f32.mrb[0].mxu0
        %v1376 = vadd.f32 0.0, %v1375
        %1377 = vmatprep.mubr.bf16.mxu0 0
        %1378 = vmatmul.mubr.bf16.gmra.mrb[0].mxu0 %v647
        %v1379 = vpop.f32.mrb[0].mxu0
        %v1380 = vadd.f32 0.0, %v1379
        %v1381 = vpop.f32.mrb[0].mxu0
        %v1382 = vadd.f32 0.0, %v1381
        %v1383 = vpop.f32.mrb[0].mxu0
        %v1384 = vadd.f32 0.0, %v1383
        %v1385 = vpop.f32.mrb[0].mxu0
        %v1386 = vadd.f32 0.0, %v1385
        %1387 = vmatprep.mubr.bf16.mxu0 0
        %1388 = vmatmul.mubr.bf16.gmra.mrb[0].mxu0 %v648
        %v1389 = vpop.f32.mrb[0].mxu0
        %v1390 = vadd.f32 0.0, %v1389
        %v1391 = vpop.f32.mrb[0].mxu0
        %v1392 = vadd.f32 0.0, %v1391
        %v1393 = vpop.f32.mrb[0].mxu0
        %v1394 = vadd.f32 0.0, %v1393
        %v1395 = vpop.f32.mrb[0].mxu0
        %v1396 = vadd.f32 0.0, %v1395
        %1397 = vmatprep.mubr.bf16.mxu0 0
        %1398 = vmatmul.mubr.bf16.gmra.mrb[0].mxu0 %v649
        %v1399 = vpop.f32.mrb[0].mxu0
        %v1400 = vadd.f32 0.0, %v1399
        %v1401 = vpop.f32.mrb[0].mxu0
        %v1402 = vadd.f32 0.0, %v1401
        %v1403 = vpop.f32.mrb[0].mxu0
        %v1404 = vadd.f32 0.0, %v1403
        %v1405 = vpop.f32.mrb[0].mxu0
        %v1406 = vadd.f32 0.0, %v1405
        %1407 = vmatprep.mubr.bf16.mxu0 0
        %1408 = vmatmul.mubr.bf16.gmra.mrb[0].mxu0 %v650
        %v1409 = vpop.f32.mrb[0].mxu0
        %v1410 = vadd.f32 0.0, %v1409
        %v1411 = vpop.f32.mrb[0].mxu0
        %v1412 = vadd.f32 0.0, %v1411
        %v1413 = vpop.f32.mrb[0].mxu0
        %v1414 = vadd.f32 0.0, %v1413
        %v1415 = vpop.f32.mrb[0].mxu0
        %v1416 = vadd.f32 0.0, %v1415
        %1417 = vmatprep.mubr.bf16.mxu0 0
        %1418 = vmatmul.mubr.bf16.gmra.mrb[0].mxu0 %v651
        %v1419 = vpop.f32.mrb[0].mxu0
        %v1420 = vadd.f32 0.0, %v1419
        %v1421 = vpop.f32.mrb[0].mxu0
        %v1422 = vadd.f32 0.0, %v1421
        %v1423 = vpop.f32.mrb[0].mxu0
        %v1424 = vadd.f32 0.0, %v1423
        %v1425 = vpop.f32.mrb[0].mxu0
        %v1426 = vadd.f32 0.0, %v1425
        %1427 = vmatprep.mubr.bf16.mxu0 0
        %1428 = vmatmul.mubr.bf16.gmra.mrb[0].mxu0 %v652
        %v1429 = vpop.f32.mrb[0].mxu0
        %v1430 = vadd.f32 0.0, %v1429
        %v1431 = vpop.f32.mrb[0].mxu0
        %v1432 = vadd.f32 0.0, %v1431
        %v1433 = vpop.f32.mrb[0].mxu0
        %v1434 = vadd.f32 0.0, %v1433
        %v1435 = vpop.f32.mrb[0].mxu0
        %v1436 = vadd.f32 0.0, %v1435
        %1437 = vdwg.mxu0
        %1438 = vmatprep.subr.bf16.mxu0 0
        %1439 = vmatpush1.bf16.xpose.msra.mxu0 %v797
        %1440 = vmatprep.subr.bf16.mxu0 0
        %1441 = vmatpush1.bf16.xpose.msra.mxu0 %v798
        %1442 = vmatprep.subr.bf16.mxu0 0
        %1443 = vmatpush1.bf16.xpose.msra.mxu0 %v799
        %1444 = vmatprep.subr.bf16.mxu0 0
        %1445 = vmatpush1.bf16.xpose.msra.mxu0 %v800
        %1446 = vmatprep.subr.bf16.mxu0 0
        %1447 = vmatpush1.bf16.xpose.msra.mxu0 %v801
        %1448 = vmatprep.subr.bf16.mxu0 0
        %1449 = vmatpush1.bf16.xpose.msra.mxu0 %v802
        %1450 = vmatprep.subr.bf16.mxu0 0
        %1451 = vmatpush1.bf16.xpose.msra.mxu0 %v803
        %1452 = vmatprep.subr.bf16.mxu0 0
        %1453 = vmatpush1.bf16.xpose.msra.mxu0 %v804
        %1454 = vmatprep.subr.bf16.mxu0 0
        %1455 = vmatpush1.bf16.xpose.msra.mxu0 %v805
        %1456 = vmatprep.subr.bf16.mxu0 0
        %1457 = vmatpush1.bf16.xpose.msra.mxu0 %v806
        %1458 = vmatprep.subr.bf16.mxu0 0
        %1459 = vmatpush1.bf16.xpose.msra.mxu0 %v807
        %1460 = vmatprep.subr.bf16.mxu0 0
        %1461 = vmatpush1.bf16.xpose.msra.mxu0 %v808
        %1462 = vmatprep.subr.bf16.mxu0 0
        %1463 = vmatpush1.bf16.xpose.msra.mxu0 %v809
        %1464 = vmatprep.subr.bf16.mxu0 0
        %1465 = vmatpush1.bf16.xpose.msra.mxu0 %v810
        %1466 = vmatprep.subr.bf16.mxu0 0
        %1467 = vmatpush1.bf16.xpose.msra.mxu0 %v811
        %1468 = vmatprep.subr.bf16.mxu0 0
        %1469 = vmatpush1.bf16.xpose.msra.mxu0 %v812
        %1470 = vmatprep.mubr.bf16.mxu0 0
        %1471 = vmatmul.mubr.bf16.gmra.mrb[0].mxu0 %v549
        %v1472 = vpop.f32.mrb[0].mxu0
        %v1473 = vadd.f32 0.0, %v1472
        %v1474 = vpop.f32.mrb[0].mxu0
        %v1475 = vadd.f32 0.0, %v1474
        %v1476 = vpop.f32.mrb[0].mxu0
        %v1477 = vadd.f32 0.0, %v1476
        %v1478 = vpop.f32.mrb[0].mxu0
        %v1479 = vadd.f32 0.0, %v1478
        %1480 = vmatprep.mubr.bf16.mxu0 0
        %1481 = vmatmul.mubr.bf16.gmra.mrb[0].mxu0 %v550
        %v1482 = vpop.f32.mrb[0].mxu0
        %v1483 = vadd.f32 0.0, %v1482
        %v1484 = vpop.f32.mrb[0].mxu0
        %v1485 = vadd.f32 0.0, %v1484
        %v1486 = vpop.f32.mrb[0].mxu0
        %v1487 = vadd.f32 0.0, %v1486
        %v1488 = vpop.f32.mrb[0].mxu0
        %v1489 = vadd.f32 0.0, %v1488
        %1490 = vmatprep.mubr.bf16.mxu0 0
        %1491 = vmatmul.mubr.bf16.gmra.mrb[0].mxu0 %v551
        %v1492 = vpop.f32.mrb[0].mxu0
        %v1493 = vadd.f32 0.0, %v1492
        %v1494 = vpop.f32.mrb[0].mxu0
        %v1495 = vadd.f32 0.0, %v1494
        %v1496 = vpop.f32.mrb[0].mxu0
        %v1497 = vadd.f32 0.0, %v1496
        %v1498 = vpop.f32.mrb[0].mxu0
        %v1499 = vadd.f32 0.0, %v1498
        %1500 = vmatprep.mubr.bf16.mxu0 0
        %1501 = vmatmul.mubr.bf16.gmra.mrb[0].mxu0 %v552
        %v1502 = vpop.f32.mrb[0].mxu0
        %v1503 = vadd.f32 0.0, %v1502
        %v1504 = vpop.f32.mrb[0].mxu0
        %v1505 = vadd.f32 0.0, %v1504
        %v1506 = vpop.f32.mrb[0].mxu0
        %v1507 = vadd.f32 0.0, %v1506
        %v1508 = vpop.f32.mrb[0].mxu0
        %v1509 = vadd.f32 0.0, %v1508
        %1510 = vmatprep.mubr.bf16.mxu0 0
        %1511 = vmatmul.mubr.bf16.gmra.mrb[0].mxu0 %v553
        %v1512 = vpop.f32.mrb[0].mxu0
        %v1513 = vadd.f32 0.0, %v1512
        %v1514 = vpop.f32.mrb[0].mxu0
        %v1515 = vadd.f32 0.0, %v1514
        %v1516 = vpop.f32.mrb[0].mxu0
        %v1517 = vadd.f32 0.0, %v1516
        %v1518 = vpop.f32.mrb[0].mxu0
        %v1519 = vadd.f32 0.0, %v1518
        %1520 = vmatprep.mubr.bf16.mxu0 0
        %1521 = vmatmul.mubr.bf16.gmra.mrb[0].mxu0 %v554
        %v1522 = vpop.f32.mrb[0].mxu0
        %v1523 = vadd.f32 0.0, %v1522
        %v1524 = vpop.f32.mrb[0].mxu0
        %v1525 = vadd.f32 0.0, %v1524
        %v1526 = vpop.f32.mrb[0].mxu0
        %v1527 = vadd.f32 0.0, %v1526
        %v1528 = vpop.f32.mrb[0].mxu0
        %v1529 = vadd.f32 0.0, %v1528
        %1530 = vmatprep.mubr.bf16.mxu0 0
        %1531 = vmatmul.mubr.bf16.gmra.mrb[0].mxu0 %v555
        %v1532 = vpop.f32.mrb[0].mxu0
        %v1533 = vadd.f32 0.0, %v1532
        %v1534 = vpop.f32.mrb[0].mxu0
        %v1535 = vadd.f32 0.0, %v1534
        %v1536 = vpop.f32.mrb[0].mxu0
        %v1537 = vadd.f32 0.0, %v1536
        %v1538 = vpop.f32.mrb[0].mxu0
        %v1539 = vadd.f32 0.0, %v1538
        %1540 = vmatprep.mubr.bf16.mxu0 0
        %1541 = vmatmul.mubr.bf16.gmra.mrb[0].mxu0 %v556
        %v1542 = vpop.f32.mrb[0].mxu0
        %v1543 = vadd.f32 0.0, %v1542
        %v1544 = vpop.f32.mrb[0].mxu0
        %v1545 = vadd.f32 0.0, %v1544
        %v1546 = vpop.f32.mrb[0].mxu0
        %v1547 = vadd.f32 0.0, %v1546
        %v1548 = vpop.f32.mrb[0].mxu0
        %v1549 = vadd.f32 0.0, %v1548
        %1550 = vmatprep.mubr.bf16.mxu0 0
        %1551 = vmatmul.mubr.bf16.gmra.mrb[0].mxu0 %v565
        %v1552 = vpop.f32.mrb[0].mxu0
        %v1553 = vadd.f32 0.0, %v1552
        %v1554 = vpop.f32.mrb[0].mxu0
        %v1555 = vadd.f32 0.0, %v1554
        %v1556 = vpop.f32.mrb[0].mxu0
        %v1557 = vadd.f32 0.0, %v1556
        %v1558 = vpop.f32.mrb[0].mxu0
        %v1559 = vadd.f32 0.0, %v1558
        %1560 = vmatprep.mubr.bf16.mxu0 0
        %1561 = vmatmul.mubr.bf16.gmra.mrb[0].mxu0 %v566
        %v1562 = vpop.f32.mrb[0].mxu0
        %v1563 = vadd.f32 0.0, %v1562
        %v1564 = vpop.f32.mrb[0].mxu0
        %v1565 = vadd.f32 0.0, %v1564
        %v1566 = vpop.f32.mrb[0].mxu0
        %v1567 = vadd.f32 0.0, %v1566
        %v1568 = vpop.f32.mrb[0].mxu0
        %v1569 = vadd.f32 0.0, %v1568
        %1570 = vmatprep.mubr.bf16.mxu0 0
        %1571 = vmatmul.mubr.bf16.gmra.mrb[0].mxu0 %v567
        %v1572 = vpop.f32.mrb[0].mxu0
        %v1573 = vadd.f32 0.0, %v1572
        %v1574 = vpop.f32.mrb[0].mxu0
        %v1575 = vadd.f32 0.0, %v1574
        %v1576 = vpop.f32.mrb[0].mxu0
        %v1577 = vadd.f32 0.0, %v1576
        %v1578 = vpop.f32.mrb[0].mxu0
        %v1579 = vadd.f32 0.0, %v1578
        %1580 = vmatprep.mubr.bf16.mxu0 0
        %1581 = vmatmul.mubr.bf16.gmra.mrb[0].mxu0 %v568
        %v1582 = vpop.f32.mrb[0].mxu0
        %v1583 = vadd.f32 0.0, %v1582
        %v1584 = vpop.f32.mrb[0].mxu0
        %v1585 = vadd.f32 0.0, %v1584
        %v1586 = vpop.f32.mrb[0].mxu0
        %v1587 = vadd.f32 0.0, %v1586
        %v1588 = vpop.f32.mrb[0].mxu0
        %v1589 = vadd.f32 0.0, %v1588
        %1590 = vmatprep.mubr.bf16.mxu0 0
        %1591 = vmatmul.mubr.bf16.gmra.mrb[0].mxu0 %v569
        %v1592 = vpop.f32.mrb[0].mxu0
        %v1593 = vadd.f32 0.0, %v1592
        %v1594 = vpop.f32.mrb[0].mxu0
        %v1595 = vadd.f32 0.0, %v1594
        %v1596 = vpop.f32.mrb[0].mxu0
        %v1597 = vadd.f32 0.0, %v1596
        %v1598 = vpop.f32.mrb[0].mxu0
        %v1599 = vadd.f32 0.0, %v1598
        %1600 = vmatprep.mubr.bf16.mxu0 0
        %1601 = vmatmul.mubr.bf16.gmra.mrb[0].mxu0 %v570
        %v1602 = vpop.f32.mrb[0].mxu0
        %v1603 = vadd.f32 0.0, %v1602
        %v1604 = vpop.f32.mrb[0].mxu0
        %v1605 = vadd.f32 0.0, %v1604
        %v1606 = vpop.f32.mrb[0].mxu0
        %v1607 = vadd.f32 0.0, %v1606
        %v1608 = vpop.f32.mrb[0].mxu0
        %v1609 = vadd.f32 0.0, %v1608
        %1610 = vmatprep.mubr.bf16.mxu0 0
        %1611 = vmatmul.mubr.bf16.gmra.mrb[0].mxu0 %v571
        %v1612 = vpop.f32.mrb[0].mxu0
        %v1613 = vadd.f32 0.0, %v1612
        %v1614 = vpop.f32.mrb[0].mxu0
        %v1615 = vadd.f32 0.0, %v1614
        %v1616 = vpop.f32.mrb[0].mxu0
        %v1617 = vadd.f32 0.0, %v1616
        %v1618 = vpop.f32.mrb[0].mxu0
        %v1619 = vadd.f32 0.0, %v1618
        %1620 = vmatprep.mubr.bf16.mxu0 0
        %1621 = vmatmul.mubr.bf16.gmra.mrb[0].mxu0 %v572
        %v1622 = vpop.f32.mrb[0].mxu0
        %v1623 = vadd.f32 0.0, %v1622
        %v1624 = vpop.f32.mrb[0].mxu0
        %v1625 = vadd.f32 0.0, %v1624
        %v1626 = vpop.f32.mrb[0].mxu0
        %v1627 = vadd.f32 0.0, %v1626
        %v1628 = vpop.f32.mrb[0].mxu0
        %v1629 = vadd.f32 0.0, %v1628
        %1630 = vmatprep.mubr.bf16.mxu0 0
        %1631 = vmatmul.mubr.bf16.gmra.mrb[0].mxu0 %v581
        %v1632 = vpop.f32.mrb[0].mxu0
        %v1633 = vadd.f32 0.0, %v1632
        %v1634 = vpop.f32.mrb[0].mxu0
        %v1635 = vadd.f32 0.0, %v1634
        %v1636 = vpop.f32.mrb[0].mxu0
        %v1637 = vadd.f32 0.0, %v1636
        %v1638 = vpop.f32.mrb[0].mxu0
        %v1639 = vadd.f32 0.0, %v1638
        %1640 = vmatprep.mubr.bf16.mxu0 0
        %1641 = vmatmul.mubr.bf16.gmra.mrb[0].mxu0 %v582
        %v1642 = vpop.f32.mrb[0].mxu0
        %v1643 = vadd.f32 0.0, %v1642
        %v1644 = vpop.f32.mrb[0].mxu0
        %v1645 = vadd.f32 0.0, %v1644
        %v1646 = vpop.f32.mrb[0].mxu0
        %v1647 = vadd.f32 0.0, %v1646
        %v1648 = vpop.f32.mrb[0].mxu0
        %v1649 = vadd.f32 0.0, %v1648
        %1650 = vmatprep.mubr.bf16.mxu0 0
        %1651 = vmatmul.mubr.bf16.gmra.mrb[0].mxu0 %v583
        %v1652 = vpop.f32.mrb[0].mxu0
        %v1653 = vadd.f32 0.0, %v1652
        %v1654 = vpop.f32.mrb[0].mxu0
        %v1655 = vadd.f32 0.0, %v1654
        %v1656 = vpop.f32.mrb[0].mxu0
        %v1657 = vadd.f32 0.0, %v1656
        %v1658 = vpop.f32.mrb[0].mxu0
        %v1659 = vadd.f32 0.0, %v1658
        %1660 = vmatprep.mubr.bf16.mxu0 0
        %1661 = vmatmul.mubr.bf16.gmra.mrb[0].mxu0 %v584
        %v1662 = vpop.f32.mrb[0].mxu0
        %v1663 = vadd.f32 0.0, %v1662
        %v1664 = vpop.f32.mrb[0].mxu0
        %v1665 = vadd.f32 0.0, %v1664
        %v1666 = vpop.f32.mrb[0].mxu0
        %v1667 = vadd.f32 0.0, %v1666
        %v1668 = vpop.f32.mrb[0].mxu0
        %v1669 = vadd.f32 0.0, %v1668
        %1670 = vmatprep.mubr.bf16.mxu0 0
        %1671 = vmatmul.mubr.bf16.gmra.mrb[0].mxu0 %v585
        %v1672 = vpop.f32.mrb[0].mxu0
        %v1673 = vadd.f32 0.0, %v1672
        %v1674 = vpop.f32.mrb[0].mxu0
        %v1675 = vadd.f32 0.0, %v1674
        %v1676 = vpop.f32.mrb[0].mxu0
        %v1677 = vadd.f32 0.0, %v1676
        %v1678 = vpop.f32.mrb[0].mxu0
        %v1679 = vadd.f32 0.0, %v1678
        %1680 = vmatprep.mubr.bf16.mxu0 0
        %1681 = vmatmul.mubr.bf16.gmra.mrb[0].mxu0 %v586
        %v1682 = vpop.f32.mrb[0].mxu0
        %v1683 = vadd.f32 0.0, %v1682
        %v1684 = vpop.f32.mrb[0].mxu0
        %v1685 = vadd.f32 0.0, %v1684
        %v1686 = vpop.f32.mrb[0].mxu0
        %v1687 = vadd.f32 0.0, %v1686
        %v1688 = vpop.f32.mrb[0].mxu0
        %v1689 = vadd.f32 0.0, %v1688
        %1690 = vmatprep.mubr.bf16.mxu0 0
        %1691 = vmatmul.mubr.bf16.gmra.mrb[0].mxu0 %v587
        %v1692 = vpop.f32.mrb[0].mxu0
        %v1693 = vadd.f32 0.0, %v1692
        %v1694 = vpop.f32.mrb[0].mxu0
        %v1695 = vadd.f32 0.0, %v1694
        %v1696 = vpop.f32.mrb[0].mxu0
        %v1697 = vadd.f32 0.0, %v1696
        %v1698 = vpop.f32.mrb[0].mxu0
        %v1699 = vadd.f32 0.0, %v1698
        %1700 = vmatprep.mubr.bf16.mxu0 0
        %1701 = vmatmul.mubr.bf16.gmra.mrb[0].mxu0 %v588
        %v1702 = vpop.f32.mrb[0].mxu0
        %v1703 = vadd.f32 0.0, %v1702
        %v1704 = vpop.f32.mrb[0].mxu0
        %v1705 = vadd.f32 0.0, %v1704
        %v1706 = vpop.f32.mrb[0].mxu0
        %v1707 = vadd.f32 0.0, %v1706
        %v1708 = vpop.f32.mrb[0].mxu0
        %v1709 = vadd.f32 0.0, %v1708
        %1710 = vmatprep.mubr.bf16.mxu0 0
        %1711 = vmatmul.mubr.bf16.gmra.mrb[0].mxu0 %v597
        %v1712 = vpop.f32.mrb[0].mxu0
        %v1713 = vadd.f32 0.0, %v1712
        %v1714 = vpop.f32.mrb[0].mxu0
        %v1715 = vadd.f32 0.0, %v1714
        %v1716 = vpop.f32.mrb[0].mxu0
        %v1717 = vadd.f32 0.0, %v1716
        %v1718 = vpop.f32.mrb[0].mxu0
        %v1719 = vadd.f32 0.0, %v1718
        %1720 = vmatprep.mubr.bf16.mxu0 0
        %1721 = vmatmul.mubr.bf16.gmra.mrb[0].mxu0 %v598
        %v1722 = vpop.f32.mrb[0].mxu0
        %v1723 = vadd.f32 0.0, %v1722
        %v1724 = vpop.f32.mrb[0].mxu0
        %v1725 = vadd.f32 0.0, %v1724
        %v1726 = vpop.f32.mrb[0].mxu0
        %v1727 = vadd.f32 0.0, %v1726
        %v1728 = vpop.f32.mrb[0].mxu0
        %v1729 = vadd.f32 0.0, %v1728
        %1730 = vmatprep.mubr.bf16.mxu0 0
        %1731 = vmatmul.mubr.bf16.gmra.mrb[0].mxu0 %v599
        %v1732 = vpop.f32.mrb[0].mxu0
        %v1733 = vadd.f32 0.0, %v1732
        %v1734 = vpop.f32.mrb[0].mxu0
        %v1735 = vadd.f32 0.0, %v1734
        %v1736 = vpop.f32.mrb[0].mxu0
        %v1737 = vadd.f32 0.0, %v1736
        %v1738 = vpop.f32.mrb[0].mxu0
        %v1739 = vadd.f32 0.0, %v1738
        %1740 = vmatprep.mubr.bf16.mxu0 0
        %1741 = vmatmul.mubr.bf16.gmra.mrb[0].mxu0 %v600
        %v1742 = vpop.f32.mrb[0].mxu0
        %v1743 = vadd.f32 0.0, %v1742
        %v1744 = vpop.f32.mrb[0].mxu0
        %v1745 = vadd.f32 0.0, %v1744
        %v1746 = vpop.f32.mrb[0].mxu0
        %v1747 = vadd.f32 0.0, %v1746
        %v1748 = vpop.f32.mrb[0].mxu0
        %v1749 = vadd.f32 0.0, %v1748
        %1750 = vmatprep.mubr.bf16.mxu0 0
        %1751 = vmatmul.mubr.bf16.gmra.mrb[0].mxu0 %v601
        %v1752 = vpop.f32.mrb[0].mxu0
        %v1753 = vadd.f32 0.0, %v1752
        %v1754 = vpop.f32.mrb[0].mxu0
        %v1755 = vadd.f32 0.0, %v1754
        %v1756 = vpop.f32.mrb[0].mxu0
        %v1757 = vadd.f32 0.0, %v1756
        %v1758 = vpop.f32.mrb[0].mxu0
        %v1759 = vadd.f32 0.0, %v1758
        %1760 = vmatprep.mubr.bf16.mxu0 0
        %1761 = vmatmul.mubr.bf16.gmra.mrb[0].mxu0 %v602
        %v1762 = vpop.f32.mrb[0].mxu0
        %v1763 = vadd.f32 0.0, %v1762
        %v1764 = vpop.f32.mrb[0].mxu0
        %v1765 = vadd.f32 0.0, %v1764
        %v1766 = vpop.f32.mrb[0].mxu0
        %v1767 = vadd.f32 0.0, %v1766
        %v1768 = vpop.f32.mrb[0].mxu0
        %v1769 = vadd.f32 0.0, %v1768
        %1770 = vmatprep.mubr.bf16.mxu0 0
        %1771 = vmatmul.mubr.bf16.gmra.mrb[0].mxu0 %v603
        %v1772 = vpop.f32.mrb[0].mxu0
        %v1773 = vadd.f32 0.0, %v1772
        %v1774 = vpop.f32.mrb[0].mxu0
        %v1775 = vadd.f32 0.0, %v1774
        %v1776 = vpop.f32.mrb[0].mxu0
        %v1777 = vadd.f32 0.0, %v1776
        %v1778 = vpop.f32.mrb[0].mxu0
        %v1779 = vadd.f32 0.0, %v1778
        %1780 = vmatprep.mubr.bf16.mxu0 0
        %1781 = vmatmul.mubr.bf16.gmra.mrb[0].mxu0 %v604
        %v1782 = vpop.f32.mrb[0].mxu0
        %v1783 = vadd.f32 0.0, %v1782
        %v1784 = vpop.f32.mrb[0].mxu0
        %v1785 = vadd.f32 0.0, %v1784
        %v1786 = vpop.f32.mrb[0].mxu0
        %v1787 = vadd.f32 0.0, %v1786
        %v1788 = vpop.f32.mrb[0].mxu0
        %v1789 = vadd.f32 0.0, %v1788
        %1790 = vmatprep.mubr.bf16.mxu0 0
        %1791 = vmatmul.mubr.bf16.gmra.mrb[0].mxu0 %v613
        %v1792 = vpop.f32.mrb[0].mxu0
        %v1793 = vadd.f32 0.0, %v1792
        %v1794 = vpop.f32.mrb[0].mxu0
        %v1795 = vadd.f32 0.0, %v1794
        %v1796 = vpop.f32.mrb[0].mxu0
        %v1797 = vadd.f32 0.0, %v1796
        %v1798 = vpop.f32.mrb[0].mxu0
        %v1799 = vadd.f32 0.0, %v1798
        %1800 = vmatprep.mubr.bf16.mxu0 0
        %1801 = vmatmul.mubr.bf16.gmra.mrb[0].mxu0 %v614
        %v1802 = vpop.f32.mrb[0].mxu0
        %v1803 = vadd.f32 0.0, %v1802
        %v1804 = vpop.f32.mrb[0].mxu0
        %v1805 = vadd.f32 0.0, %v1804
        %v1806 = vpop.f32.mrb[0].mxu0
        %v1807 = vadd.f32 0.0, %v1806
        %v1808 = vpop.f32.mrb[0].mxu0
        %v1809 = vadd.f32 0.0, %v1808
        %1810 = vmatprep.mubr.bf16.mxu0 0
        %1811 = vmatmul.mubr.bf16.gmra.mrb[0].mxu0 %v615
        %v1812 = vpop.f32.mrb[0].mxu0
        %v1813 = vadd.f32 0.0, %v1812
        %v1814 = vpop.f32.mrb[0].mxu0
        %v1815 = vadd.f32 0.0, %v1814
        %v1816 = vpop.f32.mrb[0].mxu0
        %v1817 = vadd.f32 0.0, %v1816
        %v1818 = vpop.f32.mrb[0].mxu0
        %v1819 = vadd.f32 0.0, %v1818
        %1820 = vmatprep.mubr.bf16.mxu0 0
        %1821 = vmatmul.mubr.bf16.gmra.mrb[0].mxu0 %v616
        %v1822 = vpop.f32.mrb[0].mxu0
        %v1823 = vadd.f32 0.0, %v1822
        %v1824 = vpop.f32.mrb[0].mxu0
        %v1825 = vadd.f32 0.0, %v1824
        %v1826 = vpop.f32.mrb[0].mxu0
        %v1827 = vadd.f32 0.0, %v1826
        %v1828 = vpop.f32.mrb[0].mxu0
        %v1829 = vadd.f32 0.0, %v1828
        %1830 = vmatprep.mubr.bf16.mxu0 0
        %1831 = vmatmul.mubr.bf16.gmra.mrb[0].mxu0 %v617
        %v1832 = vpop.f32.mrb[0].mxu0
        %v1833 = vadd.f32 0.0, %v1832
        %v1834 = vpop.f32.mrb[0].mxu0
        %v1835 = vadd.f32 0.0, %v1834
        %v1836 = vpop.f32.mrb[0].mxu0
        %v1837 = vadd.f32 0.0, %v1836
        %v1838 = vpop.f32.mrb[0].mxu0
        %v1839 = vadd.f32 0.0, %v1838
        %1840 = vmatprep.mubr.bf16.mxu0 0
        %1841 = vmatmul.mubr.bf16.gmra.mrb[0].mxu0 %v618
        %v1842 = vpop.f32.mrb[0].mxu0
        %v1843 = vadd.f32 0.0, %v1842
        %v1844 = vpop.f32.mrb[0].mxu0
        %v1845 = vadd.f32 0.0, %v1844
        %v1846 = vpop.f32.mrb[0].mxu0
        %v1847 = vadd.f32 0.0, %v1846
        %v1848 = vpop.f32.mrb[0].mxu0
        %v1849 = vadd.f32 0.0, %v1848
        %1850 = vmatprep.mubr.bf16.mxu0 0
        %1851 = vmatmul.mubr.bf16.gmra.mrb[0].mxu0 %v619
        %v1852 = vpop.f32.mrb[0].mxu0
        %v1853 = vadd.f32 0.0, %v1852
        %v1854 = vpop.f32.mrb[0].mxu0
        %v1855 = vadd.f32 0.0, %v1854
        %v1856 = vpop.f32.mrb[0].mxu0
        %v1857 = vadd.f32 0.0, %v1856
        %v1858 = vpop.f32.mrb[0].mxu0
        %v1859 = vadd.f32 0.0, %v1858
        %1860 = vmatprep.mubr.bf16.mxu0 0
        %1861 = vmatmul.mubr.bf16.gmra.mrb[0].mxu0 %v620
        %v1862 = vpop.f32.mrb[0].mxu0
        %v1863 = vadd.f32 0.0, %v1862
        %v1864 = vpop.f32.mrb[0].mxu0
        %v1865 = vadd.f32 0.0, %v1864
        %v1866 = vpop.f32.mrb[0].mxu0
        %v1867 = vadd.f32 0.0, %v1866
        %v1868 = vpop.f32.mrb[0].mxu0
        %v1869 = vadd.f32 0.0, %v1868
        %1870 = vmatprep.mubr.bf16.mxu0 0
        %1871 = vmatmul.mubr.bf16.gmra.mrb[0].mxu0 %v629
        %v1872 = vpop.f32.mrb[0].mxu0
        %v1873 = vadd.f32 0.0, %v1872
        %v1874 = vpop.f32.mrb[0].mxu0
        %v1875 = vadd.f32 0.0, %v1874
        %v1876 = vpop.f32.mrb[0].mxu0
        %v1877 = vadd.f32 0.0, %v1876
        %v1878 = vpop.f32.mrb[0].mxu0
        %v1879 = vadd.f32 0.0, %v1878
        %1880 = vmatprep.mubr.bf16.mxu0 0
        %1881 = vmatmul.mubr.bf16.gmra.mrb[0].mxu0 %v630
        %v1882 = vpop.f32.mrb[0].mxu0
        %v1883 = vadd.f32 0.0, %v1882
        %v1884 = vpop.f32.mrb[0].mxu0
        %v1885 = vadd.f32 0.0, %v1884
        %v1886 = vpop.f32.mrb[0].mxu0
        %v1887 = vadd.f32 0.0, %v1886
        %v1888 = vpop.f32.mrb[0].mxu0
        %v1889 = vadd.f32 0.0, %v1888
        %1890 = vmatprep.mubr.bf16.mxu0 0
        %1891 = vmatmul.mubr.bf16.gmra.mrb[0].mxu0 %v631
        %v1892 = vpop.f32.mrb[0].mxu0
        %v1893 = vadd.f32 0.0, %v1892
        %v1894 = vpop.f32.mrb[0].mxu0
        %v1895 = vadd.f32 0.0, %v1894
        %v1896 = vpop.f32.mrb[0].mxu0
        %v1897 = vadd.f32 0.0, %v1896
        %v1898 = vpop.f32.mrb[0].mxu0
        %v1899 = vadd.f32 0.0, %v1898
        %1900 = vmatprep.mubr.bf16.mxu0 0
        %1901 = vmatmul.mubr.bf16.gmra.mrb[0].mxu0 %v632
        %v1902 = vpop.f32.mrb[0].mxu0
        %v1903 = vadd.f32 0.0, %v1902
        %v1904 = vpop.f32.mrb[0].mxu0
        %v1905 = vadd.f32 0.0, %v1904
        %v1906 = vpop.f32.mrb[0].mxu0
        %v1907 = vadd.f32 0.0, %v1906
        %v1908 = vpop.f32.mrb[0].mxu0
        %v1909 = vadd.f32 0.0, %v1908
        %1910 = vmatprep.mubr.bf16.mxu0 0
        %1911 = vmatmul.mubr.bf16.gmra.mrb[0].mxu0 %v633
        %v1912 = vpop.f32.mrb[0].mxu0
        %v1913 = vadd.f32 0.0, %v1912
        %v1914 = vpop.f32.mrb[0].mxu0
        %v1915 = vadd.f32 0.0, %v1914
        %v1916 = vpop.f32.mrb[0].mxu0
        %v1917 = vadd.f32 0.0, %v1916
        %v1918 = vpop.f32.mrb[0].mxu0
        %v1919 = vadd.f32 0.0, %v1918
        %1920 = vmatprep.mubr.bf16.mxu0 0
        %1921 = vmatmul.mubr.bf16.gmra.mrb[0].mxu0 %v634
        %v1922 = vpop.f32.mrb[0].mxu0
        %v1923 = vadd.f32 0.0, %v1922
        %v1924 = vpop.f32.mrb[0].mxu0
        %v1925 = vadd.f32 0.0, %v1924
        %v1926 = vpop.f32.mrb[0].mxu0
        %v1927 = vadd.f32 0.0, %v1926
        %v1928 = vpop.f32.mrb[0].mxu0
        %v1929 = vadd.f32 0.0, %v1928
        %1930 = vmatprep.mubr.bf16.mxu0 0
        %1931 = vmatmul.mubr.bf16.gmra.mrb[0].mxu0 %v635
        %v1932 = vpop.f32.mrb[0].mxu0
        %v1933 = vadd.f32 0.0, %v1932
        %v1934 = vpop.f32.mrb[0].mxu0
        %v1935 = vadd.f32 0.0, %v1934
        %v1936 = vpop.f32.mrb[0].mxu0
        %v1937 = vadd.f32 0.0, %v1936
        %v1938 = vpop.f32.mrb[0].mxu0
        %v1939 = vadd.f32 0.0, %v1938
        %1940 = vmatprep.mubr.bf16.mxu0 0
        %1941 = vmatmul.mubr.bf16.gmra.mrb[0].mxu0 %v636
        %v1942 = vpop.f32.mrb[0].mxu0
        %v1943 = vadd.f32 0.0, %v1942
        %v1944 = vpop.f32.mrb[0].mxu0
        %v1945 = vadd.f32 0.0, %v1944
        %v1946 = vpop.f32.mrb[0].mxu0
        %v1947 = vadd.f32 0.0, %v1946
        %v1948 = vpop.f32.mrb[0].mxu0
        %v1949 = vadd.f32 0.0, %v1948
        %1950 = vmatprep.mubr.bf16.mxu0 0
        %1951 = vmatmul.mubr.bf16.gmra.mrb[0].mxu0 %v645
        %v1952 = vpop.f32.mrb[0].mxu0
        %v1953 = vadd.f32 0.0, %v1952
        %v1954 = vpop.f32.mrb[0].mxu0
        %v1955 = vadd.f32 0.0, %v1954
        %v1956 = vpop.f32.mrb[0].mxu0
        %v1957 = vadd.f32 0.0, %v1956
        %v1958 = vpop.f32.mrb[0].mxu0
        %v1959 = vadd.f32 0.0, %v1958
        %1960 = vmatprep.mubr.bf16.mxu0 0
        %1961 = vmatmul.mubr.bf16.gmra.mrb[0].mxu0 %v646
        %v1962 = vpop.f32.mrb[0].mxu0
        %v1963 = vadd.f32 0.0, %v1962
        %v1964 = vpop.f32.mrb[0].mxu0
        %v1965 = vadd.f32 0.0, %v1964
        %v1966 = vpop.f32.mrb[0].mxu0
        %v1967 = vadd.f32 0.0, %v1966
        %v1968 = vpop.f32.mrb[0].mxu0
        %v1969 = vadd.f32 0.0, %v1968
        %1970 = vmatprep.mubr.bf16.mxu0 0
        %1971 = vmatmul.mubr.bf16.gmra.mrb[0].mxu0 %v647
        %v1972 = vpop.f32.mrb[0].mxu0
        %v1973 = vadd.f32 0.0, %v1972
        %v1974 = vpop.f32.mrb[0].mxu0
        %v1975 = vadd.f32 0.0, %v1974
        %v1976 = vpop.f32.mrb[0].mxu0
        %v1977 = vadd.f32 0.0, %v1976
        %v1978 = vpop.f32.mrb[0].mxu0
        %v1979 = vadd.f32 0.0, %v1978
        %1980 = vmatprep.mubr.bf16.mxu0 0
        %1981 = vmatmul.mubr.bf16.gmra.mrb[0].mxu0 %v648
        %v1982 = vpop.f32.mrb[0].mxu0
        %v1983 = vadd.f32 0.0, %v1982
        %v1984 = vpop.f32.mrb[0].mxu0
        %v1985 = vadd.f32 0.0, %v1984
        %v1986 = vpop.f32.mrb[0].mxu0
        %v1987 = vadd.f32 0.0, %v1986
        %v1988 = vpop.f32.mrb[0].mxu0
        %v1989 = vadd.f32 0.0, %v1988
        %1990 = vmatprep.mubr.bf16.mxu0 0
        %1991 = vmatmul.mubr.bf16.gmra.mrb[0].mxu0 %v649
        %v1992 = vpop.f32.mrb[0].mxu0
        %v1993 = vadd.f32 0.0, %v1992
        %v1994 = vpop.f32.mrb[0].mxu0
        %v1995 = vadd.f32 0.0, %v1994
        %v1996 = vpop.f32.mrb[0].mxu0
        %v1997 = vadd.f32 0.0, %v1996
        %v1998 = vpop.f32.mrb[0].mxu0
        %v1999 = vadd.f32 0.0, %v1998
        %2000 = vmatprep.mubr.bf16.mxu0 0
        %2001 = vmatmul.mubr.bf16.gmra.mrb[0].mxu0 %v650
        %v2002 = vpop.f32.mrb[0].mxu0
        %v2003 = vadd.f32 0.0, %v2002
        %v2004 = vpop.f32.mrb[0].mxu0
        %v2005 = vadd.f32 0.0, %v2004
        %v2006 = vpop.f32.mrb[0].mxu0
        %v2007 = vadd.f32 0.0, %v2006
        %v2008 = vpop.f32.mrb[0].mxu0
        %v2009 = vadd.f32 0.0, %v2008
        %2010 = vmatprep.mubr.bf16.mxu0 0
        %2011 = vmatmul.mubr.bf16.gmra.mrb[0].mxu0 %v651
        %v2012 = vpop.f32.mrb[0].mxu0
        %v2013 = vadd.f32 0.0, %v2012
        %v2014 = vpop.f32.mrb[0].mxu0
        %v2015 = vadd.f32 0.0, %v2014
        %v2016 = vpop.f32.mrb[0].mxu0
        %v2017 = vadd.f32 0.0, %v2016
        %v2018 = vpop.f32.mrb[0].mxu0
        %v2019 = vadd.f32 0.0, %v2018
        %2020 = vmatprep.mubr.bf16.mxu0 0
        %2021 = vmatmul.mubr.bf16.gmra.mrb[0].mxu0 %v652
        %v2022 = vpop.f32.mrb[0].mxu0
        %v2023 = vadd.f32 0.0, %v2022
        %v2024 = vpop.f32.mrb[0].mxu0
        %v2025 = vadd.f32 0.0, %v2024
        %v2026 = vpop.f32.mrb[0].mxu0
        %v2027 = vadd.f32 0.0, %v2026
        %v2028 = vpop.f32.mrb[0].mxu0
        %v2029 = vadd.f32 0.0, %v2028
        %2030 = vdwg.mxu0
        %v2031 = vadd.f32 %v880, %v884
        %v2032 = vadd.f32 %v2031, %v890
        %v2033 = vadd.f32 %v2032, %v894
        %v2034 = vadd.f32 %v2033, %v900
        %v2035 = vadd.f32 %v2034, %v904
        %v2036 = vadd.f32 %v2035, %v910
        %v2037 = vadd.f32 %v2036, %v914
        %v2038 = vadd.f32 %v2037, %v920
        %v2039 = vadd.f32 %v2038, %v924
        %v2040 = vadd.f32 %v2039, %v930
        %v2041 = vadd.f32 %v2040, %v934
        %v2042 = vadd.f32 %v2041, %v940
        %v2043 = vadd.f32 %v2042, %v944
        %v2044 = vadd.f32 %v2043, %v950
        %v2045 = vadd.f32 %v2044, %v954
        %v2046 = vadd.f32 %v2045, %v960
        %v2047 = vadd.f32 %v2046, %v964
        %v2048 = vadd.f32 %v2047, %v970
        %v2049 = vadd.f32 %v2048, %v974
        %v2050 = vadd.f32 %v2049, %v980
        %v2051 = vadd.f32 %v2050, %v984
        %v2052 = vadd.f32 %v2051, %v990
        %v2053 = vadd.f32 %v2052, %v994
        %v2054 = vadd.f32 %v2053, %v1000
        %v2055 = vadd.f32 %v2054, %v1004
        %v2056 = vadd.f32 %v2055, %v1010
        %v2057 = vadd.f32 %v2056, %v1014
        %v2058 = vadd.f32 %v2057, %v1020
        %v2059 = vadd.f32 %v2058, %v1024
        %v2060 = vadd.f32 %v2059, %v1030
        %v2061 = vadd.f32 %v2060, %v1034
        %v2062 = vadd.f32 %v2061, %v1040
        %v2063 = vadd.f32 %v2062, %v1044
        %v2064 = vadd.f32 %v2063, %v1050
        %v2065 = vadd.f32 %v2064, %v1054
        %v2066 = vadd.f32 %v2065, %v1060
        %v2067 = vadd.f32 %v2066, %v1064
        %v2068 = vadd.f32 %v2067, %v1070
        %v2069 = vadd.f32 %v2068, %v1074
        %v2070 = vadd.f32 %v2069, %v1080
        %v2071 = vadd.f32 %v2070, %v1084
        %v2072 = vadd.f32 %v2071, %v1090
        %v2073 = vadd.f32 %v2072, %v1094
        %v2074 = vadd.f32 %v2073, %v1100
        %v2075 = vadd.f32 %v2074, %v1104
        %v2076 = vadd.f32 %v2075, %v1110
        %v2077 = vadd.f32 %v2076, %v1114
        %v2078 = vadd.f32 %v2077, %v1120
        %v2079 = vadd.f32 %v2078, %v1124
        %v2080 = vadd.f32 %v2079, %v1130
        %v2081 = vadd.f32 %v2080, %v1134
        %v2082 = vadd.f32 %v2081, %v1140
        %v2083 = vadd.f32 %v2082, %v1144
        %v2084 = vadd.f32 %v2083, %v1150
        %v2085 = vadd.f32 %v2084, %v1154
        %v2086 = vadd.f32 %v2085, %v1160
        %v2087 = vadd.f32 %v2086, %v1164
        %v2088 = vadd.f32 %v2087, %v1170
        %v2089 = vadd.f32 %v2088, %v1174
        %v2090 = vadd.f32 %v2089, %v1180
        %v2091 = vadd.f32 %v2090, %v1184
        %v2092 = vadd.f32 %v2091, %v1190
        %v2093 = vadd.f32 %v2092, %v1194
        %v2094 = vadd.f32 %v2093, %v1200
        %v2095 = vadd.f32 %v2094, %v1204
        %v2096 = vadd.f32 %v2095, %v1210
        %v2097 = vadd.f32 %v2096, %v1214
        %v2098 = vadd.f32 %v2097, %v1220
        %v2099 = vadd.f32 %v2098, %v1224
        %v2100 = vadd.f32 %v2099, %v1230
        %v2101 = vadd.f32 %v2100, %v1234
        %v2102 = vadd.f32 %v2101, %v1240
        %v2103 = vadd.f32 %v2102, %v1244
        %v2104 = vadd.f32 %v2103, %v1250
        %v2105 = vadd.f32 %v2104, %v1254
        %v2106 = vadd.f32 %v2105, %v1260
        %v2107 = vadd.f32 %v2106, %v1264
        %v2108 = vadd.f32 %v2107, %v1270
        %v2109 = vadd.f32 %v2108, %v1274
        %v2110 = vadd.f32 %v2109, %v1280
        %v2111 = vadd.f32 %v2110, %v1284
        %v2112 = vadd.f32 %v2111, %v1290
        %v2113 = vadd.f32 %v2112, %v1294
        %v2114 = vadd.f32 %v2113, %v1300
        %v2115 = vadd.f32 %v2114, %v1304
        %v2116 = vadd.f32 %v2115, %v1310
        %v2117 = vadd.f32 %v2116, %v1314
        %v2118 = vadd.f32 %v2117, %v1320
        %v2119 = vadd.f32 %v2118, %v1324
        %v2120 = vadd.f32 %v2119, %v1330
        %v2121 = vadd.f32 %v2120, %v1334
        %v2122 = vadd.f32 %v2121, %v1340
        %v2123 = vadd.f32 %v2122, %v1344
        %v2124 = vadd.f32 %v2123, %v1350
        %v2125 = vadd.f32 %v2124, %v1354
        %v2126 = vadd.f32 %v2125, %v1360
        %v2127 = vadd.f32 %v2126, %v1364
        %v2128 = vadd.f32 %v2127, %v1370
        %v2129 = vadd.f32 %v2128, %v1374
        %v2130 = vadd.f32 %v2129, %v1380
        %v2131 = vadd.f32 %v2130, %v1384
        %v2132 = vadd.f32 %v2131, %v1390
        %v2133 = vadd.f32 %v2132, %v1394
        %v2134 = vadd.f32 %v2133, %v1400
        %v2135 = vadd.f32 %v2134, %v1404
        %v2136 = vadd.f32 %v2135, %v1410
        %v2137 = vadd.f32 %v2136, %v1414
        %v2138 = vadd.f32 %v2137, %v1420
        %v2139 = vadd.f32 %v2138, %v1424
        %v2140 = vadd.f32 %v2139, %v1430
        %v2141 = vadd.f32 %v2140, %v1434
        %v2142 = vrot.slane %v2141, 4
        %v2143 = vadd.f32 %v2141, %v2142
        %v2144 = vrot.slane %v2143, 2
        %v2145 = vadd.f32 %v2143, %v2144
        %v2146 = vrot.slane %v2145, 1
        %v2147 = vadd.f32 %v2145, %v2146
        %v2148 = vadd.f32 %v882, %v886
        %v2149 = vadd.f32 %v2148, %v892
        %v2150 = vadd.f32 %v2149, %v896
        %v2151 = vadd.f32 %v2150, %v902
        %v2152 = vadd.f32 %v2151, %v906
        %v2153 = vadd.f32 %v2152, %v912
        %v2154 = vadd.f32 %v2153, %v916
        %v2155 = vadd.f32 %v2154, %v922
        %v2156 = vadd.f32 %v2155, %v926
        %v2157 = vadd.f32 %v2156, %v932
        %v2158 = vadd.f32 %v2157, %v936
        %v2159 = vadd.f32 %v2158, %v942
        %v2160 = vadd.f32 %v2159, %v946
        %v2161 = vadd.f32 %v2160, %v952
        %v2162 = vadd.f32 %v2161, %v956
        %v2163 = vadd.f32 %v2162, %v962
        %v2164 = vadd.f32 %v2163, %v966
        %v2165 = vadd.f32 %v2164, %v972
        %v2166 = vadd.f32 %v2165, %v976
        %v2167 = vadd.f32 %v2166, %v982
        %v2168 = vadd.f32 %v2167, %v986
        %v2169 = vadd.f32 %v2168, %v992
        %v2170 = vadd.f32 %v2169, %v996
        %v2171 = vadd.f32 %v2170, %v1002
        %v2172 = vadd.f32 %v2171, %v1006
        %v2173 = vadd.f32 %v2172, %v1012
        %v2174 = vadd.f32 %v2173, %v1016
        %v2175 = vadd.f32 %v2174, %v1022
        %v2176 = vadd.f32 %v2175, %v1026
        %v2177 = vadd.f32 %v2176, %v1032
        %v2178 = vadd.f32 %v2177, %v1036
        %v2179 = vadd.f32 %v2178, %v1042
        %v2180 = vadd.f32 %v2179, %v1046
        %v2181 = vadd.f32 %v2180, %v1052
        %v2182 = vadd.f32 %v2181, %v1056
        %v2183 = vadd.f32 %v2182, %v1062
        %v2184 = vadd.f32 %v2183, %v1066
        %v2185 = vadd.f32 %v2184, %v1072
        %v2186 = vadd.f32 %v2185, %v1076
        %v2187 = vadd.f32 %v2186, %v1082
        %v2188 = vadd.f32 %v2187, %v1086
        %v2189 = vadd.f32 %v2188, %v1092
        %v2190 = vadd.f32 %v2189, %v1096
        %v2191 = vadd.f32 %v2190, %v1102
        %v2192 = vadd.f32 %v2191, %v1106
        %v2193 = vadd.f32 %v2192, %v1112
        %v2194 = vadd.f32 %v2193, %v1116
        %v2195 = vadd.f32 %v2194, %v1122
        %v2196 = vadd.f32 %v2195, %v1126
        %v2197 = vadd.f32 %v2196, %v1132
        %v2198 = vadd.f32 %v2197, %v1136
        %v2199 = vadd.f32 %v2198, %v1142
        %v2200 = vadd.f32 %v2199, %v1146
        %v2201 = vadd.f32 %v2200, %v1152
        %v2202 = vadd.f32 %v2201, %v1156
        %v2203 = vadd.f32 %v2202, %v1162
        %v2204 = vadd.f32 %v2203, %v1166
        %v2205 = vadd.f32 %v2204, %v1172
        %v2206 = vadd.f32 %v2205, %v1176
        %v2207 = vadd.f32 %v2206, %v1182
        %v2208 = vadd.f32 %v2207, %v1186
        %v2209 = vadd.f32 %v2208, %v1192
        %v2210 = vadd.f32 %v2209, %v1196
        %v2211 = vadd.f32 %v2210, %v1202
        %v2212 = vadd.f32 %v2211, %v1206
        %v2213 = vadd.f32 %v2212, %v1212
        %v2214 = vadd.f32 %v2213, %v1216
        %v2215 = vadd.f32 %v2214, %v1222
        %v2216 = vadd.f32 %v2215, %v1226
        %v2217 = vadd.f32 %v2216, %v1232
        %v2218 = vadd.f32 %v2217, %v1236
        %v2219 = vadd.f32 %v2218, %v1242
        %v2220 = vadd.f32 %v2219, %v1246
        %v2221 = vadd.f32 %v2220, %v1252
        %v2222 = vadd.f32 %v2221, %v1256
        %v2223 = vadd.f32 %v2222, %v1262
        %v2224 = vadd.f32 %v2223, %v1266
        %v2225 = vadd.f32 %v2224, %v1272
        %v2226 = vadd.f32 %v2225, %v1276
        %v2227 = vadd.f32 %v2226, %v1282
        %v2228 = vadd.f32 %v2227, %v1286
        %v2229 = vadd.f32 %v2228, %v1292
        %v2230 = vadd.f32 %v2229, %v1296
        %v2231 = vadd.f32 %v2230, %v1302
        %v2232 = vadd.f32 %v2231, %v1306
        %v2233 = vadd.f32 %v2232, %v1312
        %v2234 = vadd.f32 %v2233, %v1316
        %v2235 = vadd.f32 %v2234, %v1322
        %v2236 = vadd.f32 %v2235, %v1326
        %v2237 = vadd.f32 %v2236, %v1332
        %v2238 = vadd.f32 %v2237, %v1336
        %v2239 = vadd.f32 %v2238, %v1342
        %v2240 = vadd.f32 %v2239, %v1346
        %v2241 = vadd.f32 %v2240, %v1352
        %v2242 = vadd.f32 %v2241, %v1356
        %v2243 = vadd.f32 %v2242, %v1362
        %v2244 = vadd.f32 %v2243, %v1366
        %v2245 = vadd.f32 %v2244, %v1372
        %v2246 = vadd.f32 %v2245, %v1376
        %v2247 = vadd.f32 %v2246, %v1382
        %v2248 = vadd.f32 %v2247, %v1386
        %v2249 = vadd.f32 %v2248, %v1392
        %v2250 = vadd.f32 %v2249, %v1396
        %v2251 = vadd.f32 %v2250, %v1402
        %v2252 = vadd.f32 %v2251, %v1406
        %v2253 = vadd.f32 %v2252, %v1412
        %v2254 = vadd.f32 %v2253, %v1416
        %v2255 = vadd.f32 %v2254, %v1422
        %v2256 = vadd.f32 %v2255, %v1426
        %v2257 = vadd.f32 %v2256, %v1432
        %v2258 = vadd.f32 %v2257, %v1436
        %v2259 = vrot.slane %v2258, 4
        %v2260 = vadd.f32 %v2258, %v2259
        %v2261 = vrot.slane %v2260, 2
        %v2262 = vadd.f32 %v2260, %v2261
        %v2263 = vrot.slane %v2262, 1
        %v2264 = vadd.f32 %v2262, %v2263
        %v2265 = vadd.f32 %v1473, %v1477
        %v2266 = vadd.f32 %v2265, %v1483
        %v2267 = vadd.f32 %v2266, %v1487
        %v2268 = vadd.f32 %v2267, %v1493
        %v2269 = vadd.f32 %v2268, %v1497
        %v2270 = vadd.f32 %v2269, %v1503
        %v2271 = vadd.f32 %v2270, %v1507
        %v2272 = vadd.f32 %v2271, %v1513
        %v2273 = vadd.f32 %v2272, %v1517
        %v2274 = vadd.f32 %v2273, %v1523
        %v2275 = vadd.f32 %v2274, %v1527
        %v2276 = vadd.f32 %v2275, %v1533
        %v2277 = vadd.f32 %v2276, %v1537
        %v2278 = vadd.f32 %v2277, %v1543
        %v2279 = vadd.f32 %v2278, %v1547
        %v2280 = vadd.f32 %v2279, %v1553
        %v2281 = vadd.f32 %v2280, %v1557
        %v2282 = vadd.f32 %v2281, %v1563
        %v2283 = vadd.f32 %v2282, %v1567
        %v2284 = vadd.f32 %v2283, %v1573
        %v2285 = vadd.f32 %v2284, %v1577
        %v2286 = vadd.f32 %v2285, %v1583
        %v2287 = vadd.f32 %v2286, %v1587
        %v2288 = vadd.f32 %v2287, %v1593
        %v2289 = vadd.f32 %v2288, %v1597
        %v2290 = vadd.f32 %v2289, %v1603
        %v2291 = vadd.f32 %v2290, %v1607
        %v2292 = vadd.f32 %v2291, %v1613
        %v2293 = vadd.f32 %v2292, %v1617
        %v2294 = vadd.f32 %v2293, %v1623
        %v2295 = vadd.f32 %v2294, %v1627
        %v2296 = vadd.f32 %v2295, %v1633
        %v2297 = vadd.f32 %v2296, %v1637
        %v2298 = vadd.f32 %v2297, %v1643
        %v2299 = vadd.f32 %v2298, %v1647
        %v2300 = vadd.f32 %v2299, %v1653
        %v2301 = vadd.f32 %v2300, %v1657
        %v2302 = vadd.f32 %v2301, %v1663
        %v2303 = vadd.f32 %v2302, %v1667
        %v2304 = vadd.f32 %v2303, %v1673
        %v2305 = vadd.f32 %v2304, %v1677
        %v2306 = vadd.f32 %v2305, %v1683
        %v2307 = vadd.f32 %v2306, %v1687
        %v2308 = vadd.f32 %v2307, %v1693
        %v2309 = vadd.f32 %v2308, %v1697
        %v2310 = vadd.f32 %v2309, %v1703
        %v2311 = vadd.f32 %v2310, %v1707
        %v2312 = vadd.f32 %v2311, %v1713
        %v2313 = vadd.f32 %v2312, %v1717
        %v2314 = vadd.f32 %v2313, %v1723
        %v2315 = vadd.f32 %v2314, %v1727
        %v2316 = vadd.f32 %v2315, %v1733
        %v2317 = vadd.f32 %v2316, %v1737
        %v2318 = vadd.f32 %v2317, %v1743
        %v2319 = vadd.f32 %v2318, %v1747
        %v2320 = vadd.f32 %v2319, %v1753
        %v2321 = vadd.f32 %v2320, %v1757
        %v2322 = vadd.f32 %v2321, %v1763
        %v2323 = vadd.f32 %v2322, %v1767
        %v2324 = vadd.f32 %v2323, %v1773
        %v2325 = vadd.f32 %v2324, %v1777
        %v2326 = vadd.f32 %v2325, %v1783
        %v2327 = vadd.f32 %v2326, %v1787
        %v2328 = vadd.f32 %v2327, %v1793
        %v2329 = vadd.f32 %v2328, %v1797
        %v2330 = vadd.f32 %v2329, %v1803
        %v2331 = vadd.f32 %v2330, %v1807
        %v2332 = vadd.f32 %v2331, %v1813
        %v2333 = vadd.f32 %v2332, %v1817
        %v2334 = vadd.f32 %v2333, %v1823
        %v2335 = vadd.f32 %v2334, %v1827
        %v2336 = vadd.f32 %v2335, %v1833
        %v2337 = vadd.f32 %v2336, %v1837
        %v2338 = vadd.f32 %v2337, %v1843
        %v2339 = vadd.f32 %v2338, %v1847
        %v2340 = vadd.f32 %v2339, %v1853
        %v2341 = vadd.f32 %v2340, %v1857
        %v2342 = vadd.f32 %v2341, %v1863
        %v2343 = vadd.f32 %v2342, %v1867
        %v2344 = vadd.f32 %v2343, %v1873
        %v2345 = vadd.f32 %v2344, %v1877
        %v2346 = vadd.f32 %v2345, %v1883
        %v2347 = vadd.f32 %v2346, %v1887
        %v2348 = vadd.f32 %v2347, %v1893
        %v2349 = vadd.f32 %v2348, %v1897
        %v2350 = vadd.f32 %v2349, %v1903
        %v2351 = vadd.f32 %v2350, %v1907
        %v2352 = vadd.f32 %v2351, %v1913
        %v2353 = vadd.f32 %v2352, %v1917
        %v2354 = vadd.f32 %v2353, %v1923
        %v2355 = vadd.f32 %v2354, %v1927
        %v2356 = vadd.f32 %v2355, %v1933
        %v2357 = vadd.f32 %v2356, %v1937
        %v2358 = vadd.f32 %v2357, %v1943
        %v2359 = vadd.f32 %v2358, %v1947
        %v2360 = vadd.f32 %v2359, %v1953
        %v2361 = vadd.f32 %v2360, %v1957
        %v2362 = vadd.f32 %v2361, %v1963
        %v2363 = vadd.f32 %v2362, %v1967
        %v2364 = vadd.f32 %v2363, %v1973
        %v2365 = vadd.f32 %v2364, %v1977
        %v2366 = vadd.f32 %v2365, %v1983
        %v2367 = vadd.f32 %v2366, %v1987
        %v2368 = vadd.f32 %v2367, %v1993
        %v2369 = vadd.f32 %v2368, %v1997
        %v2370 = vadd.f32 %v2369, %v2003
        %v2371 = vadd.f32 %v2370, %v2007
        %v2372 = vadd.f32 %v2371, %v2013
        %v2373 = vadd.f32 %v2372, %v2017
        %v2374 = vadd.f32 %v2373, %v2023
        %v2375 = vadd.f32 %v2374, %v2027
        %v2376 = vrot.slane %v2375, 4
        %v2377 = vadd.f32 %v2375, %v2376
        %v2378 = vrot.slane %v2377, 2
        %v2379 = vadd.f32 %v2377, %v2378
        %v2380 = vrot.slane %v2379, 1
        %v2381 = vadd.f32 %v2379, %v2380
        %v2382 = vadd.f32 %v1475, %v1479
        %v2383 = vadd.f32 %v2382, %v1485
        %v2384 = vadd.f32 %v2383, %v1489
        %v2385 = vadd.f32 %v2384, %v1495
        %v2386 = vadd.f32 %v2385, %v1499
        %v2387 = vadd.f32 %v2386, %v1505
        %v2388 = vadd.f32 %v2387, %v1509
        %v2389 = vadd.f32 %v2388, %v1515
        %v2390 = vadd.f32 %v2389, %v1519
        %v2391 = vadd.f32 %v2390, %v1525
        %v2392 = vadd.f32 %v2391, %v1529
        %v2393 = vadd.f32 %v2392, %v1535
        %v2394 = vadd.f32 %v2393, %v1539
        %v2395 = vadd.f32 %v2394, %v1545
        %v2396 = vadd.f32 %v2395, %v1549
        %v2397 = vadd.f32 %v2396, %v1555
        %v2398 = vadd.f32 %v2397, %v1559
        %v2399 = vadd.f32 %v2398, %v1565
        %v2400 = vadd.f32 %v2399, %v1569
        %v2401 = vadd.f32 %v2400, %v1575
        %v2402 = vadd.f32 %v2401, %v1579
        %v2403 = vadd.f32 %v2402, %v1585
        %v2404 = vadd.f32 %v2403, %v1589
        %v2405 = vadd.f32 %v2404, %v1595
        %v2406 = vadd.f32 %v2405, %v1599
        %v2407 = vadd.f32 %v2406, %v1605
        %v2408 = vadd.f32 %v2407, %v1609
        %v2409 = vadd.f32 %v2408, %v1615
        %v2410 = vadd.f32 %v2409, %v1619
        %v2411 = vadd.f32 %v2410, %v1625
        %v2412 = vadd.f32 %v2411, %v1629
        %v2413 = vadd.f32 %v2412, %v1635
        %v2414 = vadd.f32 %v2413, %v1639
        %v2415 = vadd.f32 %v2414, %v1645
        %v2416 = vadd.f32 %v2415, %v1649
        %v2417 = vadd.f32 %v2416, %v1655
        %v2418 = vadd.f32 %v2417, %v1659
        %v2419 = vadd.f32 %v2418, %v1665
        %v2420 = vadd.f32 %v2419, %v1669
        %v2421 = vadd.f32 %v2420, %v1675
        %v2422 = vadd.f32 %v2421, %v1679
        %v2423 = vadd.f32 %v2422, %v1685
        %v2424 = vadd.f32 %v2423, %v1689
        %v2425 = vadd.f32 %v2424, %v1695
        %v2426 = vadd.f32 %v2425, %v1699
        %v2427 = vadd.f32 %v2426, %v1705
        %v2428 = vadd.f32 %v2427, %v1709
        %v2429 = vadd.f32 %v2428, %v1715
        %v2430 = vadd.f32 %v2429, %v1719
        %v2431 = vadd.f32 %v2430, %v1725
        %v2432 = vadd.f32 %v2431, %v1729
        %v2433 = vadd.f32 %v2432, %v1735
        %v2434 = vadd.f32 %v2433, %v1739
        %v2435 = vadd.f32 %v2434, %v1745
        %v2436 = vadd.f32 %v2435, %v1749
        %v2437 = vadd.f32 %v2436, %v1755
        %v2438 = vadd.f32 %v2437, %v1759
        %v2439 = vadd.f32 %v2438, %v1765
        %v2440 = vadd.f32 %v2439, %v1769
        %v2441 = vadd.f32 %v2440, %v1775
        %v2442 = vadd.f32 %v2441, %v1779
        %v2443 = vadd.f32 %v2442, %v1785
        %v2444 = vadd.f32 %v2443, %v1789
        %v2445 = vadd.f32 %v2444, %v1795
        %v2446 = vadd.f32 %v2445, %v1799
        %v2447 = vadd.f32 %v2446, %v1805
        %v2448 = vadd.f32 %v2447, %v1809
        %v2449 = vadd.f32 %v2448, %v1815
        %v2450 = vadd.f32 %v2449, %v1819
        %v2451 = vadd.f32 %v2450, %v1825
        %v2452 = vadd.f32 %v2451, %v1829
        %v2453 = vadd.f32 %v2452, %v1835
        %v2454 = vadd.f32 %v2453, %v1839
        %v2455 = vadd.f32 %v2454, %v1845
        %v2456 = vadd.f32 %v2455, %v1849
        %v2457 = vadd.f32 %v2456, %v1855
        %v2458 = vadd.f32 %v2457, %v1859
        %v2459 = vadd.f32 %v2458, %v1865
        %v2460 = vadd.f32 %v2459, %v1869
        %v2461 = vadd.f32 %v2460, %v1875
        %v2462 = vadd.f32 %v2461, %v1879
        %v2463 = vadd.f32 %v2462, %v1885
        %v2464 = vadd.f32 %v2463, %v1889
        %v2465 = vadd.f32 %v2464, %v1895
        %v2466 = vadd.f32 %v2465, %v1899
        %v2467 = vadd.f32 %v2466, %v1905
        %v2468 = vadd.f32 %v2467, %v1909
        %v2469 = vadd.f32 %v2468, %v1915
        %v2470 = vadd.f32 %v2469, %v1919
        %v2471 = vadd.f32 %v2470, %v1925
        %v2472 = vadd.f32 %v2471, %v1929
        %v2473 = vadd.f32 %v2472, %v1935
        %v2474 = vadd.f32 %v2473, %v1939
        %v2475 = vadd.f32 %v2474, %v1945
        %v2476 = vadd.f32 %v2475, %v1949
        %v2477 = vadd.f32 %v2476, %v1955
        %v2478 = vadd.f32 %v2477, %v1959
        %v2479 = vadd.f32 %v2478, %v1965
        %v2480 = vadd.f32 %v2479, %v1969
        %v2481 = vadd.f32 %v2480, %v1975
        %v2482 = vadd.f32 %v2481, %v1979
        %v2483 = vadd.f32 %v2482, %v1985
        %v2484 = vadd.f32 %v2483, %v1989
        %v2485 = vadd.f32 %v2484, %v1995
        %v2486 = vadd.f32 %v2485, %v1999
        %v2487 = vadd.f32 %v2486, %v2005
        %v2488 = vadd.f32 %v2487, %v2009
        %v2489 = vadd.f32 %v2488, %v2015
        %v2490 = vadd.f32 %v2489, %v2019
        %v2491 = vadd.f32 %v2490, %v2025
        %v2492 = vadd.f32 %v2491, %v2029
        %v2493 = vrot.slane %v2492, 4
        %v2494 = vadd.f32 %v2492, %v2493
        %v2495 = vrot.slane %v2494, 2
        %v2496 = vadd.f32 %v2494, %v2495
        %v2497 = vrot.slane %v2496, 1
        %v2498 = vadd.f32 %v2496, %v2497
        %v2499 = vmul.f32 %v880, %v880
        %v2500 = vmul.f32 %v882, %v882
        %v2501 = vmul.f32 %v1473, %v1473
        %v2502 = vmul.f32 %v1475, %v1475
        %v2503 = vmul.f32 %v884, %v884
        %v2504 = vmul.f32 %v886, %v886
        %v2505 = vmul.f32 %v1477, %v1477
        %v2506 = vmul.f32 %v1479, %v1479
        %v2507 = vmul.f32 %v890, %v890
        %v2508 = vmul.f32 %v892, %v892
        %v2509 = vmul.f32 %v1483, %v1483
        %v2510 = vmul.f32 %v1485, %v1485
        %v2511 = vmul.f32 %v894, %v894
        %v2512 = vmul.f32 %v896, %v896
        %v2513 = vmul.f32 %v1487, %v1487
        %v2514 = vmul.f32 %v1489, %v1489
        %v2515 = vmul.f32 %v900, %v900
        %v2516 = vmul.f32 %v902, %v902
        %v2517 = vmul.f32 %v1493, %v1493
        %v2518 = vmul.f32 %v1495, %v1495
        %v2519 = vmul.f32 %v904, %v904
        %v2520 = vmul.f32 %v906, %v906
        %v2521 = vmul.f32 %v1497, %v1497
        %v2522 = vmul.f32 %v1499, %v1499
        %v2523 = vmul.f32 %v910, %v910
        %v2524 = vmul.f32 %v912, %v912
        %v2525 = vmul.f32 %v1503, %v1503
        %v2526 = vmul.f32 %v1505, %v1505
        %v2527 = vmul.f32 %v914, %v914
        %v2528 = vmul.f32 %v916, %v916
        %v2529 = vmul.f32 %v1507, %v1507
        %v2530 = vmul.f32 %v1509, %v1509
        %v2531 = vmul.f32 %v920, %v920
        %v2532 = vmul.f32 %v922, %v922
        %v2533 = vmul.f32 %v1513, %v1513
        %v2534 = vmul.f32 %v1515, %v1515
        %v2535 = vmul.f32 %v924, %v924
        %v2536 = vmul.f32 %v926, %v926
        %v2537 = vmul.f32 %v1517, %v1517
        %v2538 = vmul.f32 %v1519, %v1519
        %v2539 = vmul.f32 %v930, %v930
        %v2540 = vmul.f32 %v932, %v932
        %v2541 = vmul.f32 %v1523, %v1523
        %v2542 = vmul.f32 %v1525, %v1525
        %v2543 = vmul.f32 %v934, %v934
        %v2544 = vmul.f32 %v936, %v936
        %v2545 = vmul.f32 %v1527, %v1527
        %v2546 = vmul.f32 %v1529, %v1529
        %v2547 = vmul.f32 %v940, %v940
        %v2548 = vmul.f32 %v942, %v942
        %v2549 = vmul.f32 %v1533, %v1533
        %v2550 = vmul.f32 %v1535, %v1535
        %v2551 = vmul.f32 %v944, %v944
        %v2552 = vmul.f32 %v946, %v946
        %v2553 = vmul.f32 %v1537, %v1537
        %v2554 = vmul.f32 %v1539, %v1539
        %v2555 = vmul.f32 %v950, %v950
        %v2556 = vmul.f32 %v952, %v952
        %v2557 = vmul.f32 %v1543, %v1543
        %v2558 = vmul.f32 %v1545, %v1545
        %v2559 = vmul.f32 %v954, %v954
        %v2560 = vmul.f32 %v956, %v956
        %v2561 = vmul.f32 %v1547, %v1547
        %v2562 = vmul.f32 %v1549, %v1549
        %v2563 = vmul.f32 %v960, %v960
        %v2564 = vmul.f32 %v962, %v962
        %v2565 = vmul.f32 %v1553, %v1553
        %v2566 = vmul.f32 %v1555, %v1555
        %v2567 = vmul.f32 %v964, %v964
        %v2568 = vmul.f32 %v966, %v966
        %v2569 = vmul.f32 %v1557, %v1557
        %v2570 = vmul.f32 %v1559, %v1559
        %v2571 = vmul.f32 %v970, %v970
        %v2572 = vmul.f32 %v972, %v972
        %v2573 = vmul.f32 %v1563, %v1563
        %v2574 = vmul.f32 %v1565, %v1565
        %v2575 = vmul.f32 %v974, %v974
        %v2576 = vmul.f32 %v976, %v976
        %v2577 = vmul.f32 %v1567, %v1567
        %v2578 = vmul.f32 %v1569, %v1569
        %v2579 = vmul.f32 %v980, %v980
        %v2580 = vmul.f32 %v982, %v982
        %v2581 = vmul.f32 %v1573, %v1573
        %v2582 = vmul.f32 %v1575, %v1575
        %v2583 = vmul.f32 %v984, %v984
        %v2584 = vmul.f32 %v986, %v986
        %v2585 = vmul.f32 %v1577, %v1577
        %v2586 = vmul.f32 %v1579, %v1579
        %v2587 = vmul.f32 %v990, %v990
        %v2588 = vmul.f32 %v992, %v992
        %v2589 = vmul.f32 %v1583, %v1583
        %v2590 = vmul.f32 %v1585, %v1585
        %v2591 = vmul.f32 %v994, %v994
        %v2592 = vmul.f32 %v996, %v996
        %v2593 = vmul.f32 %v1587, %v1587
        %v2594 = vmul.f32 %v1589, %v1589
        %v2595 = vmul.f32 %v1000, %v1000
        %v2596 = vmul.f32 %v1002, %v1002
        %v2597 = vmul.f32 %v1593, %v1593
        %v2598 = vmul.f32 %v1595, %v1595
        %v2599 = vmul.f32 %v1004, %v1004
        %v2600 = vmul.f32 %v1006, %v1006
        %v2601 = vmul.f32 %v1597, %v1597
        %v2602 = vmul.f32 %v1599, %v1599
        %v2603 = vmul.f32 %v1010, %v1010
        %v2604 = vmul.f32 %v1012, %v1012
        %v2605 = vmul.f32 %v1603, %v1603
        %v2606 = vmul.f32 %v1605, %v1605
        %v2607 = vmul.f32 %v1014, %v1014
        %v2608 = vmul.f32 %v1016, %v1016
        %v2609 = vmul.f32 %v1607, %v1607
        %v2610 = vmul.f32 %v1609, %v1609
        %v2611 = vmul.f32 %v1020, %v1020
        %v2612 = vmul.f32 %v1022, %v1022
        %v2613 = vmul.f32 %v1613, %v1613
        %v2614 = vmul.f32 %v1615, %v1615
        %v2615 = vmul.f32 %v1024, %v1024
        %v2616 = vmul.f32 %v1026, %v1026
        %v2617 = vmul.f32 %v1617, %v1617
        %v2618 = vmul.f32 %v1619, %v1619
        %v2619 = vmul.f32 %v1030, %v1030
        %v2620 = vmul.f32 %v1032, %v1032
        %v2621 = vmul.f32 %v1623, %v1623
        %v2622 = vmul.f32 %v1625, %v1625
        %v2623 = vmul.f32 %v1034, %v1034
        %v2624 = vmul.f32 %v1036, %v1036
        %v2625 = vmul.f32 %v1627, %v1627
        %v2626 = vmul.f32 %v1629, %v1629
        %v2627 = vmul.f32 %v1040, %v1040
        %v2628 = vmul.f32 %v1042, %v1042
        %v2629 = vmul.f32 %v1633, %v1633
        %v2630 = vmul.f32 %v1635, %v1635
        %v2631 = vmul.f32 %v1044, %v1044
        %v2632 = vmul.f32 %v1046, %v1046
        %v2633 = vmul.f32 %v1637, %v1637
        %v2634 = vmul.f32 %v1639, %v1639
        %v2635 = vmul.f32 %v1050, %v1050
        %v2636 = vmul.f32 %v1052, %v1052
        %v2637 = vmul.f32 %v1643, %v1643
        %v2638 = vmul.f32 %v1645, %v1645
        %v2639 = vmul.f32 %v1054, %v1054
        %v2640 = vmul.f32 %v1056, %v1056
        %v2641 = vmul.f32 %v1647, %v1647
        %v2642 = vmul.f32 %v1649, %v1649
        %v2643 = vmul.f32 %v1060, %v1060
        %v2644 = vmul.f32 %v1062, %v1062
        %v2645 = vmul.f32 %v1653, %v1653
        %v2646 = vmul.f32 %v1655, %v1655
        %v2647 = vmul.f32 %v1064, %v1064
        %v2648 = vmul.f32 %v1066, %v1066
        %v2649 = vmul.f32 %v1657, %v1657
        %v2650 = vmul.f32 %v1659, %v1659
        %v2651 = vmul.f32 %v1070, %v1070
        %v2652 = vmul.f32 %v1072, %v1072
        %v2653 = vmul.f32 %v1663, %v1663
        %v2654 = vmul.f32 %v1665, %v1665
        %v2655 = vmul.f32 %v1074, %v1074
        %v2656 = vmul.f32 %v1076, %v1076
        %v2657 = vmul.f32 %v1667, %v1667
        %v2658 = vmul.f32 %v1669, %v1669
        %v2659 = vmul.f32 %v1080, %v1080
        %v2660 = vmul.f32 %v1082, %v1082
        %v2661 = vmul.f32 %v1673, %v1673
        %v2662 = vmul.f32 %v1675, %v1675
        %v2663 = vmul.f32 %v1084, %v1084
        %v2664 = vmul.f32 %v1086, %v1086
        %v2665 = vmul.f32 %v1677, %v1677
        %v2666 = vmul.f32 %v1679, %v1679
        %v2667 = vmul.f32 %v1090, %v1090
        %v2668 = vmul.f32 %v1092, %v1092
        %v2669 = vmul.f32 %v1683, %v1683
        %v2670 = vmul.f32 %v1685, %v1685
        %v2671 = vmul.f32 %v1094, %v1094
        %v2672 = vmul.f32 %v1096, %v1096
        %v2673 = vmul.f32 %v1687, %v1687
        %v2674 = vmul.f32 %v1689, %v1689
        %v2675 = vmul.f32 %v1100, %v1100
        %v2676 = vmul.f32 %v1102, %v1102
        %v2677 = vmul.f32 %v1693, %v1693
        %v2678 = vmul.f32 %v1695, %v1695
        %v2679 = vmul.f32 %v1104, %v1104
        %v2680 = vmul.f32 %v1106, %v1106
        %v2681 = vmul.f32 %v1697, %v1697
        %v2682 = vmul.f32 %v1699, %v1699
        %v2683 = vmul.f32 %v1110, %v1110
        %v2684 = vmul.f32 %v1112, %v1112
        %v2685 = vmul.f32 %v1703, %v1703
        %v2686 = vmul.f32 %v1705, %v1705
        %v2687 = vmul.f32 %v1114, %v1114
        %v2688 = vmul.f32 %v1116, %v1116
        %v2689 = vmul.f32 %v1707, %v1707
        %v2690 = vmul.f32 %v1709, %v1709
        %v2691 = vmul.f32 %v1120, %v1120
        %v2692 = vmul.f32 %v1122, %v1122
        %v2693 = vmul.f32 %v1713, %v1713
        %v2694 = vmul.f32 %v1715, %v1715
        %v2695 = vmul.f32 %v1124, %v1124
        %v2696 = vmul.f32 %v1126, %v1126
        %v2697 = vmul.f32 %v1717, %v1717
        %v2698 = vmul.f32 %v1719, %v1719
        %v2699 = vmul.f32 %v1130, %v1130
        %v2700 = vmul.f32 %v1132, %v1132
        %v2701 = vmul.f32 %v1723, %v1723
        %v2702 = vmul.f32 %v1725, %v1725
        %v2703 = vmul.f32 %v1134, %v1134
        %v2704 = vmul.f32 %v1136, %v1136
        %v2705 = vmul.f32 %v1727, %v1727
        %v2706 = vmul.f32 %v1729, %v1729
        %v2707 = vmul.f32 %v1140, %v1140
        %v2708 = vmul.f32 %v1142, %v1142
        %v2709 = vmul.f32 %v1733, %v1733
        %v2710 = vmul.f32 %v1735, %v1735
        %v2711 = vmul.f32 %v1144, %v1144
        %v2712 = vmul.f32 %v1146, %v1146
        %v2713 = vmul.f32 %v1737, %v1737
        %v2714 = vmul.f32 %v1739, %v1739
        %v2715 = vmul.f32 %v1150, %v1150
        %v2716 = vmul.f32 %v1152, %v1152
        %v2717 = vmul.f32 %v1743, %v1743
        %v2718 = vmul.f32 %v1745, %v1745
        %v2719 = vmul.f32 %v1154, %v1154
        %v2720 = vmul.f32 %v1156, %v1156
        %v2721 = vmul.f32 %v1747, %v1747
        %v2722 = vmul.f32 %v1749, %v1749
        %v2723 = vmul.f32 %v1160, %v1160
        %v2724 = vmul.f32 %v1162, %v1162
        %v2725 = vmul.f32 %v1753, %v1753
        %v2726 = vmul.f32 %v1755, %v1755
        %v2727 = vmul.f32 %v1164, %v1164
        %v2728 = vmul.f32 %v1166, %v1166
        %v2729 = vmul.f32 %v1757, %v1757
        %v2730 = vmul.f32 %v1759, %v1759
        %v2731 = vmul.f32 %v1170, %v1170
        %v2732 = vmul.f32 %v1172, %v1172
        %v2733 = vmul.f32 %v1763, %v1763
        %v2734 = vmul.f32 %v1765, %v1765
        %v2735 = vmul.f32 %v1174, %v1174
        %v2736 = vmul.f32 %v1176, %v1176
        %v2737 = vmul.f32 %v1767, %v1767
        %v2738 = vmul.f32 %v1769, %v1769
        %v2739 = vmul.f32 %v1180, %v1180
        %v2740 = vmul.f32 %v1182, %v1182
        %v2741 = vmul.f32 %v1773, %v1773
        %v2742 = vmul.f32 %v1775, %v1775
        %v2743 = vmul.f32 %v1184, %v1184
        %v2744 = vmul.f32 %v1186, %v1186
        %v2745 = vmul.f32 %v1777, %v1777
        %v2746 = vmul.f32 %v1779, %v1779
        %v2747 = vmul.f32 %v1190, %v1190
        %v2748 = vmul.f32 %v1192, %v1192
        %v2749 = vmul.f32 %v1783, %v1783
        %v2750 = vmul.f32 %v1785, %v1785
        %v2751 = vmul.f32 %v1194, %v1194
        %v2752 = vmul.f32 %v1196, %v1196
        %v2753 = vmul.f32 %v1787, %v1787
        %v2754 = vmul.f32 %v1789, %v1789
        %v2755 = vmul.f32 %v1200, %v1200
        %v2756 = vmul.f32 %v1202, %v1202
        %v2757 = vmul.f32 %v1793, %v1793
        %v2758 = vmul.f32 %v1795, %v1795
        %v2759 = vmul.f32 %v1204, %v1204
        %v2760 = vmul.f32 %v1206, %v1206
        %v2761 = vmul.f32 %v1797, %v1797
        %v2762 = vmul.f32 %v1799, %v1799
        %v2763 = vmul.f32 %v1210, %v1210
        %v2764 = vmul.f32 %v1212, %v1212
        %v2765 = vmul.f32 %v1803, %v1803
        %v2766 = vmul.f32 %v1805, %v1805
        %v2767 = vmul.f32 %v1214, %v1214
        %v2768 = vmul.f32 %v1216, %v1216
        %v2769 = vmul.f32 %v1807, %v1807
        %v2770 = vmul.f32 %v1809, %v1809
        %v2771 = vmul.f32 %v1220, %v1220
        %v2772 = vmul.f32 %v1222, %v1222
        %v2773 = vmul.f32 %v1813, %v1813
        %v2774 = vmul.f32 %v1815, %v1815
        %v2775 = vmul.f32 %v1224, %v1224
        %v2776 = vmul.f32 %v1226, %v1226
        %v2777 = vmul.f32 %v1817, %v1817
        %v2778 = vmul.f32 %v1819, %v1819
        %v2779 = vmul.f32 %v1230, %v1230
        %v2780 = vmul.f32 %v1232, %v1232
        %v2781 = vmul.f32 %v1823, %v1823
        %v2782 = vmul.f32 %v1825, %v1825
        %v2783 = vmul.f32 %v1234, %v1234
        %v2784 = vmul.f32 %v1236, %v1236
        %v2785 = vmul.f32 %v1827, %v1827
        %v2786 = vmul.f32 %v1829, %v1829
        %v2787 = vmul.f32 %v1240, %v1240
        %v2788 = vmul.f32 %v1242, %v1242
        %v2789 = vmul.f32 %v1833, %v1833
        %v2790 = vmul.f32 %v1835, %v1835
        %v2791 = vmul.f32 %v1244, %v1244
        %v2792 = vmul.f32 %v1246, %v1246
        %v2793 = vmul.f32 %v1837, %v1837
        %v2794 = vmul.f32 %v1839, %v1839
        %v2795 = vmul.f32 %v1250, %v1250
        %v2796 = vmul.f32 %v1252, %v1252
        %v2797 = vmul.f32 %v1843, %v1843
        %v2798 = vmul.f32 %v1845, %v1845
        %v2799 = vmul.f32 %v1254, %v1254
        %v2800 = vmul.f32 %v1256, %v1256
        %v2801 = vmul.f32 %v1847, %v1847
        %v2802 = vmul.f32 %v1849, %v1849
        %v2803 = vmul.f32 %v1260, %v1260
        %v2804 = vmul.f32 %v1262, %v1262
        %v2805 = vmul.f32 %v1853, %v1853
        %v2806 = vmul.f32 %v1855, %v1855
        %v2807 = vmul.f32 %v1264, %v1264
        %v2808 = vmul.f32 %v1266, %v1266
        %v2809 = vmul.f32 %v1857, %v1857
        %v2810 = vmul.f32 %v1859, %v1859
        %v2811 = vmul.f32 %v1270, %v1270
        %v2812 = vmul.f32 %v1272, %v1272
        %v2813 = vmul.f32 %v1863, %v1863
        %v2814 = vmul.f32 %v1865, %v1865
        %v2815 = vmul.f32 %v1274, %v1274
        %v2816 = vmul.f32 %v1276, %v1276
        %v2817 = vmul.f32 %v1867, %v1867
        %v2818 = vmul.f32 %v1869, %v1869
        %v2819 = vmul.f32 %v1280, %v1280
        %v2820 = vmul.f32 %v1282, %v1282
        %v2821 = vmul.f32 %v1873, %v1873
        %v2822 = vmul.f32 %v1875, %v1875
        %v2823 = vmul.f32 %v1284, %v1284
        %v2824 = vmul.f32 %v1286, %v1286
        %v2825 = vmul.f32 %v1877, %v1877
        %v2826 = vmul.f32 %v1879, %v1879
        %v2827 = vmul.f32 %v1290, %v1290
        %v2828 = vmul.f32 %v1292, %v1292
        %v2829 = vmul.f32 %v1883, %v1883
        %v2830 = vmul.f32 %v1885, %v1885
        %v2831 = vmul.f32 %v1294, %v1294
        %v2832 = vmul.f32 %v1296, %v1296
        %v2833 = vmul.f32 %v1887, %v1887
        %v2834 = vmul.f32 %v1889, %v1889
        %v2835 = vmul.f32 %v1300, %v1300
        %v2836 = vmul.f32 %v1302, %v1302
        %v2837 = vmul.f32 %v1893, %v1893
        %v2838 = vmul.f32 %v1895, %v1895
        %v2839 = vmul.f32 %v1304, %v1304
        %v2840 = vmul.f32 %v1306, %v1306
        %v2841 = vmul.f32 %v1897, %v1897
        %v2842 = vmul.f32 %v1899, %v1899
        %v2843 = vmul.f32 %v1310, %v1310
        %v2844 = vmul.f32 %v1312, %v1312
        %v2845 = vmul.f32 %v1903, %v1903
        %v2846 = vmul.f32 %v1905, %v1905
        %v2847 = vmul.f32 %v1314, %v1314
        %v2848 = vmul.f32 %v1316, %v1316
        %v2849 = vmul.f32 %v1907, %v1907
        %v2850 = vmul.f32 %v1909, %v1909
        %v2851 = vmul.f32 %v1320, %v1320
        %v2852 = vmul.f32 %v1322, %v1322
        %v2853 = vmul.f32 %v1913, %v1913
        %v2854 = vmul.f32 %v1915, %v1915
        %v2855 = vmul.f32 %v1324, %v1324
        %v2856 = vmul.f32 %v1326, %v1326
        %v2857 = vmul.f32 %v1917, %v1917
        %v2858 = vmul.f32 %v1919, %v1919
        %v2859 = vmul.f32 %v1330, %v1330
        %v2860 = vmul.f32 %v1332, %v1332
        %v2861 = vmul.f32 %v1923, %v1923
        %v2862 = vmul.f32 %v1925, %v1925
        %v2863 = vmul.f32 %v1334, %v1334
        %v2864 = vmul.f32 %v1336, %v1336
        %v2865 = vmul.f32 %v1927, %v1927
        %v2866 = vmul.f32 %v1929, %v1929
        %v2867 = vmul.f32 %v1340, %v1340
        %v2868 = vmul.f32 %v1342, %v1342
        %v2869 = vmul.f32 %v1933, %v1933
        %v2870 = vmul.f32 %v1935, %v1935
        %v2871 = vmul.f32 %v1344, %v1344
        %v2872 = vmul.f32 %v1346, %v1346
        %v2873 = vmul.f32 %v1937, %v1937
        %v2874 = vmul.f32 %v1939, %v1939
        %v2875 = vmul.f32 %v1350, %v1350
        %v2876 = vmul.f32 %v1352, %v1352
        %v2877 = vmul.f32 %v1943, %v1943
        %v2878 = vmul.f32 %v1945, %v1945
        %v2879 = vmul.f32 %v1354, %v1354
        %v2880 = vmul.f32 %v1356, %v1356
        %v2881 = vmul.f32 %v1947, %v1947
        %v2882 = vmul.f32 %v1949, %v1949
        %v2883 = vmul.f32 %v1360, %v1360
        %v2884 = vmul.f32 %v1362, %v1362
        %v2885 = vmul.f32 %v1953, %v1953
        %v2886 = vmul.f32 %v1955, %v1955
        %v2887 = vmul.f32 %v1364, %v1364
        %v2888 = vmul.f32 %v1366, %v1366
        %v2889 = vmul.f32 %v1957, %v1957
        %v2890 = vmul.f32 %v1959, %v1959
        %v2891 = vmul.f32 %v1370, %v1370
        %v2892 = vmul.f32 %v1372, %v1372
        %v2893 = vmul.f32 %v1963, %v1963
        %v2894 = vmul.f32 %v1965, %v1965
        %v2895 = vmul.f32 %v1374, %v1374
        %v2896 = vmul.f32 %v1376, %v1376
        %v2897 = vmul.f32 %v1967, %v1967
        %v2898 = vmul.f32 %v1969, %v1969
        %v2899 = vmul.f32 %v1380, %v1380
        %v2900 = vmul.f32 %v1382, %v1382
        %v2901 = vmul.f32 %v1973, %v1973
        %v2902 = vmul.f32 %v1975, %v1975
        %v2903 = vmul.f32 %v1384, %v1384
        %v2904 = vmul.f32 %v1386, %v1386
        %v2905 = vmul.f32 %v1977, %v1977
        %v2906 = vmul.f32 %v1979, %v1979
        %v2907 = vmul.f32 %v1390, %v1390
        %v2908 = vmul.f32 %v1392, %v1392
        %v2909 = vmul.f32 %v1983, %v1983
        %v2910 = vmul.f32 %v1985, %v1985
        %v2911 = vmul.f32 %v1394, %v1394
        %v2912 = vmul.f32 %v1396, %v1396
        %v2913 = vmul.f32 %v1987, %v1987
        %v2914 = vmul.f32 %v1989, %v1989
        %v2915 = vmul.f32 %v1400, %v1400
        %v2916 = vmul.f32 %v1402, %v1402
        %v2917 = vmul.f32 %v1993, %v1993
        %v2918 = vmul.f32 %v1995, %v1995
        %v2919 = vmul.f32 %v1404, %v1404
        %v2920 = vmul.f32 %v1406, %v1406
        %v2921 = vmul.f32 %v1997, %v1997
        %v2922 = vmul.f32 %v1999, %v1999
        %v2923 = vmul.f32 %v1410, %v1410
        %v2924 = vmul.f32 %v1412, %v1412
        %v2925 = vmul.f32 %v2003, %v2003
        %v2926 = vmul.f32 %v2005, %v2005
        %v2927 = vmul.f32 %v1414, %v1414
        %v2928 = vmul.f32 %v1416, %v1416
        %v2929 = vmul.f32 %v2007, %v2007
        %v2930 = vmul.f32 %v2009, %v2009
        %v2931 = vmul.f32 %v1420, %v1420
        %v2932 = vmul.f32 %v1422, %v1422
        %v2933 = vmul.f32 %v2013, %v2013
        %v2934 = vmul.f32 %v2015, %v2015
        %v2935 = vmul.f32 %v1424, %v1424
        %v2936 = vmul.f32 %v1426, %v1426
        %v2937 = vmul.f32 %v2017, %v2017
        %v2938 = vmul.f32 %v2019, %v2019
        %v2939 = vmul.f32 %v1430, %v1430
        %v2940 = vmul.f32 %v1432, %v1432
        %v2941 = vmul.f32 %v2023, %v2023
        %v2942 = vmul.f32 %v2025, %v2025
        %v2943 = vmul.f32 %v1434, %v1434
        %v2944 = vmul.f32 %v1436, %v1436
        %v2945 = vmul.f32 %v2027, %v2027
        %v2946 = vmul.f32 %v2029, %v2029
        %v2947 = vadd.f32 %v2499, %v2503
        %v2948 = vadd.f32 %v2947, %v2507
        %v2949 = vadd.f32 %v2948, %v2511
        %v2950 = vadd.f32 %v2949, %v2515
        %v2951 = vadd.f32 %v2950, %v2519
        %v2952 = vadd.f32 %v2951, %v2523
        %v2953 = vadd.f32 %v2952, %v2527
        %v2954 = vadd.f32 %v2953, %v2531
        %v2955 = vadd.f32 %v2954, %v2535
        %v2956 = vadd.f32 %v2955, %v2539
        %v2957 = vadd.f32 %v2956, %v2543
        %v2958 = vadd.f32 %v2957, %v2547
        %v2959 = vadd.f32 %v2958, %v2551
        %v2960 = vadd.f32 %v2959, %v2555
        %v2961 = vadd.f32 %v2960, %v2559
        %v2962 = vadd.f32 %v2961, %v2563
        %v2963 = vadd.f32 %v2962, %v2567
        %v2964 = vadd.f32 %v2963, %v2571
        %v2965 = vadd.f32 %v2964, %v2575
        %v2966 = vadd.f32 %v2965, %v2579
        %v2967 = vadd.f32 %v2966, %v2583
        %v2968 = vadd.f32 %v2967, %v2587
        %v2969 = vadd.f32 %v2968, %v2591
        %v2970 = vadd.f32 %v2969, %v2595
        %v2971 = vadd.f32 %v2970, %v2599
        %v2972 = vadd.f32 %v2971, %v2603
        %v2973 = vadd.f32 %v2972, %v2607
        %v2974 = vadd.f32 %v2973, %v2611
        %v2975 = vadd.f32 %v2974, %v2615
        %v2976 = vadd.f32 %v2975, %v2619
        %v2977 = vadd.f32 %v2976, %v2623
        %v2978 = vadd.f32 %v2977, %v2627
        %v2979 = vadd.f32 %v2978, %v2631
        %v2980 = vadd.f32 %v2979, %v2635
        %v2981 = vadd.f32 %v2980, %v2639
        %v2982 = vadd.f32 %v2981, %v2643
        %v2983 = vadd.f32 %v2982, %v2647
        %v2984 = vadd.f32 %v2983, %v2651
        %v2985 = vadd.f32 %v2984, %v2655
        %v2986 = vadd.f32 %v2985, %v2659
        %v2987 = vadd.f32 %v2986, %v2663
        %v2988 = vadd.f32 %v2987, %v2667
        %v2989 = vadd.f32 %v2988, %v2671
        %v2990 = vadd.f32 %v2989, %v2675
        %v2991 = vadd.f32 %v2990, %v2679
        %v2992 = vadd.f32 %v2991, %v2683
        %v2993 = vadd.f32 %v2992, %v2687
        %v2994 = vadd.f32 %v2993, %v2691
        %v2995 = vadd.f32 %v2994, %v2695
        %v2996 = vadd.f32 %v2995, %v2699
        %v2997 = vadd.f32 %v2996, %v2703
        %v2998 = vadd.f32 %v2997, %v2707
        %v2999 = vadd.f32 %v2998, %v2711
        %v3000 = vadd.f32 %v2999, %v2715
        %v3001 = vadd.f32 %v3000, %v2719
        %v3002 = vadd.f32 %v3001, %v2723
        %v3003 = vadd.f32 %v3002, %v2727
        %v3004 = vadd.f32 %v3003, %v2731
        %v3005 = vadd.f32 %v3004, %v2735
        %v3006 = vadd.f32 %v3005, %v2739
        %v3007 = vadd.f32 %v3006, %v2743
        %v3008 = vadd.f32 %v3007, %v2747
        %v3009 = vadd.f32 %v3008, %v2751
        %v3010 = vadd.f32 %v3009, %v2755
        %v3011 = vadd.f32 %v3010, %v2759
        %v3012 = vadd.f32 %v3011, %v2763
        %v3013 = vadd.f32 %v3012, %v2767
        %v3014 = vadd.f32 %v3013, %v2771
        %v3015 = vadd.f32 %v3014, %v2775
        %v3016 = vadd.f32 %v3015, %v2779
        %v3017 = vadd.f32 %v3016, %v2783
        %v3018 = vadd.f32 %v3017, %v2787
        %v3019 = vadd.f32 %v3018, %v2791
        %v3020 = vadd.f32 %v3019, %v2795
        %v3021 = vadd.f32 %v3020, %v2799
        %v3022 = vadd.f32 %v3021, %v2803
        %v3023 = vadd.f32 %v3022, %v2807
        %v3024 = vadd.f32 %v3023, %v2811
        %v3025 = vadd.f32 %v3024, %v2815
        %v3026 = vadd.f32 %v3025, %v2819
        %v3027 = vadd.f32 %v3026, %v2823
        %v3028 = vadd.f32 %v3027, %v2827
        %v3029 = vadd.f32 %v3028, %v2831
        %v3030 = vadd.f32 %v3029, %v2835
        %v3031 = vadd.f32 %v3030, %v2839
        %v3032 = vadd.f32 %v3031, %v2843
        %v3033 = vadd.f32 %v3032, %v2847
        %v3034 = vadd.f32 %v3033, %v2851
        %v3035 = vadd.f32 %v3034, %v2855
        %v3036 = vadd.f32 %v3035, %v2859
        %v3037 = vadd.f32 %v3036, %v2863
        %v3038 = vadd.f32 %v3037, %v2867
        %v3039 = vadd.f32 %v3038, %v2871
        %v3040 = vadd.f32 %v3039, %v2875
        %v3041 = vadd.f32 %v3040, %v2879
        %v3042 = vadd.f32 %v3041, %v2883
        %v3043 = vadd.f32 %v3042, %v2887
        %v3044 = vadd.f32 %v3043, %v2891
        %v3045 = vadd.f32 %v3044, %v2895
        %v3046 = vadd.f32 %v3045, %v2899
        %v3047 = vadd.f32 %v3046, %v2903
        %v3048 = vadd.f32 %v3047, %v2907
        %v3049 = vadd.f32 %v3048, %v2911
        %v3050 = vadd.f32 %v3049, %v2915
        %v3051 = vadd.f32 %v3050, %v2919
        %v3052 = vadd.f32 %v3051, %v2923
        %v3053 = vadd.f32 %v3052, %v2927
        %v3054 = vadd.f32 %v3053, %v2931
        %v3055 = vadd.f32 %v3054, %v2935
        %v3056 = vadd.f32 %v3055, %v2939
        %v3057 = vadd.f32 %v3056, %v2943
        %v3058 = vrot.slane %v3057, 4
        %v3059 = vadd.f32 %v3057, %v3058
        %v3060 = vrot.slane %v3059, 2
        %v3061 = vadd.f32 %v3059, %v3060
        %v3062 = vrot.slane %v3061, 1
        %v3063 = vadd.f32 %v3061, %v3062
        %v3064 = vadd.f32 %v2500, %v2504
        %v3065 = vadd.f32 %v3064, %v2508
        %v3066 = vadd.f32 %v3065, %v2512
        %v3067 = vadd.f32 %v3066, %v2516
        %v3068 = vadd.f32 %v3067, %v2520
        %v3069 = vadd.f32 %v3068, %v2524
        %v3070 = vadd.f32 %v3069, %v2528
        %v3071 = vadd.f32 %v3070, %v2532
        %v3072 = vadd.f32 %v3071, %v2536
        %v3073 = vadd.f32 %v3072, %v2540
        %v3074 = vadd.f32 %v3073, %v2544
        %v3075 = vadd.f32 %v3074, %v2548
        %v3076 = vadd.f32 %v3075, %v2552
        %v3077 = vadd.f32 %v3076, %v2556
        %v3078 = vadd.f32 %v3077, %v2560
        %v3079 = vadd.f32 %v3078, %v2564
        %v3080 = vadd.f32 %v3079, %v2568
        %v3081 = vadd.f32 %v3080, %v2572
        %v3082 = vadd.f32 %v3081, %v2576
        %v3083 = vadd.f32 %v3082, %v2580
        %v3084 = vadd.f32 %v3083, %v2584
        %v3085 = vadd.f32 %v3084, %v2588
        %v3086 = vadd.f32 %v3085, %v2592
        %v3087 = vadd.f32 %v3086, %v2596
        %v3088 = vadd.f32 %v3087, %v2600
        %v3089 = vadd.f32 %v3088, %v2604
        %v3090 = vadd.f32 %v3089, %v2608
        %v3091 = vadd.f32 %v3090, %v2612
        %v3092 = vadd.f32 %v3091, %v2616
        %v3093 = vadd.f32 %v3092, %v2620
        %v3094 = vadd.f32 %v3093, %v2624
        %v3095 = vadd.f32 %v3094, %v2628
        %v3096 = vadd.f32 %v3095, %v2632
        %v3097 = vadd.f32 %v3096, %v2636
        %v3098 = vadd.f32 %v3097, %v2640
        %v3099 = vadd.f32 %v3098, %v2644
        %v3100 = vadd.f32 %v3099, %v2648
        %v3101 = vadd.f32 %v3100, %v2652
        %v3102 = vadd.f32 %v3101, %v2656
        %v3103 = vadd.f32 %v3102, %v2660
        %v3104 = vadd.f32 %v3103, %v2664
        %v3105 = vadd.f32 %v3104, %v2668
        %v3106 = vadd.f32 %v3105, %v2672
        %v3107 = vadd.f32 %v3106, %v2676
        %v3108 = vadd.f32 %v3107, %v2680
        %v3109 = vadd.f32 %v3108, %v2684
        %v3110 = vadd.f32 %v3109, %v2688
        %v3111 = vadd.f32 %v3110, %v2692
        %v3112 = vadd.f32 %v3111, %v2696
        %v3113 = vadd.f32 %v3112, %v2700
        %v3114 = vadd.f32 %v3113, %v2704
        %v3115 = vadd.f32 %v3114, %v2708
        %v3116 = vadd.f32 %v3115, %v2712
        %v3117 = vadd.f32 %v3116, %v2716
        %v3118 = vadd.f32 %v3117, %v2720
        %v3119 = vadd.f32 %v3118, %v2724
        %v3120 = vadd.f32 %v3119, %v2728
        %v3121 = vadd.f32 %v3120, %v2732
        %v3122 = vadd.f32 %v3121, %v2736
        %v3123 = vadd.f32 %v3122, %v2740
        %v3124 = vadd.f32 %v3123, %v2744
        %v3125 = vadd.f32 %v3124, %v2748
        %v3126 = vadd.f32 %v3125, %v2752
        %v3127 = vadd.f32 %v3126, %v2756
        %v3128 = vadd.f32 %v3127, %v2760
        %v3129 = vadd.f32 %v3128, %v2764
        %v3130 = vadd.f32 %v3129, %v2768
        %v3131 = vadd.f32 %v3130, %v2772
        %v3132 = vadd.f32 %v3131, %v2776
        %v3133 = vadd.f32 %v3132, %v2780
        %v3134 = vadd.f32 %v3133, %v2784
        %v3135 = vadd.f32 %v3134, %v2788
        %v3136 = vadd.f32 %v3135, %v2792
        %v3137 = vadd.f32 %v3136, %v2796
        %v3138 = vadd.f32 %v3137, %v2800
        %v3139 = vadd.f32 %v3138, %v2804
        %v3140 = vadd.f32 %v3139, %v2808
        %v3141 = vadd.f32 %v3140, %v2812
        %v3142 = vadd.f32 %v3141, %v2816
        %v3143 = vadd.f32 %v3142, %v2820
        %v3144 = vadd.f32 %v3143, %v2824
        %v3145 = vadd.f32 %v3144, %v2828
        %v3146 = vadd.f32 %v3145, %v2832
        %v3147 = vadd.f32 %v3146, %v2836
        %v3148 = vadd.f32 %v3147, %v2840
        %v3149 = vadd.f32 %v3148, %v2844
        %v3150 = vadd.f32 %v3149, %v2848
        %v3151 = vadd.f32 %v3150, %v2852
        %v3152 = vadd.f32 %v3151, %v2856
        %v3153 = vadd.f32 %v3152, %v2860
        %v3154 = vadd.f32 %v3153, %v2864
        %v3155 = vadd.f32 %v3154, %v2868
        %v3156 = vadd.f32 %v3155, %v2872
        %v3157 = vadd.f32 %v3156, %v2876
        %v3158 = vadd.f32 %v3157, %v2880
        %v3159 = vadd.f32 %v3158, %v2884
        %v3160 = vadd.f32 %v3159, %v2888
        %v3161 = vadd.f32 %v3160, %v2892
        %v3162 = vadd.f32 %v3161, %v2896
        %v3163 = vadd.f32 %v3162, %v2900
        %v3164 = vadd.f32 %v3163, %v2904
        %v3165 = vadd.f32 %v3164, %v2908
        %v3166 = vadd.f32 %v3165, %v2912
        %v3167 = vadd.f32 %v3166, %v2916
        %v3168 = vadd.f32 %v3167, %v2920
        %v3169 = vadd.f32 %v3168, %v2924
        %v3170 = vadd.f32 %v3169, %v2928
        %v3171 = vadd.f32 %v3170, %v2932
        %v3172 = vadd.f32 %v3171, %v2936
        %v3173 = vadd.f32 %v3172, %v2940
        %v3174 = vadd.f32 %v3173, %v2944
        %v3175 = vrot.slane %v3174, 4
        %v3176 = vadd.f32 %v3174, %v3175
        %v3177 = vrot.slane %v3176, 2
        %v3178 = vadd.f32 %v3176, %v3177
        %v3179 = vrot.slane %v3178, 1
        %v3180 = vadd.f32 %v3178, %v3179
        %v3181 = vadd.f32 %v2501, %v2505
        %v3182 = vadd.f32 %v3181, %v2509
        %v3183 = vadd.f32 %v3182, %v2513
        %v3184 = vadd.f32 %v3183, %v2517
        %v3185 = vadd.f32 %v3184, %v2521
        %v3186 = vadd.f32 %v3185, %v2525
        %v3187 = vadd.f32 %v3186, %v2529
        %v3188 = vadd.f32 %v3187, %v2533
        %v3189 = vadd.f32 %v3188, %v2537
        %v3190 = vadd.f32 %v3189, %v2541
        %v3191 = vadd.f32 %v3190, %v2545
        %v3192 = vadd.f32 %v3191, %v2549
        %v3193 = vadd.f32 %v3192, %v2553
        %v3194 = vadd.f32 %v3193, %v2557
        %v3195 = vadd.f32 %v3194, %v2561
        %v3196 = vadd.f32 %v3195, %v2565
        %v3197 = vadd.f32 %v3196, %v2569
        %v3198 = vadd.f32 %v3197, %v2573
        %v3199 = vadd.f32 %v3198, %v2577
        %v3200 = vadd.f32 %v3199, %v2581
        %v3201 = vadd.f32 %v3200, %v2585
        %v3202 = vadd.f32 %v3201, %v2589
        %v3203 = vadd.f32 %v3202, %v2593
        %v3204 = vadd.f32 %v3203, %v2597
        %v3205 = vadd.f32 %v3204, %v2601
        %v3206 = vadd.f32 %v3205, %v2605
        %v3207 = vadd.f32 %v3206, %v2609
        %v3208 = vadd.f32 %v3207, %v2613
        %v3209 = vadd.f32 %v3208, %v2617
        %v3210 = vadd.f32 %v3209, %v2621
        %v3211 = vadd.f32 %v3210, %v2625
        %v3212 = vadd.f32 %v3211, %v2629
        %v3213 = vadd.f32 %v3212, %v2633
        %v3214 = vadd.f32 %v3213, %v2637
        %v3215 = vadd.f32 %v3214, %v2641
        %v3216 = vadd.f32 %v3215, %v2645
        %v3217 = vadd.f32 %v3216, %v2649
        %v3218 = vadd.f32 %v3217, %v2653
        %v3219 = vadd.f32 %v3218, %v2657
        %v3220 = vadd.f32 %v3219, %v2661
        %v3221 = vadd.f32 %v3220, %v2665
        %v3222 = vadd.f32 %v3221, %v2669
        %v3223 = vadd.f32 %v3222, %v2673
        %v3224 = vadd.f32 %v3223, %v2677
        %v3225 = vadd.f32 %v3224, %v2681
        %v3226 = vadd.f32 %v3225, %v2685
        %v3227 = vadd.f32 %v3226, %v2689
        %v3228 = vadd.f32 %v3227, %v2693
        %v3229 = vadd.f32 %v3228, %v2697
        %v3230 = vadd.f32 %v3229, %v2701
        %v3231 = vadd.f32 %v3230, %v2705
        %v3232 = vadd.f32 %v3231, %v2709
        %v3233 = vadd.f32 %v3232, %v2713
        %v3234 = vadd.f32 %v3233, %v2717
        %v3235 = vadd.f32 %v3234, %v2721
        %v3236 = vadd.f32 %v3235, %v2725
        %v3237 = vadd.f32 %v3236, %v2729
        %v3238 = vadd.f32 %v3237, %v2733
        %v3239 = vadd.f32 %v3238, %v2737
        %v3240 = vadd.f32 %v3239, %v2741
        %v3241 = vadd.f32 %v3240, %v2745
        %v3242 = vadd.f32 %v3241, %v2749
        %v3243 = vadd.f32 %v3242, %v2753
        %v3244 = vadd.f32 %v3243, %v2757
        %v3245 = vadd.f32 %v3244, %v2761
        %v3246 = vadd.f32 %v3245, %v2765
        %v3247 = vadd.f32 %v3246, %v2769
        %v3248 = vadd.f32 %v3247, %v2773
        %v3249 = vadd.f32 %v3248, %v2777
        %v3250 = vadd.f32 %v3249, %v2781
        %v3251 = vadd.f32 %v3250, %v2785
        %v3252 = vadd.f32 %v3251, %v2789
        %v3253 = vadd.f32 %v3252, %v2793
        %v3254 = vadd.f32 %v3253, %v2797
        %v3255 = vadd.f32 %v3254, %v2801
        %v3256 = vadd.f32 %v3255, %v2805
        %v3257 = vadd.f32 %v3256, %v2809
        %v3258 = vadd.f32 %v3257, %v2813
        %v3259 = vadd.f32 %v3258, %v2817
        %v3260 = vadd.f32 %v3259, %v2821
        %v3261 = vadd.f32 %v3260, %v2825
        %v3262 = vadd.f32 %v3261, %v2829
        %v3263 = vadd.f32 %v3262, %v2833
        %v3264 = vadd.f32 %v3263, %v2837
        %v3265 = vadd.f32 %v3264, %v2841
        %v3266 = vadd.f32 %v3265, %v2845
        %v3267 = vadd.f32 %v3266, %v2849
        %v3268 = vadd.f32 %v3267, %v2853
        %v3269 = vadd.f32 %v3268, %v2857
        %v3270 = vadd.f32 %v3269, %v2861
        %v3271 = vadd.f32 %v3270, %v2865
        %v3272 = vadd.f32 %v3271, %v2869
        %v3273 = vadd.f32 %v3272, %v2873
        %v3274 = vadd.f32 %v3273, %v2877
        %v3275 = vadd.f32 %v3274, %v2881
        %v3276 = vadd.f32 %v3275, %v2885
        %v3277 = vadd.f32 %v3276, %v2889
        %v3278 = vadd.f32 %v3277, %v2893
        %v3279 = vadd.f32 %v3278, %v2897
        %v3280 = vadd.f32 %v3279, %v2901
        %v3281 = vadd.f32 %v3280, %v2905
        %v3282 = vadd.f32 %v3281, %v2909
        %v3283 = vadd.f32 %v3282, %v2913
        %v3284 = vadd.f32 %v3283, %v2917
        %v3285 = vadd.f32 %v3284, %v2921
        %v3286 = vadd.f32 %v3285, %v2925
        %v3287 = vadd.f32 %v3286, %v2929
        %v3288 = vadd.f32 %v3287, %v2933
        %v3289 = vadd.f32 %v3288, %v2937
        %v3290 = vadd.f32 %v3289, %v2941
        %v3291 = vadd.f32 %v3290, %v2945
        %v3292 = vrot.slane %v3291, 4
        %v3293 = vadd.f32 %v3291, %v3292
        %v3294 = vrot.slane %v3293, 2
        %v3295 = vadd.f32 %v3293, %v3294
        %v3296 = vrot.slane %v3295, 1
        %v3297 = vadd.f32 %v3295, %v3296
        %v3298 = vadd.f32 %v2502, %v2506
        %v3299 = vadd.f32 %v3298, %v2510
        %v3300 = vadd.f32 %v3299, %v2514
        %v3301 = vadd.f32 %v3300, %v2518
        %v3302 = vadd.f32 %v3301, %v2522
        %v3303 = vadd.f32 %v3302, %v2526
        %v3304 = vadd.f32 %v3303, %v2530
        %v3305 = vadd.f32 %v3304, %v2534
        %v3306 = vadd.f32 %v3305, %v2538
        %v3307 = vadd.f32 %v3306, %v2542
        %v3308 = vadd.f32 %v3307, %v2546
        %v3309 = vadd.f32 %v3308, %v2550
        %v3310 = vadd.f32 %v3309, %v2554
        %v3311 = vadd.f32 %v3310, %v2558
        %v3312 = vadd.f32 %v3311, %v2562
        %v3313 = vadd.f32 %v3312, %v2566
        %v3314 = vadd.f32 %v3313, %v2570
        %v3315 = vadd.f32 %v3314, %v2574
        %v3316 = vadd.f32 %v3315, %v2578
        %v3317 = vadd.f32 %v3316, %v2582
        %v3318 = vadd.f32 %v3317, %v2586
        %v3319 = vadd.f32 %v3318, %v2590
        %v3320 = vadd.f32 %v3319, %v2594
        %v3321 = vadd.f32 %v3320, %v2598
        %v3322 = vadd.f32 %v3321, %v2602
        %v3323 = vadd.f32 %v3322, %v2606
        %v3324 = vadd.f32 %v3323, %v2610
        %v3325 = vadd.f32 %v3324, %v2614
        %v3326 = vadd.f32 %v3325, %v2618
        %v3327 = vadd.f32 %v3326, %v2622
        %v3328 = vadd.f32 %v3327, %v2626
        %v3329 = vadd.f32 %v3328, %v2630
        %v3330 = vadd.f32 %v3329, %v2634
        %v3331 = vadd.f32 %v3330, %v2638
        %v3332 = vadd.f32 %v3331, %v2642
        %v3333 = vadd.f32 %v3332, %v2646
        %v3334 = vadd.f32 %v3333, %v2650
        %v3335 = vadd.f32 %v3334, %v2654
        %v3336 = vadd.f32 %v3335, %v2658
        %v3337 = vadd.f32 %v3336, %v2662
        %v3338 = vadd.f32 %v3337, %v2666
        %v3339 = vadd.f32 %v3338, %v2670
        %v3340 = vadd.f32 %v3339, %v2674
        %v3341 = vadd.f32 %v3340, %v2678
        %v3342 = vadd.f32 %v3341, %v2682
        %v3343 = vadd.f32 %v3342, %v2686
        %v3344 = vadd.f32 %v3343, %v2690
        %v3345 = vadd.f32 %v3344, %v2694
        %v3346 = vadd.f32 %v3345, %v2698
        %v3347 = vadd.f32 %v3346, %v2702
        %v3348 = vadd.f32 %v3347, %v2706
        %v3349 = vadd.f32 %v3348, %v2710
        %v3350 = vadd.f32 %v3349, %v2714
        %v3351 = vadd.f32 %v3350, %v2718
        %v3352 = vadd.f32 %v3351, %v2722
        %v3353 = vadd.f32 %v3352, %v2726
        %v3354 = vadd.f32 %v3353, %v2730
        %v3355 = vadd.f32 %v3354, %v2734
        %v3356 = vadd.f32 %v3355, %v2738
        %v3357 = vadd.f32 %v3356, %v2742
        %v3358 = vadd.f32 %v3357, %v2746
        %v3359 = vadd.f32 %v3358, %v2750
        %v3360 = vadd.f32 %v3359, %v2754
        %v3361 = vadd.f32 %v3360, %v2758
        %v3362 = vadd.f32 %v3361, %v2762
        %v3363 = vadd.f32 %v3362, %v2766
        %v3364 = vadd.f32 %v3363, %v2770
        %v3365 = vadd.f32 %v3364, %v2774
        %v3366 = vadd.f32 %v3365, %v2778
        %v3367 = vadd.f32 %v3366, %v2782
        %v3368 = vadd.f32 %v3367, %v2786
        %v3369 = vadd.f32 %v3368, %v2790
        %v3370 = vadd.f32 %v3369, %v2794
        %v3371 = vadd.f32 %v3370, %v2798
        %v3372 = vadd.f32 %v3371, %v2802
        %v3373 = vadd.f32 %v3372, %v2806
        %v3374 = vadd.f32 %v3373, %v2810
        %v3375 = vadd.f32 %v3374, %v2814
        %v3376 = vadd.f32 %v3375, %v2818
        %v3377 = vadd.f32 %v3376, %v2822
        %v3378 = vadd.f32 %v3377, %v2826
        %v3379 = vadd.f32 %v3378, %v2830
        %v3380 = vadd.f32 %v3379, %v2834
        %v3381 = vadd.f32 %v3380, %v2838
        %v3382 = vadd.f32 %v3381, %v2842
        %v3383 = vadd.f32 %v3382, %v2846
        %v3384 = vadd.f32 %v3383, %v2850
        %v3385 = vadd.f32 %v3384, %v2854
        %v3386 = vadd.f32 %v3385, %v2858
        %v3387 = vadd.f32 %v3386, %v2862
        %v3388 = vadd.f32 %v3387, %v2866
        %v3389 = vadd.f32 %v3388, %v2870
        %v3390 = vadd.f32 %v3389, %v2874
        %v3391 = vadd.f32 %v3390, %v2878
        %v3392 = vadd.f32 %v3391, %v2882
        %v3393 = vadd.f32 %v3392, %v2886
        %v3394 = vadd.f32 %v3393, %v2890
        %v3395 = vadd.f32 %v3394, %v2894
        %v3396 = vadd.f32 %v3395, %v2898
        %v3397 = vadd.f32 %v3396, %v2902
        %v3398 = vadd.f32 %v3397, %v2906
        %v3399 = vadd.f32 %v3398, %v2910
        %v3400 = vadd.f32 %v3399, %v2914
        %v3401 = vadd.f32 %v3400, %v2918
        %v3402 = vadd.f32 %v3401, %v2922
        %v3403 = vadd.f32 %v3402, %v2926
        %v3404 = vadd.f32 %v3403, %v2930
        %v3405 = vadd.f32 %v3404, %v2934
        %v3406 = vadd.f32 %v3405, %v2938
        %v3407 = vadd.f32 %v3406, %v2942
        %v3408 = vadd.f32 %v3407, %v2946
        %v3409 = vrot.slane %v3408, 4
        %v3410 = vadd.f32 %v3408, %v3409
        %v3411 = vrot.slane %v3410, 2
        %v3412 = vadd.f32 %v3410, %v3411
        %v3413 = vrot.slane %v3412, 1
        %v3414 = vadd.f32 %v3412, %v3413
        %vm3415 = vcmask 1040384
        %v3416 = vsel %vm3415, %v2147, %v3063
        %v3417 = vsel %vm3415, %v2264, %v3180
        %v3418 = vsel %vm3415, %v2381, %v3297
        %v3419 = vsel %vm3415, %v2498, %v3414
        %v3424 = vcombine.low %v3416, %v3417
        %v3425 = vcombine.low %v3418, %v3419
        %v3427 = vunpack.c.l.s4 1983009808
        %v3428 = vunpack.c.0.s8 %v3427
        %v3429 = vlaneseq
        %v3430 = vshrl.u32 %v3429, 7
        %v3431 = vsub.s32 %v3428, %v3430
        %v3432 = vrot.slane %v3424, %v3431
        %v3434 = vunpack.c.l.s4 1983009808
        %v3435 = vunpack.c.0.s8 %v3434
        %v3436 = vlaneseq
        %v3437 = vshrl.u32 %v3436, 7
        %v3438 = vsub.s32 %v3435, %v3437
        %v3439 = vrot.slane %v3425, %v3438
        %v3440 = vcombine.low %v3432, %v3439
        %3442 = vst [vmem:[%s194] sm:$0xff] %v3440
        %s3443 = sand.u32 %s91, 1
        %s3444 = scalar_lea.sflag [#allocation4], %s3443
        %s3445 = sand.u32 %s91, 1
        %s3446 = smul.addr %s3445, 8
        %s3447 = scalar_lea.vmem [#allocation7], %s3446
        // Predicated region
        $region37: #{tpu_custom_call.1} parent=27 // pred_check
          %p3448 = pneg %p101
        $region38: #{tpu_custom_call.1} parent=27 // pred_check_branch
          %3450 = sbr.rel (%p3448) target = $region40
        $region39: #{tpu_custom_call.1} parent=27 // pred_region
          %s3452 = ssub.s32 128, 128
          %3453 = vsyncadd %s3444, %s3452
          %s3454 = smul.addr %s25, 4
          %s3455 = smul.addr %s24, 4
          %s3456 = sadd.s32 %s3454, %s3455
          %s3457 = smul.addr %s3456, 32
          %s3458 = scalar_lea.hbm %s2, %s3457
          %s3460 = sshll.u32 %s3447, 4
          %s3461 = int_to_ptr.vmem [resolvable:$true] %s3460
          %3463 = dma.vmem_to_hbm [thread:$0]  %s3461, 128, %s3458, %s3444
        $region40: #{tpu_custom_call.1} parent=27 // pred_fallthru
          _
      $region28: #{tpu_custom_call.1} parent=5 // pred_fallthru
        _
      %p3464 = scmp.le.s32.totalorder 2, %s15
      // Predicated region
      $region41: #{tpu_custom_call.1} parent=5 // pred_check
        %p3465 = pneg %p3464
      $region42: #{tpu_custom_call.1} parent=5 // pred_check_branch
        %3467 = sbr.rel (%p3465) target = $region44
      $region43: #{tpu_custom_call.1} parent=5 // pred_region
        %s3468 = ssub.s32 %s15, 2
        // Predicated region
        $region45: #{tpu_custom_call.1} parent=43 // pred_check
          %p3469 = pneg %p107
        $region46: #{tpu_custom_call.1} parent=43 // pred_check_branch
          %3471 = sbr.rel (%p3469) target = $region48
        $region47: #{tpu_custom_call.1} parent=43 // pred_region
          %s3472 = sand.u32 %s92, 1
          %s3473 = scalar_lea.sflag [#allocation4], %s3472
          %s3474 = sand.u32 %s92, 1
          %s3475 = smul.addr %s3474, 8
          %s3476 = scalar_lea.vmem [#allocation7], %s3475
          %3477 = dma.done %s3473, 128
        $region48: #{tpu_custom_call.1} parent=43 // pred_fallthru
          _
      $region44: #{tpu_custom_call.1} parent=5 // pred_fallthru
        _
    $region6: #{tpu_custom_call.1} parent=1 // loop_footer
      %s19 = sadd.s32 1, %s15
    $region7: #{tpu_custom_call.1} parent=1 // loop_footer_branch
      %14 = sbr.rel target = $region3
    $region8: #{tpu_custom_call.1} parent=1 // loop_exit
      _
    %3478 = vsyncpa [#allocation3], 1
    %s3479 = scalar_lea.sflag [#allocation3], 1
    %3480 = vsyncpa %s3479, 1
    %3481 = vsyncpa [#allocation6], 1
    %3482 = vsyncpa [#allocation4], 1
    %s3483 = scalar_lea.sflag [#allocation4], 1
    %3484 = vsyncpa %s3483, 1

</llo_original>
